<compile_context>
chip_gen: v7x
topology: tpu7x:2x2x1
jax: 0.10.0
libtpu: 0.0.40
codegen_flags: <defaults>
</compile_context>

<pallas_src>
import functools

import jax
import jax.numpy as jnp
from jax import lax
from jax.experimental import pallas as pl
from jax.experimental.pallas import tpu as pltpu


# -----------------------------------------------------------------------------
# In-kernel helpers
# -----------------------------------------------------------------------------
def _ln(v, g, b, eps, out_dtype=jnp.float32):
    """Row-wise LayerNorm (stats in f32); emits `out_dtype` directly so values
    feeding the MXU are cast exactly once."""
    mu = jnp.mean(v, axis=-1, keepdims=True)
    c = v - mu
    var = jnp.mean(c * c, axis=-1, keepdims=True)
    return ((c * lax.rsqrt(var + eps)) * g + b).astype(out_dtype)


# -----------------------------------------------------------------------------
# The single fused kernel: patch-embed + all transformer blocks + final LN
# -----------------------------------------------------------------------------
def _ast_fused_kernel(patches_ref, pw_ref, pb_ref, cls_ref, pos_ref,
                      n1g_ref, n1b_ref, qkvw_ref, qkvb_ref, projw_ref, projb_ref,
                      n2g_ref, n2b_ref, fc1w_ref, fc1b_ref, fc2w_ref, fc2b_ref,
                      fng_ref, fnb_ref, o_ref, *, B, n_tok, heads, eps):
    l = pl.program_id(0)                 # layer index (sequential grid axis)
    D = pw_ref.shape[1]
    Dh = D // heads
    BN = B * n_tok
    scale = Dh ** -0.5

    # ---- step 0: patch-embed matmul + CLS + pos-embed into the resident block
    @pl.when(l == 0)
    def _():
        tok = jnp.dot(patches_ref[...].astype(jnp.bfloat16), pw_ref[...],
                      preferred_element_type=jnp.float32)          # (B*n_tok, D)
        # Row 0 of every batch is the dummy zero patch -> becomes the CLS token.
        # (single full-tile store; no sublane-offset masked stores)
        row = lax.broadcasted_iota(jnp.int32, (n_tok, D), 0)
        add = pos_ref[...] + jnp.where(row == 0, cls_ref[...], pb_ref[...])
        o_ref[...] = tok.reshape(B, n_tok, D) + add

    # Residual stream: VMEM-resident across all depth steps (constant out index).
    x = o_ref[...].reshape(BN, D)                                   # (B*N, D) f32

    # ---------------- attention branch ----------------
    h = _ln(x, n1g_ref[0], n1b_ref[0], eps, jnp.bfloat16)
    qkv = (jnp.dot(h, qkvw_ref[0], preferred_element_type=jnp.float32)
           + qkvb_ref[0]).astype(jnp.bfloat16)                      # (B*N, 3D)

    outs = []
    for b in range(B):                   # static: scores must stay per-batch
        qkv_b = qkv[b * n_tok:(b + 1) * n_tok, :]
        head_outs = []
        for hd in range(heads):          # static: tiny per-head contractions
            q = qkv_b[:, hd * Dh:(hd + 1) * Dh]
            k = qkv_b[:, D + hd * Dh:D + (hd + 1) * Dh]
            v = qkv_b[:, 2 * D + hd * Dh:2 * D + (hd + 1) * Dh]
            # q @ k^T without materializing a transpose of k.
            s = lax.dot_general(q, k, (((1,), (1,)), ((), ())),
                                preferred_element_type=jnp.float32) * scale
            s = s - jnp.max(s, axis=-1, keepdims=True)
            p = jnp.exp(s)
            p = p * pl.reciprocal(jnp.sum(p, axis=-1, keepdims=True), approx=True)
            head_outs.append(jnp.dot(p.astype(jnp.bfloat16), v,
                                     preferred_element_type=jnp.float32))
        outs.append(jnp.concatenate(head_outs, axis=-1))            # (n_tok, D)
    # Lane-concat heads + row-concat batches -> ONE (B*N, D) @ (D, D) projection.
    attn = jnp.concatenate(outs, axis=0).astype(jnp.bfloat16)       # (B*N, D)
    x = x + jnp.dot(attn, projw_ref[0],
                    preferred_element_type=jnp.float32) + projb_ref[0]

    # ---------------- MLP branch ----------------
    h = _ln(x, n2g_ref[0], n2b_ref[0], eps, jnp.bfloat16)
    h = jnp.dot(h, fc1w_ref[0], preferred_element_type=jnp.float32) + fc1b_ref[0]
    # TODO(synk): timm/AST uses exact erf-GELU; tanh-approx GELU used here (erf
    # lowering in Mosaic is not guaranteed across jax versions).
    h = jax.nn.gelu(h, approximate=True)
    h = jnp.dot(h.astype(jnp.bfloat16), fc2w_ref[0],
                preferred_element_type=jnp.float32) + fc2b_ref[0]
    y = x + h

    last = pl.num_programs(0) - 1
    @pl.when(l < last)
    def _():
        o_ref[...] = y.reshape(B, n_tok, D)

    @pl.when(l == last)                  # fuse the encoder's final LayerNorm
    def _():
        o_ref[...] = _ln(y, fng_ref[...], fnb_ref[...], eps).reshape(B, n_tok, D)


# -----------------------------------------------------------------------------
# Wrapper: im2col + single pallas_call over the depth grid
# -----------------------------------------------------------------------------
def ast_encoder_forward(x, params, cfg):
    """x: (B, 1, F, T) float32 log-mel spectrogram -> (B, 1+num_patches, D)."""
    B = x.shape[0]
    P, D = cfg["patch"], cfg["embed_dim"]
    Hm = cfg["mlp_ratio"] * D
    depth, heads = cfg["depth"], cfg["heads"]

    # im2col in one XLA op (feature order = (c, kh, kw), matching flattened
    # Conv2d weights).  Replaces the python per-patch slice loop.
    patches = lax.conv_general_dilated_patches(
        x, (P, P), (cfg["fstride"], cfg["tstride"]), padding="VALID")
    K = patches.shape[1]
    n = patches.shape[2] * patches.shape[3]
    n_tok = n + 1
    patches = patches.reshape(B, K, n).transpose(0, 2, 1)           # (B, n, K)
    # Dummy zero "CLS patch" row per batch -> the patch-embed matmul output is
    # already row-aligned with token positions.  Batch folded into matmul rows.
    patches = jnp.pad(patches, ((0, 0), (1, 0), (0, 0))).reshape(B * n_tok, K)

    lmap = lambda l: (l, 0, 0)      # per-layer stacked weights (double-buffered)
    cmap2 = lambda l: (0, 0)        # layer-invariant operands (DMA'd once)
    cmap3 = lambda l: (0, 0, 0)

    return pl.pallas_call(
        functools.partial(_ast_fused_kernel, B=B, n_tok=n_tok, heads=heads,
                          eps=1e-6),
        out_shape=jax.ShapeDtypeStruct((B, n_tok, D), jnp.float32),
        grid=(depth,),
        in_specs=[
            pl.BlockSpec((B * n_tok, K), cmap2),      # patches (padded, flat)
            pl.BlockSpec((K, D), cmap2),              # patch_w (bf16)
            pl.BlockSpec((1, D), cmap2),              # patch_b
            pl.BlockSpec((1, D), cmap2),              # cls token
            pl.BlockSpec((n_tok, D), cmap2),          # pos embed
            pl.BlockSpec((1, 1, D), lmap),            # ln1 gamma
            pl.BlockSpec((1, 1, D), lmap),            # ln1 beta
            pl.BlockSpec((1, D, 3 * D), lmap),        # qkv_w (bf16)
            pl.BlockSpec((1, 1, 3 * D), lmap),        # qkv_b
            pl.BlockSpec((1, D, D), lmap),            # proj_w (bf16)
            pl.BlockSpec((1, 1, D), lmap),            # proj_b
            pl.BlockSpec((1, 1, D), lmap),            # ln2 gamma
            pl.BlockSpec((1, 1, D), lmap),            # ln2 beta
            pl.BlockSpec((1, D, Hm), lmap),           # fc1_w (bf16)
            pl.BlockSpec((1, 1, Hm), lmap),           # fc1_b
            pl.BlockSpec((1, Hm, D), lmap),           # fc2_w (bf16)
            pl.BlockSpec((1, 1, D), lmap),            # fc2_b
            pl.BlockSpec((1, D), cmap2),              # final norm gamma
            pl.BlockSpec((1, D), cmap2),              # final norm beta
        ],
        # Constant index map across the depth axis: the output block IS the
        # VMEM-resident residual stream; HBM writeback happens once, at the end.
        out_specs=pl.BlockSpec((B, n_tok, D), cmap3),
        compiler_params=pltpu.CompilerParams(
            dimension_semantics=("arbitrary",)),      # depth carries the residual
    )(patches, params["patch_w"], params["patch_b"], params["cls"], params["pos"],
      params["ln1_g"], params["ln1_b"], params["qkv_w"], params["qkv_b"],
      params["proj_w"], params["proj_b"], params["ln2_g"], params["ln2_b"],
      params["fc1_w"], params["fc1_b"], params["fc2_w"], params["fc2_b"],
      params["norm_g"], params["norm_b"])


# -----------------------------------------------------------------------------
# Parameters (scaled-down AST; per-layer weights stacked along a depth axis)
# -----------------------------------------------------------------------------
CFG = dict(in_ch=1, img_f=16, img_t=24, patch=8, fstride=4, tstride=4,
           embed_dim=32, depth=2, heads=4, mlp_ratio=4)


def init_params(key, cfg):
    D = cfg["embed_dim"]
    P = cfg["patch"]
    C = cfg["in_ch"]
    Hm = cfg["mlp_ratio"] * D
    depth = cfg["depth"]
    fo = (cfg["img_f"] - P) // cfg["fstride"] + 1
    to = (cfg["img_t"] - P) // cfg["tstride"] + 1
    n_tok = fo * to + 1

    ks = iter(jax.random.split(key, 16))
    nrm = lambda k, s, dt=jnp.float32: (
        0.02 * jax.random.normal(k, s, jnp.float32)).astype(dt)

    return dict(
        # Conv2d weight flattened as (c, kh, kw) x D; MXU weights stored bf16.
        patch_w=nrm(next(ks), (C * P * P, D), jnp.bfloat16),
        patch_b=nrm(next(ks), (1, D)),
        cls=nrm(next(ks), (1, D)),
        pos=nrm(next(ks), (n_tok, D)),
        ln1_g=jnp.ones((depth, 1, D), jnp.float32),
        ln1_b=jnp.zeros((depth, 1, D), jnp.float32),
        qkv_w=nrm(next(ks), (depth, D, 3 * D), jnp.bfloat16),
        qkv_b=nrm(next(ks), (depth, 1, 3 * D)),
        proj_w=nrm(next(ks), (depth, D, D), jnp.bfloat16),
        proj_b=nrm(next(ks), (depth, 1, D)),
        ln2_g=jnp.ones((depth, 1, D), jnp.float32),
        ln2_b=jnp.zeros((depth, 1, D), jnp.float32),
        fc1_w=nrm(next(ks), (depth, D, Hm), jnp.bfloat16),
        fc1_b=nrm(next(ks), (depth, 1, Hm)),
        fc2_w=nrm(next(ks), (depth, Hm, D), jnp.bfloat16),
        fc2_b=nrm(next(ks), (depth, 1, D)),
        norm_g=jnp.ones((1, D), jnp.float32),
        norm_b=jnp.zeros((1, D), jnp.float32),
    )


# -----------------------------------------------------------------------------
if __name__ == "__main__":
    key = jax.random.PRNGKey(0)
    k_param, k_input = jax.random.split(key)

    params = init_params(k_param, CFG)
    x = jax.random.normal(
        k_input, (2, CFG["in_ch"], CFG["img_f"], CFG["img_t"]), dtype=jnp.float32)

    fwd = jax.jit(functools.partial(ast_encoder_forward, cfg=CFG))
    out = jax.block_until_ready(fwd(x, params))

    expected_tokens = ((CFG["img_f"] - CFG["patch"]) // CFG["fstride"] + 1) * \
                      ((CFG["img_t"] - CFG["patch"]) // CFG["tstride"] + 1) + 1
    assert out.shape == (2, expected_tokens, CFG["embed_dim"]), out.shape
    assert bool(jnp.all(jnp.isfinite(out)))
    print("KERNEL_OK")
</pallas_src>

<mosaic_0001>
module attributes {stable_mosaic.version = 11 : i64} {
  func.func @_ast_fused_kernel(%arg0: i32, %arg1: memref<32x64xf32, #tpu.memory_space<vmem>>, %arg2: memref<64x32xbf16, #tpu.memory_space<vmem>>, %arg3: memref<1x32xf32, #tpu.memory_space<vmem>>, %arg4: memref<1x32xf32, #tpu.memory_space<vmem>>, %arg5: memref<16x32xf32, #tpu.memory_space<vmem>>, %arg6: memref<1x1x32xf32, #tpu.memory_space<vmem>>, %arg7: memref<1x1x32xf32, #tpu.memory_space<vmem>>, %arg8: memref<1x32x96xbf16, #tpu.memory_space<vmem>>, %arg9: memref<1x1x96xf32, #tpu.memory_space<vmem>>, %arg10: memref<1x32x32xbf16, #tpu.memory_space<vmem>>, %arg11: memref<1x1x32xf32, #tpu.memory_space<vmem>>, %arg12: memref<1x1x32xf32, #tpu.memory_space<vmem>>, %arg13: memref<1x1x32xf32, #tpu.memory_space<vmem>>, %arg14: memref<1x32x128xbf16, #tpu.memory_space<vmem>>, %arg15: memref<1x1x128xf32, #tpu.memory_space<vmem>>, %arg16: memref<1x128x32xbf16, #tpu.memory_space<vmem>>, %arg17: memref<1x1x32xf32, #tpu.memory_space<vmem>>, %arg18: memref<1x32xf32, #tpu.memory_space<vmem>>, %arg19: memref<1x32xf32, #tpu.memory_space<vmem>>, %arg20: memref<2x16x32xf32, #tpu.memory_space<vmem>>) attributes {dimension_semantics = [#tpu.dimension_semantics<arbitrary>], iteration_bounds = array<i64: 2>, scalar_prefetch = 0 : i64, scratch_operands = 0 : i64, tpu.core_type = #tpu.core_type<tc>, window_params = [{pipeline_mode = #tpu.pipeline_mode<synchronous>, transform_indices = @transform_0, window_bounds = array<i64: 32, 64>}, {pipeline_mode = #tpu.pipeline_mode<synchronous>, transform_indices = @transform_1, window_bounds = array<i64: 64, 32>}, {pipeline_mode = #tpu.pipeline_mode<synchronous>, transform_indices = @transform_2, window_bounds = array<i64: 1, 32>}, {pipeline_mode = #tpu.pipeline_mode<synchronous>, transform_indices = @transform_3, window_bounds = array<i64: 1, 32>}, {pipeline_mode = #tpu.pipeline_mode<synchronous>, transform_indices = @transform_4, window_bounds = array<i64: 16, 32>}, {transform_indices = @transform_5, window_bounds = array<i64: 1, 1, 32>}, {transform_indices = @transform_6, window_bounds = array<i64: 1, 1, 32>}, {transform_indices = @transform_7, window_bounds = array<i64: 1, 32, 96>}, {transform_indices = @transform_8, window_bounds = array<i64: 1, 1, 96>}, {transform_indices = @transform_9, window_bounds = array<i64: 1, 32, 32>}, {transform_indices = @transform_10, window_bounds = array<i64: 1, 1, 32>}, {transform_indices = @transform_11, window_bounds = array<i64: 1, 1, 32>}, {transform_indices = @transform_12, window_bounds = array<i64: 1, 1, 32>}, {transform_indices = @transform_13, window_bounds = array<i64: 1, 32, 128>}, {transform_indices = @transform_14, window_bounds = array<i64: 1, 1, 128>}, {transform_indices = @transform_15, window_bounds = array<i64: 1, 128, 32>}, {transform_indices = @transform_16, window_bounds = array<i64: 1, 1, 32>}, {pipeline_mode = #tpu.pipeline_mode<synchronous>, transform_indices = @transform_17, window_bounds = array<i64: 1, 32>}, {pipeline_mode = #tpu.pipeline_mode<synchronous>, transform_indices = @transform_18, window_bounds = array<i64: 1, 32>}, {pipeline_mode = #tpu.pipeline_mode<synchronous>, transform_indices = @transform_19, window_bounds = array<i64: 2, 16, 32>}]} {
    %c0_i32 = arith.constant 0 : i32
    %0 = arith.cmpi eq, %arg0, %c0_i32 : i32
    %1 = arith.extui %0 : i1 to i32
    %c0_i32_0 = arith.constant 0 : i32
    %2 = arith.cmpi ne, %1, %c0_i32_0 : i32
    scf.if %2 {
      %c0_99 = arith.constant 0 : index
      %c0_100 = arith.constant 0 : index
      %256 = vector.load %arg1[%c0_99, %c0_100] : memref<32x64xf32, #tpu.memory_space<vmem>>, vector<32x64xf32>
      %257 = arith.truncf %256 : vector<32x64xf32> to vector<32x64xbf16>
      %c0_101 = arith.constant 0 : index
      %c0_102 = arith.constant 0 : index
      %258 = vector.load %arg2[%c0_101, %c0_102] : memref<64x32xbf16, #tpu.memory_space<vmem>>, vector<64x32xbf16>
      %cst_103 = arith.constant dense<0.000000e+00> : vector<32x32xf32>
      %259 = tpu.matmul %257, %258, %cst_103 {dimension_numbers = #tpu.dot_dimension_numbers<[1], [0], [0], [1], [0, 0, 1, 1], [], []>} : vector<32x64xbf16>, vector<64x32xbf16>, vector<32x32xf32> -> vector<32x32xf32>
      %260 = tpu.iota {dimensions = array<i32: 0>} : vector<16x32xi32>
      %c0_104 = arith.constant 0 : index
      %c0_105 = arith.constant 0 : index
      %261 = vector.load %arg5[%c0_104, %c0_105] : memref<16x32xf32, #tpu.memory_space<vmem>>, vector<16x32xf32>
      %c0_i32_106 = arith.constant 0 : i32
      %262 = vector.broadcast %c0_i32_106 : i32 to vector<16x32xi32>
      %263 = arith.cmpi eq, %260, %262 : vector<16x32xi32>
      %c0_107 = arith.constant 0 : index
      %c0_108 = arith.constant 0 : index
      %264 = vector.load %arg4[%c0_107, %c0_108] : memref<1x32xf32, #tpu.memory_space<vmem>>, vector<1x32xf32>
      %c0_109 = arith.constant 0 : index
      %c0_110 = arith.constant 0 : index
      %265 = vector.load %arg3[%c0_109, %c0_110] : memref<1x32xf32, #tpu.memory_space<vmem>>, vector<1x32xf32>
      %266 = vector.shape_cast %264 : vector<1x32xf32> to vector<1x32xf32>
      %267 = vector.broadcast %266 : vector<1x32xf32> to vector<16x32xf32>
      %268 = vector.shape_cast %265 : vector<1x32xf32> to vector<1x32xf32>
      %269 = vector.broadcast %268 : vector<1x32xf32> to vector<16x32xf32>
      %270 = arith.select %263, %267, %269 : vector<16x32xi1>, vector<16x32xf32>
      %271 = arith.addf %261, %270 : vector<16x32xf32>
      %272 = vector.shape_cast %259 : vector<32x32xf32> to vector<2x16x32xf32>
      %273 = vector.shape_cast %271 : vector<16x32xf32> to vector<1x16x32xf32>
      %274 = vector.broadcast %273 : vector<1x16x32xf32> to vector<2x16x32xf32>
      %275 = arith.addf %272, %274 : vector<2x16x32xf32>
      %c0_111 = arith.constant 0 : index
      %c0_112 = arith.constant 0 : index
      %c0_113 = arith.constant 0 : index
      %276 = vector.load %arg20[%c0_111, %c0_112, %c0_113] : memref<2x16x32xf32, #tpu.memory_space<vmem>>, vector<2x16x32xf32>
      tpu.vector_store %arg20[%c0_111, %c0_112, %c0_113], %275 {strides = array<i32>} : memref<2x16x32xf32, #tpu.memory_space<vmem>>, vector<2x16x32xf32>,
    } else {
    }
    %c0 = arith.constant 0 : index
    %c0_1 = arith.constant 0 : index
    %c0_2 = arith.constant 0 : index
    %3 = vector.load %arg20[%c0, %c0_1, %c0_2] : memref<2x16x32xf32, #tpu.memory_space<vmem>>, vector<2x16x32xf32>
    %4 = vector.shape_cast %3 : vector<2x16x32xf32> to vector<32x32xf32>
    %c0_3 = arith.constant 0 : index
    %c0_4 = arith.constant 0 : index
    %c0_5 = arith.constant 0 : index
    %5 = vector.load %arg6[%c0_3, %c0_4, %c0_5] : memref<1x1x32xf32, #tpu.memory_space<vmem>>, vector<1x1x32xf32>
    %6 = vector.shape_cast %5 : vector<1x1x32xf32> to vector<1x32xf32>
    %c0_6 = arith.constant 0 : index
    %c0_7 = arith.constant 0 : index
    %c0_8 = arith.constant 0 : index
    %7 = vector.load %arg7[%c0_6, %c0_7, %c0_8] : memref<1x1x32xf32, #tpu.memory_space<vmem>>, vector<1x1x32xf32>
    %8 = vector.shape_cast %7 : vector<1x1x32xf32> to vector<1x32xf32>
    %cst = arith.constant dense<0.000000e+00> : vector<32xf32>
    %9 = vector.multi_reduction <add>, %4, %cst [1] : vector<32x32xf32> to vector<32xf32>
    %10 = vector.shape_cast %9 : vector<32xf32> to vector<32x1xf32>
    %cst_9 = arith.constant 3.200000e+01 : f32
    %11 = vector.broadcast %cst_9 : f32 to vector<32x1xf32>
    %12 = arith.divf %10, %11 : vector<32x1xf32>
    %13 = vector.broadcast %12 : vector<32x1xf32> to vector<32x32xf32>
    %14 = arith.subf %4, %13 : vector<32x32xf32>
    %15 = arith.mulf %14, %14 : vector<32x32xf32>
    %cst_10 = arith.constant dense<0.000000e+00> : vector<32xf32>
    %16 = vector.multi_reduction <add>, %15, %cst_10 [1] : vector<32x32xf32> to vector<32xf32>
    %17 = vector.shape_cast %16 : vector<32xf32> to vector<32x1xf32>
    %cst_11 = arith.constant 3.200000e+01 : f32
    %18 = vector.broadcast %cst_11 : f32 to vector<32x1xf32>
    %19 = arith.divf %17, %18 : vector<32x1xf32>
    %cst_12 = arith.constant 9.99999997E-7 : f32
    %20 = vector.broadcast %cst_12 : f32 to vector<32x1xf32>
    %21 = arith.addf %19, %20 : vector<32x1xf32>
    %22 = math.rsqrt %21 : vector<32x1xf32>
    %23 = vector.broadcast %22 : vector<32x1xf32> to vector<32x32xf32>
    %24 = arith.mulf %14, %23 : vector<32x32xf32>
    %25 = vector.broadcast %6 : vector<1x32xf32> to vector<32x32xf32>
    %26 = arith.mulf %24, %25 : vector<32x32xf32>
    %27 = vector.broadcast %8 : vector<1x32xf32> to vector<32x32xf32>
    %28 = arith.addf %26, %27 : vector<32x32xf32>
    %29 = arith.truncf %28 : vector<32x32xf32> to vector<32x32xbf16>
    %c0_13 = arith.constant 0 : index
    %c0_14 = arith.constant 0 : index
    %c0_15 = arith.constant 0 : index
    %30 = vector.load %arg8[%c0_13, %c0_14, %c0_15] : memref<1x32x96xbf16, #tpu.memory_space<vmem>>, vector<1x32x96xbf16>
    %31 = vector.shape_cast %30 : vector<1x32x96xbf16> to vector<32x96xbf16>
    %cst_16 = arith.constant dense<0.000000e+00> : vector<32x96xf32>
    %32 = tpu.matmul %29, %31, %cst_16 {dimension_numbers = #tpu.dot_dimension_numbers<[1], [0], [0], [1], [0, 0, 1, 1], [], []>} : vector<32x32xbf16>, vector<32x96xbf16>, vector<32x96xf32> -> vector<32x96xf32>
    %c0_17 = arith.constant 0 : index
    %c0_18 = arith.constant 0 : index
    %c0_19 = arith.constant 0 : index
    %33 = vector.load %arg9[%c0_17, %c0_18, %c0_19] : memref<1x1x96xf32, #tpu.memory_space<vmem>>, vector<1x1x96xf32>
    %34 = vector.shape_cast %33 : vector<1x1x96xf32> to vector<1x96xf32>
    %35 = vector.broadcast %34 : vector<1x96xf32> to vector<32x96xf32>
    %36 = arith.addf %32, %35 : vector<32x96xf32>
    %37 = arith.truncf %36 : vector<32x96xf32> to vector<32x96xbf16>
    %38 = vector.extract_strided_slice %37 {offsets = [0, 0], sizes = [16, 96], strides = [1, 1]} : vector<32x96xbf16> to vector<16x96xbf16>
    %39 = vector.extract_strided_slice %38 {offsets = [0, 0], sizes = [16, 8], strides = [1, 1]} : vector<16x96xbf16> to vector<16x8xbf16>
    %40 = vector.extract_strided_slice %38 {offsets = [0, 32], sizes = [16, 8], strides = [1, 1]} : vector<16x96xbf16> to vector<16x8xbf16>
    %41 = vector.extract_strided_slice %38 {offsets = [0, 64], sizes = [16, 8], strides = [1, 1]} : vector<16x96xbf16> to vector<16x8xbf16>
    %cst_20 = arith.constant dense<0.000000e+00> : vector<16x16xf32>
    %42 = tpu.matmul %39, %40, %cst_20 {dimension_numbers = #tpu.dot_dimension_numbers<[1], [1], [0], [0], [0, 0, 1, 0], [], []>} : vector<16x8xbf16>, vector<16x8xbf16>, vector<16x16xf32> -> vector<16x16xf32>
    %cst_21 = arith.constant 0.353553385 : f32
    %43 = vector.broadcast %cst_21 : f32 to vector<16x16xf32>
    %44 = arith.mulf %42, %43 : vector<16x16xf32>
    %cst_22 = arith.constant dense<0xFF800000> : vector<16xf32>
    %45 = vector.multi_reduction <maximumf>, %44, %cst_22 [1] : vector<16x16xf32> to vector<16xf32>
    %46 = vector.shape_cast %45 : vector<16xf32> to vector<16x1xf32>
    %47 = vector.broadcast %46 : vector<16x1xf32> to vector<16x16xf32>
    %48 = arith.subf %44, %47 : vector<16x16xf32>
    %49 = math.exp %48 : vector<16x16xf32>
    %cst_23 = arith.constant dense<0.000000e+00> : vector<16xf32>
    %50 = vector.multi_reduction <add>, %49, %cst_23 [1] : vector<16x16xf32> to vector<16xf32>
    %51 = vector.shape_cast %50 : vector<16xf32> to vector<16x1xf32>
    %52 = tpu.reciprocal %51 {approx = true} : vector<16x1xf32> -> vector<16x1xf32>
    %53 = vector.broadcast %52 : vector<16x1xf32> to vector<16x16xf32>
    %54 = arith.mulf %49, %53 : vector<16x16xf32>
    %55 = arith.truncf %54 : vector<16x16xf32> to vector<16x16xbf16>
    %cst_24 = arith.constant dense<0.000000e+00> : vector<16x8xf32>
    %56 = tpu.matmul %55, %41, %cst_24 {dimension_numbers = #tpu.dot_dimension_numbers<[1], [0], [0], [1], [0, 0, 1, 1], [], []>} : vector<16x16xbf16>, vector<16x8xbf16>, vector<16x8xf32> -> vector<16x8xf32>
    %57 = vector.extract_strided_slice %38 {offsets = [0, 8], sizes = [16, 8], strides = [1, 1]} : vector<16x96xbf16> to vector<16x8xbf16>
    %58 = vector.extract_strided_slice %38 {offsets = [0, 40], sizes = [16, 8], strides = [1, 1]} : vector<16x96xbf16> to vector<16x8xbf16>
    %59 = vector.extract_strided_slice %38 {offsets = [0, 72], sizes = [16, 8], strides = [1, 1]} : vector<16x96xbf16> to vector<16x8xbf16>
    %cst_25 = arith.constant dense<0.000000e+00> : vector<16x16xf32>
    %60 = tpu.matmul %57, %58, %cst_25 {dimension_numbers = #tpu.dot_dimension_numbers<[1], [1], [0], [0], [0, 0, 1, 0], [], []>} : vector<16x8xbf16>, vector<16x8xbf16>, vector<16x16xf32> -> vector<16x16xf32>
    %cst_26 = arith.constant 0.353553385 : f32
    %61 = vector.broadcast %cst_26 : f32 to vector<16x16xf32>
    %62 = arith.mulf %60, %61 : vector<16x16xf32>
    %cst_27 = arith.constant dense<0xFF800000> : vector<16xf32>
    %63 = vector.multi_reduction <maximumf>, %62, %cst_27 [1] : vector<16x16xf32> to vector<16xf32>
    %64 = vector.shape_cast %63 : vector<16xf32> to vector<16x1xf32>
    %65 = vector.broadcast %64 : vector<16x1xf32> to vector<16x16xf32>
    %66 = arith.subf %62, %65 : vector<16x16xf32>
    %67 = math.exp %66 : vector<16x16xf32>
    %cst_28 = arith.constant dense<0.000000e+00> : vector<16xf32>
    %68 = vector.multi_reduction <add>, %67, %cst_28 [1] : vector<16x16xf32> to vector<16xf32>
    %69 = vector.shape_cast %68 : vector<16xf32> to vector<16x1xf32>
    %70 = tpu.reciprocal %69 {approx = true} : vector<16x1xf32> -> vector<16x1xf32>
    %71 = vector.broadcast %70 : vector<16x1xf32> to vector<16x16xf32>
    %72 = arith.mulf %67, %71 : vector<16x16xf32>
    %73 = arith.truncf %72 : vector<16x16xf32> to vector<16x16xbf16>
    %cst_29 = arith.constant dense<0.000000e+00> : vector<16x8xf32>
    %74 = tpu.matmul %73, %59, %cst_29 {dimension_numbers = #tpu.dot_dimension_numbers<[1], [0], [0], [1], [0, 0, 1, 1], [], []>} : vector<16x16xbf16>, vector<16x8xbf16>, vector<16x8xf32> -> vector<16x8xf32>
    %75 = vector.extract_strided_slice %38 {offsets = [0, 16], sizes = [16, 8], strides = [1, 1]} : vector<16x96xbf16> to vector<16x8xbf16>
    %76 = vector.extract_strided_slice %38 {offsets = [0, 48], sizes = [16, 8], strides = [1, 1]} : vector<16x96xbf16> to vector<16x8xbf16>
    %77 = vector.extract_strided_slice %38 {offsets = [0, 80], sizes = [16, 8], strides = [1, 1]} : vector<16x96xbf16> to vector<16x8xbf16>
    %cst_30 = arith.constant dense<0.000000e+00> : vector<16x16xf32>
    %78 = tpu.matmul %75, %76, %cst_30 {dimension_numbers = #tpu.dot_dimension_numbers<[1], [1], [0], [0], [0, 0, 1, 0], [], []>} : vector<16x8xbf16>, vector<16x8xbf16>, vector<16x16xf32> -> vector<16x16xf32>
    %cst_31 = arith.constant 0.353553385 : f32
    %79 = vector.broadcast %cst_31 : f32 to vector<16x16xf32>
    %80 = arith.mulf %78, %79 : vector<16x16xf32>
    %cst_32 = arith.constant dense<0xFF800000> : vector<16xf32>
    %81 = vector.multi_reduction <maximumf>, %80, %cst_32 [1] : vector<16x16xf32> to vector<16xf32>
    %82 = vector.shape_cast %81 : vector<16xf32> to vector<16x1xf32>
    %83 = vector.broadcast %82 : vector<16x1xf32> to vector<16x16xf32>
    %84 = arith.subf %80, %83 : vector<16x16xf32>
    %85 = math.exp %84 : vector<16x16xf32>
    %cst_33 = arith.constant dense<0.000000e+00> : vector<16xf32>
    %86 = vector.multi_reduction <add>, %85, %cst_33 [1] : vector<16x16xf32> to vector<16xf32>
    %87 = vector.shape_cast %86 : vector<16xf32> to vector<16x1xf32>
    %88 = tpu.reciprocal %87 {approx = true} : vector<16x1xf32> -> vector<16x1xf32>
    %89 = vector.broadcast %88 : vector<16x1xf32> to vector<16x16xf32>
    %90 = arith.mulf %85, %89 : vector<16x16xf32>
    %91 = arith.truncf %90 : vector<16x16xf32> to vector<16x16xbf16>
    %cst_34 = arith.constant dense<0.000000e+00> : vector<16x8xf32>
    %92 = tpu.matmul %91, %77, %cst_34 {dimension_numbers = #tpu.dot_dimension_numbers<[1], [0], [0], [1], [0, 0, 1, 1], [], []>} : vector<16x16xbf16>, vector<16x8xbf16>, vector<16x8xf32> -> vector<16x8xf32>
    %93 = vector.extract_strided_slice %38 {offsets = [0, 24], sizes = [16, 8], strides = [1, 1]} : vector<16x96xbf16> to vector<16x8xbf16>
    %94 = vector.extract_strided_slice %38 {offsets = [0, 56], sizes = [16, 8], strides = [1, 1]} : vector<16x96xbf16> to vector<16x8xbf16>
    %95 = vector.extract_strided_slice %38 {offsets = [0, 88], sizes = [16, 8], strides = [1, 1]} : vector<16x96xbf16> to vector<16x8xbf16>
    %cst_35 = arith.constant dense<0.000000e+00> : vector<16x16xf32>
    %96 = tpu.matmul %93, %94, %cst_35 {dimension_numbers = #tpu.dot_dimension_numbers<[1], [1], [0], [0], [0, 0, 1, 0], [], []>} : vector<16x8xbf16>, vector<16x8xbf16>, vector<16x16xf32> -> vector<16x16xf32>
    %cst_36 = arith.constant 0.353553385 : f32
    %97 = vector.broadcast %cst_36 : f32 to vector<16x16xf32>
    %98 = arith.mulf %96, %97 : vector<16x16xf32>
    %cst_37 = arith.constant dense<0xFF800000> : vector<16xf32>
    %99 = vector.multi_reduction <maximumf>, %98, %cst_37 [1] : vector<16x16xf32> to vector<16xf32>
    %100 = vector.shape_cast %99 : vector<16xf32> to vector<16x1xf32>
    %101 = vector.broadcast %100 : vector<16x1xf32> to vector<16x16xf32>
    %102 = arith.subf %98, %101 : vector<16x16xf32>
    %103 = math.exp %102 : vector<16x16xf32>
    %cst_38 = arith.constant dense<0.000000e+00> : vector<16xf32>
    %104 = vector.multi_reduction <add>, %103, %cst_38 [1] : vector<16x16xf32> to vector<16xf32>
    %105 = vector.shape_cast %104 : vector<16xf32> to vector<16x1xf32>
    %106 = tpu.reciprocal %105 {approx = true} : vector<16x1xf32> -> vector<16x1xf32>
    %107 = vector.broadcast %106 : vector<16x1xf32> to vector<16x16xf32>
    %108 = arith.mulf %103, %107 : vector<16x16xf32>
    %109 = arith.truncf %108 : vector<16x16xf32> to vector<16x16xbf16>
    %cst_39 = arith.constant dense<0.000000e+00> : vector<16x8xf32>
    %110 = tpu.matmul %109, %95, %cst_39 {dimension_numbers = #tpu.dot_dimension_numbers<[1], [0], [0], [1], [0, 0, 1, 1], [], []>} : vector<16x16xbf16>, vector<16x8xbf16>, vector<16x8xf32> -> vector<16x8xf32>
    %111 = tpu.concatenate %56, %74, %92, %110 in 1 : vector<16x8xf32>, vector<16x8xf32>, vector<16x8xf32>, vector<16x8xf32> -> vector<16x32xf32>
    %112 = vector.extract_strided_slice %37 {offsets = [16, 0], sizes = [16, 96], strides = [1, 1]} : vector<32x96xbf16> to vector<16x96xbf16>
    %113 = vector.extract_strided_slice %112 {offsets = [0, 0], sizes = [16, 8], strides = [1, 1]} : vector<16x96xbf16> to vector<16x8xbf16>
    %114 = vector.extract_strided_slice %112 {offsets = [0, 32], sizes = [16, 8], strides = [1, 1]} : vector<16x96xbf16> to vector<16x8xbf16>
    %115 = vector.extract_strided_slice %112 {offsets = [0, 64], sizes = [16, 8], strides = [1, 1]} : vector<16x96xbf16> to vector<16x8xbf16>
    %cst_40 = arith.constant dense<0.000000e+00> : vector<16x16xf32>
    %116 = tpu.matmul %113, %114, %cst_40 {dimension_numbers = #tpu.dot_dimension_numbers<[1], [1], [0], [0], [0, 0, 1, 0], [], []>} : vector<16x8xbf16>, vector<16x8xbf16>, vector<16x16xf32> -> vector<16x16xf32>
    %cst_41 = arith.constant 0.353553385 : f32
    %117 = vector.broadcast %cst_41 : f32 to vector<16x16xf32>
    %118 = arith.mulf %116, %117 : vector<16x16xf32>
    %cst_42 = arith.constant dense<0xFF800000> : vector<16xf32>
    %119 = vector.multi_reduction <maximumf>, %118, %cst_42 [1] : vector<16x16xf32> to vector<16xf32>
    %120 = vector.shape_cast %119 : vector<16xf32> to vector<16x1xf32>
    %121 = vector.broadcast %120 : vector<16x1xf32> to vector<16x16xf32>
    %122 = arith.subf %118, %121 : vector<16x16xf32>
    %123 = math.exp %122 : vector<16x16xf32>
    %cst_43 = arith.constant dense<0.000000e+00> : vector<16xf32>
    %124 = vector.multi_reduction <add>, %123, %cst_43 [1] : vector<16x16xf32> to vector<16xf32>
    %125 = vector.shape_cast %124 : vector<16xf32> to vector<16x1xf32>
    %126 = tpu.reciprocal %125 {approx = true} : vector<16x1xf32> -> vector<16x1xf32>
    %127 = vector.broadcast %126 : vector<16x1xf32> to vector<16x16xf32>
    %128 = arith.mulf %123, %127 : vector<16x16xf32>
    %129 = arith.truncf %128 : vector<16x16xf32> to vector<16x16xbf16>
    %cst_44 = arith.constant dense<0.000000e+00> : vector<16x8xf32>
    %130 = tpu.matmul %129, %115, %cst_44 {dimension_numbers = #tpu.dot_dimension_numbers<[1], [0], [0], [1], [0, 0, 1, 1], [], []>} : vector<16x16xbf16>, vector<16x8xbf16>, vector<16x8xf32> -> vector<16x8xf32>
    %131 = vector.extract_strided_slice %112 {offsets = [0, 8], sizes = [16, 8], strides = [1, 1]} : vector<16x96xbf16> to vector<16x8xbf16>
    %132 = vector.extract_strided_slice %112 {offsets = [0, 40], sizes = [16, 8], strides = [1, 1]} : vector<16x96xbf16> to vector<16x8xbf16>
    %133 = vector.extract_strided_slice %112 {offsets = [0, 72], sizes = [16, 8], strides = [1, 1]} : vector<16x96xbf16> to vector<16x8xbf16>
    %cst_45 = arith.constant dense<0.000000e+00> : vector<16x16xf32>
    %134 = tpu.matmul %131, %132, %cst_45 {dimension_numbers = #tpu.dot_dimension_numbers<[1], [1], [0], [0], [0, 0, 1, 0], [], []>} : vector<16x8xbf16>, vector<16x8xbf16>, vector<16x16xf32> -> vector<16x16xf32>
    %cst_46 = arith.constant 0.353553385 : f32
    %135 = vector.broadcast %cst_46 : f32 to vector<16x16xf32>
    %136 = arith.mulf %134, %135 : vector<16x16xf32>
    %cst_47 = arith.constant dense<0xFF800000> : vector<16xf32>
    %137 = vector.multi_reduction <maximumf>, %136, %cst_47 [1] : vector<16x16xf32> to vector<16xf32>
    %138 = vector.shape_cast %137 : vector<16xf32> to vector<16x1xf32>
    %139 = vector.broadcast %138 : vector<16x1xf32> to vector<16x16xf32>
    %140 = arith.subf %136, %139 : vector<16x16xf32>
    %141 = math.exp %140 : vector<16x16xf32>
    %cst_48 = arith.constant dense<0.000000e+00> : vector<16xf32>
    %142 = vector.multi_reduction <add>, %141, %cst_48 [1] : vector<16x16xf32> to vector<16xf32>
    %143 = vector.shape_cast %142 : vector<16xf32> to vector<16x1xf32>
    %144 = tpu.reciprocal %143 {approx = true} : vector<16x1xf32> -> vector<16x1xf32>
    %145 = vector.broadcast %144 : vector<16x1xf32> to vector<16x16xf32>
    %146 = arith.mulf %141, %145 : vector<16x16xf32>
    %147 = arith.truncf %146 : vector<16x16xf32> to vector<16x16xbf16>
    %cst_49 = arith.constant dense<0.000000e+00> : vector<16x8xf32>
    %148 = tpu.matmul %147, %133, %cst_49 {dimension_numbers = #tpu.dot_dimension_numbers<[1], [0], [0], [1], [0, 0, 1, 1], [], []>} : vector<16x16xbf16>, vector<16x8xbf16>, vector<16x8xf32> -> vector<16x8xf32>
    %149 = vector.extract_strided_slice %112 {offsets = [0, 16], sizes = [16, 8], strides = [1, 1]} : vector<16x96xbf16> to vector<16x8xbf16>
    %150 = vector.extract_strided_slice %112 {offsets = [0, 48], sizes = [16, 8], strides = [1, 1]} : vector<16x96xbf16> to vector<16x8xbf16>
    %151 = vector.extract_strided_slice %112 {offsets = [0, 80], sizes = [16, 8], strides = [1, 1]} : vector<16x96xbf16> to vector<16x8xbf16>
    %cst_50 = arith.constant dense<0.000000e+00> : vector<16x16xf32>
    %152 = tpu.matmul %149, %150, %cst_50 {dimension_numbers = #tpu.dot_dimension_numbers<[1], [1], [0], [0], [0, 0, 1, 0], [], []>} : vector<16x8xbf16>, vector<16x8xbf16>, vector<16x16xf32> -> vector<16x16xf32>
    %cst_51 = arith.constant 0.353553385 : f32
    %153 = vector.broadcast %cst_51 : f32 to vector<16x16xf32>
    %154 = arith.mulf %152, %153 : vector<16x16xf32>
    %cst_52 = arith.constant dense<0xFF800000> : vector<16xf32>
    %155 = vector.multi_reduction <maximumf>, %154, %cst_52 [1] : vector<16x16xf32> to vector<16xf32>
    %156 = vector.shape_cast %155 : vector<16xf32> to vector<16x1xf32>
    %157 = vector.broadcast %156 : vector<16x1xf32> to vector<16x16xf32>
    %158 = arith.subf %154, %157 : vector<16x16xf32>
    %159 = math.exp %158 : vector<16x16xf32>
    %cst_53 = arith.constant dense<0.000000e+00> : vector<16xf32>
    %160 = vector.multi_reduction <add>, %159, %cst_53 [1] : vector<16x16xf32> to vector<16xf32>
    %161 = vector.shape_cast %160 : vector<16xf32> to vector<16x1xf32>
    %162 = tpu.reciprocal %161 {approx = true} : vector<16x1xf32> -> vector<16x1xf32>
    %163 = vector.broadcast %162 : vector<16x1xf32> to vector<16x16xf32>
    %164 = arith.mulf %159, %163 : vector<16x16xf32>
    %165 = arith.truncf %164 : vector<16x16xf32> to vector<16x16xbf16>
    %cst_54 = arith.constant dense<0.000000e+00> : vector<16x8xf32>
    %166 = tpu.matmul %165, %151, %cst_54 {dimension_numbers = #tpu.dot_dimension_numbers<[1], [0], [0], [1], [0, 0, 1, 1], [], []>} : vector<16x16xbf16>, vector<16x8xbf16>, vector<16x8xf32> -> vector<16x8xf32>
    %167 = vector.extract_strided_slice %112 {offsets = [0, 24], sizes = [16, 8], strides = [1, 1]} : vector<16x96xbf16> to vector<16x8xbf16>
    %168 = vector.extract_strided_slice %112 {offsets = [0, 56], sizes = [16, 8], strides = [1, 1]} : vector<16x96xbf16> to vector<16x8xbf16>
    %169 = vector.extract_strided_slice %112 {offsets = [0, 88], sizes = [16, 8], strides = [1, 1]} : vector<16x96xbf16> to vector<16x8xbf16>
    %cst_55 = arith.constant dense<0.000000e+00> : vector<16x16xf32>
    %170 = tpu.matmul %167, %168, %cst_55 {dimension_numbers = #tpu.dot_dimension_numbers<[1], [1], [0], [0], [0, 0, 1, 0], [], []>} : vector<16x8xbf16>, vector<16x8xbf16>, vector<16x16xf32> -> vector<16x16xf32>
    %cst_56 = arith.constant 0.353553385 : f32
    %171 = vector.broadcast %cst_56 : f32 to vector<16x16xf32>
    %172 = arith.mulf %170, %171 : vector<16x16xf32>
    %cst_57 = arith.constant dense<0xFF800000> : vector<16xf32>
    %173 = vector.multi_reduction <maximumf>, %172, %cst_57 [1] : vector<16x16xf32> to vector<16xf32>
    %174 = vector.shape_cast %173 : vector<16xf32> to vector<16x1xf32>
    %175 = vector.broadcast %174 : vector<16x1xf32> to vector<16x16xf32>
    %176 = arith.subf %172, %175 : vector<16x16xf32>
    %177 = math.exp %176 : vector<16x16xf32>
    %cst_58 = arith.constant dense<0.000000e+00> : vector<16xf32>
    %178 = vector.multi_reduction <add>, %177, %cst_58 [1] : vector<16x16xf32> to vector<16xf32>
    %179 = vector.shape_cast %178 : vector<16xf32> to vector<16x1xf32>
    %180 = tpu.reciprocal %179 {approx = true} : vector<16x1xf32> -> vector<16x1xf32>
    %181 = vector.broadcast %180 : vector<16x1xf32> to vector<16x16xf32>
    %182 = arith.mulf %177, %181 : vector<16x16xf32>
    %183 = arith.truncf %182 : vector<16x16xf32> to vector<16x16xbf16>
    %cst_59 = arith.constant dense<0.000000e+00> : vector<16x8xf32>
    %184 = tpu.matmul %183, %169, %cst_59 {dimension_numbers = #tpu.dot_dimension_numbers<[1], [0], [0], [1], [0, 0, 1, 1], [], []>} : vector<16x16xbf16>, vector<16x8xbf16>, vector<16x8xf32> -> vector<16x8xf32>
    %185 = tpu.concatenate %130, %148, %166, %184 in 1 : vector<16x8xf32>, vector<16x8xf32>, vector<16x8xf32>, vector<16x8xf32> -> vector<16x32xf32>
    %186 = tpu.concatenate %111, %185 in 0 : vector<16x32xf32>, vector<16x32xf32> -> vector<32x32xf32>
    %187 = arith.truncf %186 : vector<32x32xf32> to vector<32x32xbf16>
    %c0_60 = arith.constant 0 : index
    %c0_61 = arith.constant 0 : index
    %c0_62 = arith.constant 0 : index
    %188 = vector.load %arg10[%c0_60, %c0_61, %c0_62] : memref<1x32x32xbf16, #tpu.memory_space<vmem>>, vector<1x32x32xbf16>
    %189 = vector.shape_cast %188 : vector<1x32x32xbf16> to vector<32x32xbf16>
    %cst_63 = arith.constant dense<0.000000e+00> : vector<32x32xf32>
    %190 = tpu.matmul %187, %189, %cst_63 {dimension_numbers = #tpu.dot_dimension_numbers<[1], [0], [0], [1], [0, 0, 1, 1], [], []>} : vector<32x32xbf16>, vector<32x32xbf16>, vector<32x32xf32> -> vector<32x32xf32>
    %191 = arith.addf %4, %190 : vector<32x32xf32>
    %c0_64 = arith.constant 0 : index
    %c0_65 = arith.constant 0 : index
    %c0_66 = arith.constant 0 : index
    %192 = vector.load %arg11[%c0_64, %c0_65, %c0_66] : memref<1x1x32xf32, #tpu.memory_space<vmem>>, vector<1x1x32xf32>
    %193 = vector.shape_cast %192 : vector<1x1x32xf32> to vector<1x32xf32>
    %194 = vector.broadcast %193 : vector<1x32xf32> to vector<32x32xf32>
    %195 = arith.addf %191, %194 : vector<32x32xf32>
    %c0_67 = arith.constant 0 : index
    %c0_68 = arith.constant 0 : index
    %c0_69 = arith.constant 0 : index
    %196 = vector.load %arg12[%c0_67, %c0_68, %c0_69] : memref<1x1x32xf32, #tpu.memory_space<vmem>>, vector<1x1x32xf32>
    %197 = vector.shape_cast %196 : vector<1x1x32xf32> to vector<1x32xf32>
    %c0_70 = arith.constant 0 : index
    %c0_71 = arith.constant 0 : index
    %c0_72 = arith.constant 0 : index
    %198 = vector.load %arg13[%c0_70, %c0_71, %c0_72] : memref<1x1x32xf32, #tpu.memory_space<vmem>>, vector<1x1x32xf32>
    %199 = vector.shape_cast %198 : vector<1x1x32xf32> to vector<1x32xf32>
    %cst_73 = arith.constant dense<0.000000e+00> : vector<32xf32>
    %200 = vector.multi_reduction <add>, %195, %cst_73 [1] : vector<32x32xf32> to vector<32xf32>
    %201 = vector.shape_cast %200 : vector<32xf32> to vector<32x1xf32>
    %cst_74 = arith.constant 3.200000e+01 : f32
    %202 = vector.broadcast %cst_74 : f32 to vector<32x1xf32>
    %203 = arith.divf %201, %202 : vector<32x1xf32>
    %204 = vector.broadcast %203 : vector<32x1xf32> to vector<32x32xf32>
    %205 = arith.subf %195, %204 : vector<32x32xf32>
    %206 = arith.mulf %205, %205 : vector<32x32xf32>
    %cst_75 = arith.constant dense<0.000000e+00> : vector<32xf32>
    %207 = vector.multi_reduction <add>, %206, %cst_75 [1] : vector<32x32xf32> to vector<32xf32>
    %208 = vector.shape_cast %207 : vector<32xf32> to vector<32x1xf32>
    %cst_76 = arith.constant 3.200000e+01 : f32
    %209 = vector.broadcast %cst_76 : f32 to vector<32x1xf32>
    %210 = arith.divf %208, %209 : vector<32x1xf32>
    %cst_77 = arith.constant 9.99999997E-7 : f32
    %211 = vector.broadcast %cst_77 : f32 to vector<32x1xf32>
    %212 = arith.addf %210, %211 : vector<32x1xf32>
    %213 = math.rsqrt %212 : vector<32x1xf32>
    %214 = vector.broadcast %213 : vector<32x1xf32> to vector<32x32xf32>
    %215 = arith.mulf %205, %214 : vector<32x32xf32>
    %216 = vector.broadcast %197 : vector<1x32xf32> to vector<32x32xf32>
    %217 = arith.mulf %215, %216 : vector<32x32xf32>
    %218 = vector.broadcast %199 : vector<1x32xf32> to vector<32x32xf32>
    %219 = arith.addf %217, %218 : vector<32x32xf32>
    %220 = arith.truncf %219 : vector<32x32xf32> to vector<32x32xbf16>
    %c0_78 = arith.constant 0 : index
    %c0_79 = arith.constant 0 : index
    %c0_80 = arith.constant 0 : index
    %221 = vector.load %arg14[%c0_78, %c0_79, %c0_80] : memref<1x32x128xbf16, #tpu.memory_space<vmem>>, vector<1x32x128xbf16>
    %222 = vector.shape_cast %221 : vector<1x32x128xbf16> to vector<32x128xbf16>
    %cst_81 = arith.constant dense<0.000000e+00> : vector<32x128xf32>
    %223 = tpu.matmul %220, %222, %cst_81 {dimension_numbers = #tpu.dot_dimension_numbers<[1], [0], [0], [1], [0, 0, 1, 1], [], []>} : vector<32x32xbf16>, vector<32x128xbf16>, vector<32x128xf32> -> vector<32x128xf32>
    %c0_82 = arith.constant 0 : index
    %c0_83 = arith.constant 0 : index
    %c0_84 = arith.constant 0 : index
    %224 = vector.load %arg15[%c0_82, %c0_83, %c0_84] : memref<1x1x128xf32, #tpu.memory_space<vmem>>, vector<1x1x128xf32>
    %225 = vector.shape_cast %224 : vector<1x1x128xf32> to vector<1x128xf32>
    %226 = vector.broadcast %225 : vector<1x128xf32> to vector<32x128xf32>
    %227 = arith.addf %223, %226 : vector<32x128xf32>
    %228 = arith.mulf %227, %227 : vector<32x128xf32>
    %229 = arith.mulf %227, %228 : vector<32x128xf32>
    %cst_85 = arith.constant 4.471500e-02 : f32
    %230 = vector.broadcast %cst_85 : f32 to vector<32x128xf32>
    %231 = arith.mulf %230, %229 : vector<32x128xf32>
    %232 = arith.addf %227, %231 : vector<32x128xf32>
    %cst_86 = arith.constant 0.797884583 : f32
    %233 = vector.broadcast %cst_86 : f32 to vector<32x128xf32>
    %234 = arith.mulf %233, %232 : vector<32x128xf32>
    %235 = math.tanh %234 : vector<32x128xf32>
    %cst_87 = arith.constant 1.000000e+00 : f32
    %236 = vector.broadcast %cst_87 : f32 to vector<32x128xf32>
    %237 = arith.addf %236, %235 : vector<32x128xf32>
    %cst_88 = arith.constant 5.000000e-01 : f32
    %238 = vector.broadcast %cst_88 : f32 to vector<32x128xf32>
    %239 = arith.mulf %238, %237 : vector<32x128xf32>
    %240 = arith.mulf %227, %239 : vector<32x128xf32>
    %241 = arith.truncf %240 : vector<32x128xf32> to vector<32x128xbf16>
    %c0_89 = arith.constant 0 : index
    %c0_90 = arith.constant 0 : index
    %c0_91 = arith.constant 0 : index
    %242 = vector.load %arg16[%c0_89, %c0_90, %c0_91] : memref<1x128x32xbf16, #tpu.memory_space<vmem>>, vector<1x128x32xbf16>
    %243 = vector.shape_cast %242 : vector<1x128x32xbf16> to vector<128x32xbf16>
    %cst_92 = arith.constant dense<0.000000e+00> : vector<32x32xf32>
    %244 = tpu.matmul %241, %243, %cst_92 {dimension_numbers = #tpu.dot_dimension_numbers<[1], [0], [0], [1], [0, 0, 1, 1], [], []>} : vector<32x128xbf16>, vector<128x32xbf16>, vector<32x32xf32> -> vector<32x32xf32>
    %c0_93 = arith.constant 0 : index
    %c0_94 = arith.constant 0 : index
    %c0_95 = arith.constant 0 : index
    %245 = vector.load %arg17[%c0_93, %c0_94, %c0_95] : memref<1x1x32xf32, #tpu.memory_space<vmem>>, vector<1x1x32xf32>
    %246 = vector.shape_cast %245 : vector<1x1x32xf32> to vector<1x32xf32>
    %247 = vector.broadcast %246 : vector<1x32xf32> to vector<32x32xf32>
    %248 = arith.addf %244, %247 : vector<32x32xf32>
    %249 = arith.addf %195, %248 : vector<32x32xf32>
    %c1_i32 = arith.constant 1 : i32
    %250 = arith.cmpi slt, %arg0, %c1_i32 : i32
    %251 = arith.extui %250 : i1 to i32
    %c0_i32_96 = arith.constant 0 : i32
    %252 = arith.cmpi ne, %251, %c0_i32_96 : i32
    scf.if %252 {
      %256 = vector.shape_cast %249 : vector<32x32xf32> to vector<2x16x32xf32>
      %c0_99 = arith.constant 0 : index
      %c0_100 = arith.constant 0 : index
      %c0_101 = arith.constant 0 : index
      %257 = vector.load %arg20[%c0_99, %c0_100, %c0_101] : memref<2x16x32xf32, #tpu.memory_space<vmem>>, vector<2x16x32xf32>
      tpu.vector_store %arg20[%c0_99, %c0_100, %c0_101], %256 {strides = array<i32>} : memref<2x16x32xf32, #tpu.memory_space<vmem>>, vector<2x16x32xf32>,
    } else {
    }
    %c1_i32_97 = arith.constant 1 : i32
    %253 = arith.cmpi eq, %arg0, %c1_i32_97 : i32
    %254 = arith.extui %253 : i1 to i32
    %c0_i32_98 = arith.constant 0 : i32
    %255 = arith.cmpi ne, %254, %c0_i32_98 : i32
    scf.if %255 {
      %c0_99 = arith.constant 0 : index
      %c0_100 = arith.constant 0 : index
      %256 = vector.load %arg18[%c0_99, %c0_100] : memref<1x32xf32, #tpu.memory_space<vmem>>, vector<1x32xf32>
      %c0_101 = arith.constant 0 : index
      %c0_102 = arith.constant 0 : index
      %257 = vector.load %arg19[%c0_101, %c0_102] : memref<1x32xf32, #tpu.memory_space<vmem>>, vector<1x32xf32>
      %cst_103 = arith.constant dense<0.000000e+00> : vector<32xf32>
      %258 = vector.multi_reduction <add>, %249, %cst_103 [1] : vector<32x32xf32> to vector<32xf32>
      %259 = vector.shape_cast %258 : vector<32xf32> to vector<32x1xf32>
      %cst_104 = arith.constant 3.200000e+01 : f32
      %260 = vector.broadcast %cst_104 : f32 to vector<32x1xf32>
      %261 = arith.divf %259, %260 : vector<32x1xf32>
      %262 = vector.broadcast %261 : vector<32x1xf32> to vector<32x32xf32>
      %263 = arith.subf %249, %262 : vector<32x32xf32>
      %264 = arith.mulf %263, %263 : vector<32x32xf32>
      %cst_105 = arith.constant dense<0.000000e+00> : vector<32xf32>
      %265 = vector.multi_reduction <add>, %264, %cst_105 [1] : vector<32x32xf32> to vector<32xf32>
      %266 = vector.shape_cast %265 : vector<32xf32> to vector<32x1xf32>
      %cst_106 = arith.constant 3.200000e+01 : f32
      %267 = vector.broadcast %cst_106 : f32 to vector<32x1xf32>
      %268 = arith.divf %266, %267 : vector<32x1xf32>
      %cst_107 = arith.constant 9.99999997E-7 : f32
      %269 = vector.broadcast %cst_107 : f32 to vector<32x1xf32>
      %270 = arith.addf %268, %269 : vector<32x1xf32>
      %271 = math.rsqrt %270 : vector<32x1xf32>
      %272 = vector.broadcast %271 : vector<32x1xf32> to vector<32x32xf32>
      %273 = arith.mulf %263, %272 : vector<32x32xf32>
      %274 = vector.broadcast %256 : vector<1x32xf32> to vector<32x32xf32>
      %275 = arith.mulf %273, %274 : vector<32x32xf32>
      %276 = vector.broadcast %257 : vector<1x32xf32> to vector<32x32xf32>
      %277 = arith.addf %275, %276 : vector<32x32xf32>
      %278 = vector.shape_cast %277 : vector<32x32xf32> to vector<2x16x32xf32>
      %c0_108 = arith.constant 0 : index
      %c0_109 = arith.constant 0 : index
      %c0_110 = arith.constant 0 : index
      %279 = vector.load %arg20[%c0_108, %c0_109, %c0_110] : memref<2x16x32xf32, #tpu.memory_space<vmem>>, vector<2x16x32xf32>
      tpu.vector_store %arg20[%c0_108, %c0_109, %c0_110], %278 {strides = array<i32>} : memref<2x16x32xf32, #tpu.memory_space<vmem>>, vector<2x16x32xf32>,
    } else {
    }
    return
  }
  func.func @transform_0(%arg0: i32) -> (i32, i32) {
    %c0_i32 = arith.constant 0 : i32
    %c0_i32_0 = arith.constant 0 : i32
    %c0_i32_1 = arith.constant 0 : i32
    return %c0_i32, %c0_i32_0 : i32, i32
  }
  func.func @transform_1(%arg0: i32) -> (i32, i32) {
    %c0_i32 = arith.constant 0 : i32
    %c0_i32_0 = arith.constant 0 : i32
    %c0_i32_1 = arith.constant 0 : i32
    return %c0_i32, %c0_i32_0 : i32, i32
  }
  func.func @transform_2(%arg0: i32) -> (i32, i32) {
    %c0_i32 = arith.constant 0 : i32
    %c0_i32_0 = arith.constant 0 : i32
    %c0_i32_1 = arith.constant 0 : i32
    return %c0_i32, %c0_i32_0 : i32, i32
  }
  func.func @transform_3(%arg0: i32) -> (i32, i32) {
    %c0_i32 = arith.constant 0 : i32
    %c0_i32_0 = arith.constant 0 : i32
    %c0_i32_1 = arith.constant 0 : i32
    return %c0_i32, %c0_i32_0 : i32, i32
  }
  func.func @transform_4(%arg0: i32) -> (i32, i32) {
    %c0_i32 = arith.constant 0 : i32
    %c0_i32_0 = arith.constant 0 : i32
    %c0_i32_1 = arith.constant 0 : i32
    return %c0_i32, %c0_i32_0 : i32, i32
  }
  func.func @transform_5(%arg0: i32) -> (i32, i32, i32) {
    %c0_i32 = arith.constant 0 : i32
    %c0_i32_0 = arith.constant 0 : i32
    %c0_i32_1 = arith.constant 0 : i32
    return %arg0, %c0_i32, %c0_i32_0 : i32, i32, i32
  }
  func.func @transform_6(%arg0: i32) -> (i32, i32, i32) {
    %c0_i32 = arith.constant 0 : i32
    %c0_i32_0 = arith.constant 0 : i32
    %c0_i32_1 = arith.constant 0 : i32
    return %arg0, %c0_i32, %c0_i32_0 : i32, i32, i32
  }
  func.func @transform_7(%arg0: i32) -> (i32, i32, i32) {
    %c0_i32 = arith.constant 0 : i32
    %c0_i32_0 = arith.constant 0 : i32
    %c0_i32_1 = arith.constant 0 : i32
    return %arg0, %c0_i32, %c0_i32_0 : i32, i32, i32
  }
  func.func @transform_8(%arg0: i32) -> (i32, i32, i32) {
    %c0_i32 = arith.constant 0 : i32
    %c0_i32_0 = arith.constant 0 : i32
    %c0_i32_1 = arith.constant 0 : i32
    return %arg0, %c0_i32, %c0_i32_0 : i32, i32, i32
  }
  func.func @transform_9(%arg0: i32) -> (i32, i32, i32) {
    %c0_i32 = arith.constant 0 : i32
    %c0_i32_0 = arith.constant 0 : i32
    %c0_i32_1 = arith.constant 0 : i32
    return %arg0, %c0_i32, %c0_i32_0 : i32, i32, i32
  }
  func.func @transform_10(%arg0: i32) -> (i32, i32, i32) {
    %c0_i32 = arith.constant 0 : i32
    %c0_i32_0 = arith.constant 0 : i32
    %c0_i32_1 = arith.constant 0 : i32
    return %arg0, %c0_i32, %c0_i32_0 : i32, i32, i32
  }
  func.func @transform_11(%arg0: i32) -> (i32, i32, i32) {
    %c0_i32 = arith.constant 0 : i32
    %c0_i32_0 = arith.constant 0 : i32
    %c0_i32_1 = arith.constant 0 : i32
    return %arg0, %c0_i32, %c0_i32_0 : i32, i32, i32
  }
  func.func @transform_12(%arg0: i32) -> (i32, i32, i32) {
    %c0_i32 = arith.constant 0 : i32
    %c0_i32_0 = arith.constant 0 : i32
    %c0_i32_1 = arith.constant 0 : i32
    return %arg0, %c0_i32, %c0_i32_0 : i32, i32, i32
  }
  func.func @transform_13(%arg0: i32) -> (i32, i32, i32) {
    %c0_i32 = arith.constant 0 : i32
    %c0_i32_0 = arith.constant 0 : i32
    %c0_i32_1 = arith.constant 0 : i32
    return %arg0, %c0_i32, %c0_i32_0 : i32, i32, i32
  }
  func.func @transform_14(%arg0: i32) -> (i32, i32, i32) {
    %c0_i32 = arith.constant 0 : i32
    %c0_i32_0 = arith.constant 0 : i32
    %c0_i32_1 = arith.constant 0 : i32
    return %arg0, %c0_i32, %c0_i32_0 : i32, i32, i32
  }
  func.func @transform_15(%arg0: i32) -> (i32, i32, i32) {
    %c0_i32 = arith.constant 0 : i32
    %c0_i32_0 = arith.constant 0 : i32
    %c0_i32_1 = arith.constant 0 : i32
    return %arg0, %c0_i32, %c0_i32_0 : i32, i32, i32
  }
  func.func @transform_16(%arg0: i32) -> (i32, i32, i32) {
    %c0_i32 = arith.constant 0 : i32
    %c0_i32_0 = arith.constant 0 : i32
    %c0_i32_1 = arith.constant 0 : i32
    return %arg0, %c0_i32, %c0_i32_0 : i32, i32, i32
  }
  func.func @transform_17(%arg0: i32) -> (i32, i32) {
    %c0_i32 = arith.constant 0 : i32
    %c0_i32_0 = arith.constant 0 : i32
    %c0_i32_1 = arith.constant 0 : i32
    return %c0_i32, %c0_i32_0 : i32, i32
  }
  func.func @transform_18(%arg0: i32) -> (i32, i32) {
    %c0_i32 = arith.constant 0 : i32
    %c0_i32_0 = arith.constant 0 : i32
    %c0_i32_1 = arith.constant 0 : i32
    return %c0_i32, %c0_i32_0 : i32, i32
  }
  func.func @transform_19(%arg0: i32) -> (i32, i32, i32) {
    %c0_i32 = arith.constant 0 : i32
    %c0_i32_0 = arith.constant 0 : i32
    %c0_i32_1 = arith.constant 0 : i32
    %c0_i32_2 = arith.constant 0 : i32
    return %c0_i32, %c0_i32_0, %c0_i32_1 : i32, i32, i32
  }
}

</mosaic_0001>

<llo_original>
// kernel: ast_encoder_forward.1
$region0: #{ast_encoder_forward.1}
  #allocation0 [shape = 'u32[]', space=smem, size = 0x4, offset = 0x4, fixed_abs, tag = 'smem constant byte address 0x4 - core index']
  #allocation1 [shape = 'u32[144,128]{1,0:T(1,128)}', space=vmem, size = 0x12000, scoped, tag = 'internal scratch']
  %s0 = inlined_call_operand.vmem [shape: f32[32,64], index: 0, kind: input, shape index: {}]
  %s1 = inlined_call_operand.vmem [shape: bf16[64,32], index: 1, kind: input, shape index: {}]
  %s2 = inlined_call_operand.vmem [shape: f32[1,32], index: 2, kind: input, shape index: {}]
  %s3 = inlined_call_operand.vmem [shape: f32[1,32], index: 3, kind: input, shape index: {}]
  %s4 = inlined_call_operand.vmem [shape: f32[16,32], index: 4, kind: input, shape index: {}]
  %s5 = inlined_call_operand.vmem [shape: f32[2,1,32], index: 5, kind: input, shape index: {}]
  %s6 = inlined_call_operand.vmem [shape: f32[2,1,32], index: 6, kind: input, shape index: {}]
  %s7 = inlined_call_operand.vmem [shape: bf16[2,32,96], index: 7, kind: input, shape index: {}]
  %s8 = inlined_call_operand.vmem [shape: f32[2,1,96], index: 8, kind: input, shape index: {}]
  %s9 = inlined_call_operand.vmem [shape: bf16[2,32,32], index: 9, kind: input, shape index: {}]
  %s10 = inlined_call_operand.vmem [shape: f32[2,1,32], index: 10, kind: input, shape index: {}]
  %s11 = inlined_call_operand.vmem [shape: f32[2,1,32], index: 11, kind: input, shape index: {}]
  %s12 = inlined_call_operand.vmem [shape: f32[2,1,32], index: 12, kind: input, shape index: {}]
  %s13 = inlined_call_operand.vmem [shape: bf16[2,32,128], index: 13, kind: input, shape index: {}]
  %s14 = inlined_call_operand.vmem [shape: f32[2,1,128], index: 14, kind: input, shape index: {}]
  %s15 = inlined_call_operand.vmem [shape: bf16[2,128,32], index: 15, kind: input, shape index: {}]
  %s16 = inlined_call_operand.vmem [shape: f32[2,1,32], index: 16, kind: input, shape index: {}]
  %s17 = inlined_call_operand.vmem [shape: f32[1,32], index: 17, kind: input, shape index: {}]
  %s18 = inlined_call_operand.vmem [shape: f32[1,32], index: 18, kind: input, shape index: {}]
  %s19 = inlined_call_operand.hbm [shape: f32[2,16,32], index: 19, kind: output, shape index: {}]
  %s20 = sld [smem:[#allocation0]]
  $region121: #{ast_encoder_forward.1} parent=0
    _
  %s22 = ssub.s32 1, %s20
  %s23 = scalar_select 0, %s22, %s20
  $region1: #{ast_encoder_forward.1} parent=0
    #allocation2 [shape = 'u8[16384]{0}', space=vmem, size = 0x4000, scoped, tag = 'output window, operand 0, single buffered']
    #allocation3 [shape = 's32[2]{0}', space=sflag, size = 0x8, scoped, tag = 'scoped memory for ast_encoder_forward.1']
    %24 = vsyncpa [#allocation3], 0
    loop: start=0, step=1, limit=4
    $region2: #{ast_encoder_forward.1} parent=1 // loop_pre_header
      _
    $region3: #{ast_encoder_forward.1} parent=1 // loop_header
      %s26 = sphi 0, %s30
      %p27 = scmp.ge.s32.totalorder %s26, 4
      %s34 = sphi 0, %s34
      %s36 = sphi 0, %s34
      %s37 = sphi 0, %s36
      %s51 = sphi 0, %s37
      %s55 = sphi 0, %s55
      %s57 = sphi 0, %s55
      %s58 = sphi 0, %s57
      %s72 = sphi 0, %s58
      %s76 = sphi 0, %s76
      %s78 = sphi 0, %s76
      %s79 = sphi 0, %s78
      %s93 = sphi 0, %s79
      %s97 = sphi 0, %s97
      %s99 = sphi 0, %s97
      %s100 = sphi 0, %s99
      %s114 = sphi 0, %s100
      %s118 = sphi 0, %s118
      %s120 = sphi 0, %s118
      %s121 = sphi 0, %s120
      %s135 = sphi 0, %s121
      %s141 = sphi 0, %s143
      %s144 = sphi 0, %s141
      %s145 = sphi 0, %s144
      %s161 = sphi 0, %s145
      %s167 = sphi 0, %s169
      %s170 = sphi 0, %s167
      %s171 = sphi 0, %s170
      %s187 = sphi 0, %s171
      %s193 = sphi 0, %s195
      %s196 = sphi 0, %s193
      %s197 = sphi 0, %s196
      %s213 = sphi 0, %s197
      %s219 = sphi 0, %s221
      %s222 = sphi 0, %s219
      %s223 = sphi 0, %s222
      %s239 = sphi 0, %s223
      %s245 = sphi 0, %s247
      %s248 = sphi 0, %s245
      %s249 = sphi 0, %s248
      %s265 = sphi 0, %s249
      %s271 = sphi 0, %s273
      %s274 = sphi 0, %s271
      %s275 = sphi 0, %s274
      %s291 = sphi 0, %s275
      %s297 = sphi 0, %s299
      %s300 = sphi 0, %s297
      %s301 = sphi 0, %s300
      %s317 = sphi 0, %s301
      %s323 = sphi 0, %s325
      %s326 = sphi 0, %s323
      %s327 = sphi 0, %s326
      %s343 = sphi 0, %s327
      %s349 = sphi 0, %s351
      %s352 = sphi 0, %s349
      %s353 = sphi 0, %s352
      %s369 = sphi 0, %s353
      %s375 = sphi 0, %s377
      %s378 = sphi 0, %s375
      %s379 = sphi 0, %s378
      %s395 = sphi 0, %s379
      %s401 = sphi 0, %s403
      %s404 = sphi 0, %s401
      %s405 = sphi 0, %s404
      %s421 = sphi 0, %s405
      %s427 = sphi 0, %s429
      %s430 = sphi 0, %s427
      %s431 = sphi 0, %s430
      %s447 = sphi 0, %s431
      %s451 = sphi 0, %s451
      %s453 = sphi 0, %s451
      %s454 = sphi 0, %s453
      %s468 = sphi 0, %s454
      %s472 = sphi 0, %s472
      %s474 = sphi 0, %s472
      %s475 = sphi 0, %s474
      %s489 = sphi 0, %s475
      %s493 = sphi 0, %s493
      %s495 = sphi 0, %s493
      %s496 = sphi 0, %s495
      %s510 = sphi 0, %s496
    $region4: #{ast_encoder_forward.1} parent=1 // loop_header_branch
      %29 = sbr.rel (%p27) target = $region8
    $region5: #{ast_encoder_forward.1} parent=1 // loop_body
      %s31 = ssub.s32 %s26, 1
      %s32 = ssub.s32 %s26, 2
      %s33 = sadd.s32 %s26, 1
      %s35 = sadd.s32 %s34, 1
      %p38 = scmp.eq.s32.totalorder %s26, 1
      %p39 = scmp.ne.s32.totalorder %s34, %s36
      %p40 = scmp.eq.s32.totalorder %s26, 0
      %p41 = por %p39, %p40
      %p42 = scmp.ne.s32.totalorder %s34, %s36
      %p43 = scmp.eq.s32.totalorder %s31, 1
      %p44 = por %p42, %p43
      %p45 = scmp.ne.s32.totalorder %s36, %s37
      %p46 = scmp.eq.s32.totalorder %s31, 0
      %p47 = por %p45, %p46
      %p48 = scmp.ne.s32.totalorder %s36, %s37
      %p49 = scmp.eq.s32.totalorder %s32, 1
      %p50 = por %p48, %p49
      %p52 = scmp.ne.s32.totalorder %s37, %s51
      %p53 = scmp.eq.s32.totalorder %s32, 0
      %p54 = por %p52, %p53
      %s56 = sadd.s32 %s55, 1
      %p59 = scmp.eq.s32.totalorder %s26, 1
      %p60 = scmp.ne.s32.totalorder %s55, %s57
      %p61 = scmp.eq.s32.totalorder %s26, 0
      %p62 = por %p60, %p61
      %p63 = scmp.ne.s32.totalorder %s55, %s57
      %p64 = scmp.eq.s32.totalorder %s31, 1
      %p65 = por %p63, %p64
      %p66 = scmp.ne.s32.totalorder %s57, %s58
      %p67 = scmp.eq.s32.totalorder %s31, 0
      %p68 = por %p66, %p67
      %p69 = scmp.ne.s32.totalorder %s57, %s58
      %p70 = scmp.eq.s32.totalorder %s32, 1
      %p71 = por %p69, %p70
      %p73 = scmp.ne.s32.totalorder %s58, %s72
      %p74 = scmp.eq.s32.totalorder %s32, 0
      %p75 = por %p73, %p74
      %s77 = sadd.s32 %s76, 1
      %p80 = scmp.eq.s32.totalorder %s26, 1
      %p81 = scmp.ne.s32.totalorder %s76, %s78
      %p82 = scmp.eq.s32.totalorder %s26, 0
      %p83 = por %p81, %p82
      %p84 = scmp.ne.s32.totalorder %s76, %s78
      %p85 = scmp.eq.s32.totalorder %s31, 1
      %p86 = por %p84, %p85
      %p87 = scmp.ne.s32.totalorder %s78, %s79
      %p88 = scmp.eq.s32.totalorder %s31, 0
      %p89 = por %p87, %p88
      %p90 = scmp.ne.s32.totalorder %s78, %s79
      %p91 = scmp.eq.s32.totalorder %s32, 1
      %p92 = por %p90, %p91
      %p94 = scmp.ne.s32.totalorder %s79, %s93
      %p95 = scmp.eq.s32.totalorder %s32, 0
      %p96 = por %p94, %p95
      %s98 = sadd.s32 %s97, 1
      %p101 = scmp.eq.s32.totalorder %s26, 1
      %p102 = scmp.ne.s32.totalorder %s97, %s99
      %p103 = scmp.eq.s32.totalorder %s26, 0
      %p104 = por %p102, %p103
      %p105 = scmp.ne.s32.totalorder %s97, %s99
      %p106 = scmp.eq.s32.totalorder %s31, 1
      %p107 = por %p105, %p106
      %p108 = scmp.ne.s32.totalorder %s99, %s100
      %p109 = scmp.eq.s32.totalorder %s31, 0
      %p110 = por %p108, %p109
      %p111 = scmp.ne.s32.totalorder %s99, %s100
      %p112 = scmp.eq.s32.totalorder %s32, 1
      %p113 = por %p111, %p112
      %p115 = scmp.ne.s32.totalorder %s100, %s114
      %p116 = scmp.eq.s32.totalorder %s32, 0
      %p117 = por %p115, %p116
      %s119 = sadd.s32 %s118, 1
      %p122 = scmp.eq.s32.totalorder %s26, 1
      %p123 = scmp.ne.s32.totalorder %s118, %s120
      %p124 = scmp.eq.s32.totalorder %s26, 0
      %p125 = por %p123, %p124
      %p126 = scmp.ne.s32.totalorder %s118, %s120
      %p127 = scmp.eq.s32.totalorder %s31, 1
      %p128 = por %p126, %p127
      %p129 = scmp.ne.s32.totalorder %s120, %s121
      %p130 = scmp.eq.s32.totalorder %s31, 0
      %p131 = por %p129, %p130
      %p132 = scmp.ne.s32.totalorder %s120, %s121
      %p133 = scmp.eq.s32.totalorder %s32, 1
      %p134 = por %p132, %p133
      %p136 = scmp.ne.s32.totalorder %s121, %s135
      %p137 = scmp.eq.s32.totalorder %s32, 0
      %p138 = por %p136, %p137
      %s139 = ssub.s32 %s26, %s33
      %p140 = scmp.eq.s32.totalorder %s139, 0
      %s142 = sadd.s32 %s141, 1
      %s143 = scalar_select %p140, %s141, %s142
      %p146 = pneg %p140
      %p147 = scmp.eq.s32.totalorder %s26, 1
      %p148 = por %p146, %p147
      %p149 = scmp.ne.s32.totalorder %s141, %s144
      %p150 = scmp.eq.s32.totalorder %s26, 0
      %p151 = por %p149, %p150
      %p152 = scmp.ne.s32.totalorder %s141, %s144
      %p153 = scmp.eq.s32.totalorder %s31, 1
      %p154 = por %p152, %p153
      %p155 = scmp.ne.s32.totalorder %s144, %s145
      %p156 = scmp.eq.s32.totalorder %s31, 0
      %p157 = por %p155, %p156
      %p158 = scmp.ne.s32.totalorder %s144, %s145
      %p159 = scmp.eq.s32.totalorder %s32, 1
      %p160 = por %p158, %p159
      %p162 = scmp.ne.s32.totalorder %s145, %s161
      %p163 = scmp.eq.s32.totalorder %s32, 0
      %p164 = por %p162, %p163
      %s165 = ssub.s32 %s26, %s33
      %p166 = scmp.eq.s32.totalorder %s165, 0
      %s168 = sadd.s32 %s167, 1
      %s169 = scalar_select %p166, %s167, %s168
      %p172 = pneg %p166
      %p173 = scmp.eq.s32.totalorder %s26, 1
      %p174 = por %p172, %p173
      %p175 = scmp.ne.s32.totalorder %s167, %s170
      %p176 = scmp.eq.s32.totalorder %s26, 0
      %p177 = por %p175, %p176
      %p178 = scmp.ne.s32.totalorder %s167, %s170
      %p179 = scmp.eq.s32.totalorder %s31, 1
      %p180 = por %p178, %p179
      %p181 = scmp.ne.s32.totalorder %s170, %s171
      %p182 = scmp.eq.s32.totalorder %s31, 0
      %p183 = por %p181, %p182
      %p184 = scmp.ne.s32.totalorder %s170, %s171
      %p185 = scmp.eq.s32.totalorder %s32, 1
      %p186 = por %p184, %p185
      %p188 = scmp.ne.s32.totalorder %s171, %s187
      %p189 = scmp.eq.s32.totalorder %s32, 0
      %p190 = por %p188, %p189
      %s191 = ssub.s32 %s26, %s33
      %p192 = scmp.eq.s32.totalorder %s191, 0
      %s194 = sadd.s32 %s193, 1
      %s195 = scalar_select %p192, %s193, %s194
      %p198 = pneg %p192
      %p199 = scmp.eq.s32.totalorder %s26, 1
      %p200 = por %p198, %p199
      %p201 = scmp.ne.s32.totalorder %s193, %s196
      %p202 = scmp.eq.s32.totalorder %s26, 0
      %p203 = por %p201, %p202
      %p204 = scmp.ne.s32.totalorder %s193, %s196
      %p205 = scmp.eq.s32.totalorder %s31, 1
      %p206 = por %p204, %p205
      %p207 = scmp.ne.s32.totalorder %s196, %s197
      %p208 = scmp.eq.s32.totalorder %s31, 0
      %p209 = por %p207, %p208
      %p210 = scmp.ne.s32.totalorder %s196, %s197
      %p211 = scmp.eq.s32.totalorder %s32, 1
      %p212 = por %p210, %p211
      %p214 = scmp.ne.s32.totalorder %s197, %s213
      %p215 = scmp.eq.s32.totalorder %s32, 0
      %p216 = por %p214, %p215
      %s217 = ssub.s32 %s26, %s33
      %p218 = scmp.eq.s32.totalorder %s217, 0
      %s220 = sadd.s32 %s219, 1
      %s221 = scalar_select %p218, %s219, %s220
      %p224 = pneg %p218
      %p225 = scmp.eq.s32.totalorder %s26, 1
      %p226 = por %p224, %p225
      %p227 = scmp.ne.s32.totalorder %s219, %s222
      %p228 = scmp.eq.s32.totalorder %s26, 0
      %p229 = por %p227, %p228
      %p230 = scmp.ne.s32.totalorder %s219, %s222
      %p231 = scmp.eq.s32.totalorder %s31, 1
      %p232 = por %p230, %p231
      %p233 = scmp.ne.s32.totalorder %s222, %s223
      %p234 = scmp.eq.s32.totalorder %s31, 0
      %p235 = por %p233, %p234
      %p236 = scmp.ne.s32.totalorder %s222, %s223
      %p237 = scmp.eq.s32.totalorder %s32, 1
      %p238 = por %p236, %p237
      %p240 = scmp.ne.s32.totalorder %s223, %s239
      %p241 = scmp.eq.s32.totalorder %s32, 0
      %p242 = por %p240, %p241
      %s243 = ssub.s32 %s26, %s33
      %p244 = scmp.eq.s32.totalorder %s243, 0
      %s246 = sadd.s32 %s245, 1
      %s247 = scalar_select %p244, %s245, %s246
      %p250 = pneg %p244
      %p251 = scmp.eq.s32.totalorder %s26, 1
      %p252 = por %p250, %p251
      %p253 = scmp.ne.s32.totalorder %s245, %s248
      %p254 = scmp.eq.s32.totalorder %s26, 0
      %p255 = por %p253, %p254
      %p256 = scmp.ne.s32.totalorder %s245, %s248
      %p257 = scmp.eq.s32.totalorder %s31, 1
      %p258 = por %p256, %p257
      %p259 = scmp.ne.s32.totalorder %s248, %s249
      %p260 = scmp.eq.s32.totalorder %s31, 0
      %p261 = por %p259, %p260
      %p262 = scmp.ne.s32.totalorder %s248, %s249
      %p263 = scmp.eq.s32.totalorder %s32, 1
      %p264 = por %p262, %p263
      %p266 = scmp.ne.s32.totalorder %s249, %s265
      %p267 = scmp.eq.s32.totalorder %s32, 0
      %p268 = por %p266, %p267
      %s269 = ssub.s32 %s26, %s33
      %p270 = scmp.eq.s32.totalorder %s269, 0
      %s272 = sadd.s32 %s271, 1
      %s273 = scalar_select %p270, %s271, %s272
      %p276 = pneg %p270
      %p277 = scmp.eq.s32.totalorder %s26, 1
      %p278 = por %p276, %p277
      %p279 = scmp.ne.s32.totalorder %s271, %s274
      %p280 = scmp.eq.s32.totalorder %s26, 0
      %p281 = por %p279, %p280
      %p282 = scmp.ne.s32.totalorder %s271, %s274
      %p283 = scmp.eq.s32.totalorder %s31, 1
      %p284 = por %p282, %p283
      %p285 = scmp.ne.s32.totalorder %s274, %s275
      %p286 = scmp.eq.s32.totalorder %s31, 0
      %p287 = por %p285, %p286
      %p288 = scmp.ne.s32.totalorder %s274, %s275
      %p289 = scmp.eq.s32.totalorder %s32, 1
      %p290 = por %p288, %p289
      %p292 = scmp.ne.s32.totalorder %s275, %s291
      %p293 = scmp.eq.s32.totalorder %s32, 0
      %p294 = por %p292, %p293
      %s295 = ssub.s32 %s26, %s33
      %p296 = scmp.eq.s32.totalorder %s295, 0
      %s298 = sadd.s32 %s297, 1
      %s299 = scalar_select %p296, %s297, %s298
      %p302 = pneg %p296
      %p303 = scmp.eq.s32.totalorder %s26, 1
      %p304 = por %p302, %p303
      %p305 = scmp.ne.s32.totalorder %s297, %s300
      %p306 = scmp.eq.s32.totalorder %s26, 0
      %p307 = por %p305, %p306
      %p308 = scmp.ne.s32.totalorder %s297, %s300
      %p309 = scmp.eq.s32.totalorder %s31, 1
      %p310 = por %p308, %p309
      %p311 = scmp.ne.s32.totalorder %s300, %s301
      %p312 = scmp.eq.s32.totalorder %s31, 0
      %p313 = por %p311, %p312
      %p314 = scmp.ne.s32.totalorder %s300, %s301
      %p315 = scmp.eq.s32.totalorder %s32, 1
      %p316 = por %p314, %p315
      %p318 = scmp.ne.s32.totalorder %s301, %s317
      %p319 = scmp.eq.s32.totalorder %s32, 0
      %p320 = por %p318, %p319
      %s321 = ssub.s32 %s26, %s33
      %p322 = scmp.eq.s32.totalorder %s321, 0
      %s324 = sadd.s32 %s323, 1
      %s325 = scalar_select %p322, %s323, %s324
      %p328 = pneg %p322
      %p329 = scmp.eq.s32.totalorder %s26, 1
      %p330 = por %p328, %p329
      %p331 = scmp.ne.s32.totalorder %s323, %s326
      %p332 = scmp.eq.s32.totalorder %s26, 0
      %p333 = por %p331, %p332
      %p334 = scmp.ne.s32.totalorder %s323, %s326
      %p335 = scmp.eq.s32.totalorder %s31, 1
      %p336 = por %p334, %p335
      %p337 = scmp.ne.s32.totalorder %s326, %s327
      %p338 = scmp.eq.s32.totalorder %s31, 0
      %p339 = por %p337, %p338
      %p340 = scmp.ne.s32.totalorder %s326, %s327
      %p341 = scmp.eq.s32.totalorder %s32, 1
      %p342 = por %p340, %p341
      %p344 = scmp.ne.s32.totalorder %s327, %s343
      %p345 = scmp.eq.s32.totalorder %s32, 0
      %p346 = por %p344, %p345
      %s347 = ssub.s32 %s26, %s33
      %p348 = scmp.eq.s32.totalorder %s347, 0
      %s350 = sadd.s32 %s349, 1
      %s351 = scalar_select %p348, %s349, %s350
      %p354 = pneg %p348
      %p355 = scmp.eq.s32.totalorder %s26, 1
      %p356 = por %p354, %p355
      %p357 = scmp.ne.s32.totalorder %s349, %s352
      %p358 = scmp.eq.s32.totalorder %s26, 0
      %p359 = por %p357, %p358
      %p360 = scmp.ne.s32.totalorder %s349, %s352
      %p361 = scmp.eq.s32.totalorder %s31, 1
      %p362 = por %p360, %p361
      %p363 = scmp.ne.s32.totalorder %s352, %s353
      %p364 = scmp.eq.s32.totalorder %s31, 0
      %p365 = por %p363, %p364
      %p366 = scmp.ne.s32.totalorder %s352, %s353
      %p367 = scmp.eq.s32.totalorder %s32, 1
      %p368 = por %p366, %p367
      %p370 = scmp.ne.s32.totalorder %s353, %s369
      %p371 = scmp.eq.s32.totalorder %s32, 0
      %p372 = por %p370, %p371
      %s373 = ssub.s32 %s26, %s33
      %p374 = scmp.eq.s32.totalorder %s373, 0
      %s376 = sadd.s32 %s375, 1
      %s377 = scalar_select %p374, %s375, %s376
      %p380 = pneg %p374
      %p381 = scmp.eq.s32.totalorder %s26, 1
      %p382 = por %p380, %p381
      %p383 = scmp.ne.s32.totalorder %s375, %s378
      %p384 = scmp.eq.s32.totalorder %s26, 0
      %p385 = por %p383, %p384
      %p386 = scmp.ne.s32.totalorder %s375, %s378
      %p387 = scmp.eq.s32.totalorder %s31, 1
      %p388 = por %p386, %p387
      %p389 = scmp.ne.s32.totalorder %s378, %s379
      %p390 = scmp.eq.s32.totalorder %s31, 0
      %p391 = por %p389, %p390
      %p392 = scmp.ne.s32.totalorder %s378, %s379
      %p393 = scmp.eq.s32.totalorder %s32, 1
      %p394 = por %p392, %p393
      %p396 = scmp.ne.s32.totalorder %s379, %s395
      %p397 = scmp.eq.s32.totalorder %s32, 0
      %p398 = por %p396, %p397
      %s399 = ssub.s32 %s26, %s33
      %p400 = scmp.eq.s32.totalorder %s399, 0
      %s402 = sadd.s32 %s401, 1
      %s403 = scalar_select %p400, %s401, %s402
      %p406 = pneg %p400
      %p407 = scmp.eq.s32.totalorder %s26, 1
      %p408 = por %p406, %p407
      %p409 = scmp.ne.s32.totalorder %s401, %s404
      %p410 = scmp.eq.s32.totalorder %s26, 0
      %p411 = por %p409, %p410
      %p412 = scmp.ne.s32.totalorder %s401, %s404
      %p413 = scmp.eq.s32.totalorder %s31, 1
      %p414 = por %p412, %p413
      %p415 = scmp.ne.s32.totalorder %s404, %s405
      %p416 = scmp.eq.s32.totalorder %s31, 0
      %p417 = por %p415, %p416
      %p418 = scmp.ne.s32.totalorder %s404, %s405
      %p419 = scmp.eq.s32.totalorder %s32, 1
      %p420 = por %p418, %p419
      %p422 = scmp.ne.s32.totalorder %s405, %s421
      %p423 = scmp.eq.s32.totalorder %s32, 0
      %p424 = por %p422, %p423
      %s425 = ssub.s32 %s26, %s33
      %p426 = scmp.eq.s32.totalorder %s425, 0
      %s428 = sadd.s32 %s427, 1
      %s429 = scalar_select %p426, %s427, %s428
      %p432 = pneg %p426
      %p433 = scmp.eq.s32.totalorder %s26, 1
      %p434 = por %p432, %p433
      %p435 = scmp.ne.s32.totalorder %s427, %s430
      %p436 = scmp.eq.s32.totalorder %s26, 0
      %p437 = por %p435, %p436
      %p438 = scmp.ne.s32.totalorder %s427, %s430
      %p439 = scmp.eq.s32.totalorder %s31, 1
      %p440 = por %p438, %p439
      %p441 = scmp.ne.s32.totalorder %s430, %s431
      %p442 = scmp.eq.s32.totalorder %s31, 0
      %p443 = por %p441, %p442
      %p444 = scmp.ne.s32.totalorder %s430, %s431
      %p445 = scmp.eq.s32.totalorder %s32, 1
      %p446 = por %p444, %p445
      %p448 = scmp.ne.s32.totalorder %s431, %s447
      %p449 = scmp.eq.s32.totalorder %s32, 0
      %p450 = por %p448, %p449
      %s452 = sadd.s32 %s451, 1
      %p455 = scmp.eq.s32.totalorder %s26, 1
      %p456 = scmp.ne.s32.totalorder %s451, %s453
      %p457 = scmp.eq.s32.totalorder %s26, 0
      %p458 = por %p456, %p457
      %p459 = scmp.ne.s32.totalorder %s451, %s453
      %p460 = scmp.eq.s32.totalorder %s31, 1
      %p461 = por %p459, %p460
      %p462 = scmp.ne.s32.totalorder %s453, %s454
      %p463 = scmp.eq.s32.totalorder %s31, 0
      %p464 = por %p462, %p463
      %p465 = scmp.ne.s32.totalorder %s453, %s454
      %p466 = scmp.eq.s32.totalorder %s32, 1
      %p467 = por %p465, %p466
      %p469 = scmp.ne.s32.totalorder %s454, %s468
      %p470 = scmp.eq.s32.totalorder %s32, 0
      %p471 = por %p469, %p470
      %s473 = sadd.s32 %s472, 1
      %p476 = scmp.eq.s32.totalorder %s26, 1
      %p477 = scmp.ne.s32.totalorder %s472, %s474
      %p478 = scmp.eq.s32.totalorder %s26, 0
      %p479 = por %p477, %p478
      %p480 = scmp.ne.s32.totalorder %s472, %s474
      %p481 = scmp.eq.s32.totalorder %s31, 1
      %p482 = por %p480, %p481
      %p483 = scmp.ne.s32.totalorder %s474, %s475
      %p484 = scmp.eq.s32.totalorder %s31, 0
      %p485 = por %p483, %p484
      %p486 = scmp.ne.s32.totalorder %s474, %s475
      %p487 = scmp.eq.s32.totalorder %s32, 1
      %p488 = por %p486, %p487
      %p490 = scmp.ne.s32.totalorder %s475, %s489
      %p491 = scmp.eq.s32.totalorder %s32, 0
      %p492 = por %p490, %p491
      %s494 = sadd.s32 %s493, 1
      %p497 = scmp.eq.s32.totalorder %s26, 1
      %p498 = scmp.ne.s32.totalorder %s493, %s495
      %p499 = scmp.eq.s32.totalorder %s26, 0
      %p500 = por %p498, %p499
      %p501 = scmp.ne.s32.totalorder %s493, %s495
      %p502 = scmp.eq.s32.totalorder %s31, 1
      %p503 = por %p501, %p502
      %p504 = scmp.ne.s32.totalorder %s495, %s496
      %p505 = scmp.eq.s32.totalorder %s31, 0
      %p506 = por %p504, %p505
      %p507 = scmp.ne.s32.totalorder %s495, %s496
      %p508 = scmp.eq.s32.totalorder %s32, 1
      %p509 = por %p507, %p508
      %p511 = scmp.ne.s32.totalorder %s496, %s510
      %p512 = scmp.eq.s32.totalorder %s32, 0
      %p513 = por %p511, %p512
      %p514 = scmp.le.s32.totalorder 1, %s26
      %p515 = scmp.lt.s32.totalorder %s26, 3
      %p516 = pnand %p514, %p515
      %p517 = pneg %p516
      // Predicated region
      $region9: #{ast_encoder_forward.1} parent=5 // pred_check
        _
      $region10: #{ast_encoder_forward.1} parent=5 // pred_check_branch
        %519 = sbr.rel (%p516) target = $region12
      $region11: #{ast_encoder_forward.1} parent=5 // pred_region
        %s520 = ssub.s32 %s26, 1
        // Predicated region
        $region13: #{ast_encoder_forward.1} parent=11 // pred_check
          %p521 = pneg %p47
        $region14: #{ast_encoder_forward.1} parent=11 // pred_check_branch
          %523 = sbr.rel (%p521) target = $region16
        $region15: #{ast_encoder_forward.1} parent=11 // pred_region
          _
        $region16: #{ast_encoder_forward.1} parent=11 // pred_fallthru
          _
        // Predicated region
        $region17: #{ast_encoder_forward.1} parent=11 // pred_check
          %p524 = pneg %p68
        $region18: #{ast_encoder_forward.1} parent=11 // pred_check_branch
          %526 = sbr.rel (%p524) target = $region20
        $region19: #{ast_encoder_forward.1} parent=11 // pred_region
          _
        $region20: #{ast_encoder_forward.1} parent=11 // pred_fallthru
          _
        // Predicated region
        $region21: #{ast_encoder_forward.1} parent=11 // pred_check
          %p527 = pneg %p89
        $region22: #{ast_encoder_forward.1} parent=11 // pred_check_branch
          %529 = sbr.rel (%p527) target = $region24
        $region23: #{ast_encoder_forward.1} parent=11 // pred_region
          _
        $region24: #{ast_encoder_forward.1} parent=11 // pred_fallthru
          _
        // Predicated region
        $region25: #{ast_encoder_forward.1} parent=11 // pred_check
          %p530 = pneg %p110
        $region26: #{ast_encoder_forward.1} parent=11 // pred_check_branch
          %532 = sbr.rel (%p530) target = $region28
        $region27: #{ast_encoder_forward.1} parent=11 // pred_region
          _
        $region28: #{ast_encoder_forward.1} parent=11 // pred_fallthru
          _
        // Predicated region
        $region29: #{ast_encoder_forward.1} parent=11 // pred_check
          %p533 = pneg %p131
        $region30: #{ast_encoder_forward.1} parent=11 // pred_check_branch
          %535 = sbr.rel (%p533) target = $region32
        $region31: #{ast_encoder_forward.1} parent=11 // pred_region
          _
        $region32: #{ast_encoder_forward.1} parent=11 // pred_fallthru
          _
        // Predicated region
        $region33: #{ast_encoder_forward.1} parent=11 // pred_check
          %p536 = pneg %p464
        $region34: #{ast_encoder_forward.1} parent=11 // pred_check_branch
          %538 = sbr.rel (%p536) target = $region36
        $region35: #{ast_encoder_forward.1} parent=11 // pred_region
          _
        $region36: #{ast_encoder_forward.1} parent=11 // pred_fallthru
          _
        // Predicated region
        $region37: #{ast_encoder_forward.1} parent=11 // pred_check
          %p539 = pneg %p485
        $region38: #{ast_encoder_forward.1} parent=11 // pred_check_branch
          %541 = sbr.rel (%p539) target = $region40
        $region39: #{ast_encoder_forward.1} parent=11 // pred_region
          _
        $region40: #{ast_encoder_forward.1} parent=11 // pred_fallthru
          _
      $region12: #{ast_encoder_forward.1} parent=5 // pred_fallthru
        _
      %p542 = scmp.lt.s32.totalorder %s26, 2
      // Predicated region
      $region41: #{ast_encoder_forward.1} parent=5 // pred_check
        %p543 = pneg %p542
      $region42: #{ast_encoder_forward.1} parent=5 // pred_check_branch
        %545 = sbr.rel (%p543) target = $region44
      $region43: #{ast_encoder_forward.1} parent=5 // pred_region
        // Predicated region
        $region45: #{ast_encoder_forward.1} parent=43 // pred_check
          %p546 = pneg %p151
        $region46: #{ast_encoder_forward.1} parent=43 // pred_check_branch
          %548 = sbr.rel (%p546) target = $region48
        $region47: #{ast_encoder_forward.1} parent=43 // pred_region
          %p549 = scmp.lt.s32.totalorder %s26, 1
          %s550 = scalar_select %p549, %s26, 1
          %s551 = scalar_lea.vmem %s5, %s550
        $region48: #{ast_encoder_forward.1} parent=43 // pred_fallthru
          _
        // Predicated region
        $region49: #{ast_encoder_forward.1} parent=43 // pred_check
          %p552 = pneg %p177
        $region50: #{ast_encoder_forward.1} parent=43 // pred_check_branch
          %554 = sbr.rel (%p552) target = $region52
        $region51: #{ast_encoder_forward.1} parent=43 // pred_region
          %p555 = scmp.lt.s32.totalorder %s26, 1
          %s556 = scalar_select %p555, %s26, 1
          %s557 = scalar_lea.vmem %s6, %s556
        $region52: #{ast_encoder_forward.1} parent=43 // pred_fallthru
          _
        // Predicated region
        $region53: #{ast_encoder_forward.1} parent=43 // pred_check
          %p558 = pneg %p203
        $region54: #{ast_encoder_forward.1} parent=43 // pred_check_branch
          %560 = sbr.rel (%p558) target = $region56
        $region55: #{ast_encoder_forward.1} parent=43 // pred_region
          %p561 = scmp.lt.s32.totalorder %s26, 1
          %s562 = scalar_select %p561, %s26, 1
          %s563 = smul.addr %s562, 4
          %s564 = smul.addr %s563, 4
          %s565 = scalar_lea.vmem %s7, %s564
        $region56: #{ast_encoder_forward.1} parent=43 // pred_fallthru
          _
        // Predicated region
        $region57: #{ast_encoder_forward.1} parent=43 // pred_check
          %p566 = pneg %p229
        $region58: #{ast_encoder_forward.1} parent=43 // pred_check_branch
          %568 = sbr.rel (%p566) target = $region60
        $region59: #{ast_encoder_forward.1} parent=43 // pred_region
          %p569 = scmp.lt.s32.totalorder %s26, 1
          %s570 = scalar_select %p569, %s26, 1
          %s571 = scalar_lea.vmem %s8, %s570
        $region60: #{ast_encoder_forward.1} parent=43 // pred_fallthru
          _
        // Predicated region
        $region61: #{ast_encoder_forward.1} parent=43 // pred_check
          %p572 = pneg %p255
        $region62: #{ast_encoder_forward.1} parent=43 // pred_check_branch
          %574 = sbr.rel (%p572) target = $region64
        $region63: #{ast_encoder_forward.1} parent=43 // pred_region
          %p575 = scmp.lt.s32.totalorder %s26, 1
          %s576 = scalar_select %p575, %s26, 1
          %s577 = smul.addr %s576, 4
          %s578 = smul.addr %s577, 4
          %s579 = scalar_lea.vmem %s9, %s578
        $region64: #{ast_encoder_forward.1} parent=43 // pred_fallthru
          _
        // Predicated region
        $region65: #{ast_encoder_forward.1} parent=43 // pred_check
          %p580 = pneg %p281
        $region66: #{ast_encoder_forward.1} parent=43 // pred_check_branch
          %582 = sbr.rel (%p580) target = $region68
        $region67: #{ast_encoder_forward.1} parent=43 // pred_region
          %p583 = scmp.lt.s32.totalorder %s26, 1
          %s584 = scalar_select %p583, %s26, 1
          %s585 = scalar_lea.vmem %s10, %s584
        $region68: #{ast_encoder_forward.1} parent=43 // pred_fallthru
          _
        // Predicated region
        $region69: #{ast_encoder_forward.1} parent=43 // pred_check
          %p586 = pneg %p307
        $region70: #{ast_encoder_forward.1} parent=43 // pred_check_branch
          %588 = sbr.rel (%p586) target = $region72
        $region71: #{ast_encoder_forward.1} parent=43 // pred_region
          %p589 = scmp.lt.s32.totalorder %s26, 1
          %s590 = scalar_select %p589, %s26, 1
          %s591 = scalar_lea.vmem %s11, %s590
        $region72: #{ast_encoder_forward.1} parent=43 // pred_fallthru
          _
        // Predicated region
        $region73: #{ast_encoder_forward.1} parent=43 // pred_check
          %p592 = pneg %p333
        $region74: #{ast_encoder_forward.1} parent=43 // pred_check_branch
          %594 = sbr.rel (%p592) target = $region76
        $region75: #{ast_encoder_forward.1} parent=43 // pred_region
          %p595 = scmp.lt.s32.totalorder %s26, 1
          %s596 = scalar_select %p595, %s26, 1
          %s597 = scalar_lea.vmem %s12, %s596
        $region76: #{ast_encoder_forward.1} parent=43 // pred_fallthru
          _
        // Predicated region
        $region77: #{ast_encoder_forward.1} parent=43 // pred_check
          %p598 = pneg %p359
        $region78: #{ast_encoder_forward.1} parent=43 // pred_check_branch
          %600 = sbr.rel (%p598) target = $region80
        $region79: #{ast_encoder_forward.1} parent=43 // pred_region
          %p601 = scmp.lt.s32.totalorder %s26, 1
          %s602 = scalar_select %p601, %s26, 1
          %s603 = smul.addr %s602, 4
          %s604 = smul.addr %s603, 4
          %s605 = scalar_lea.vmem %s13, %s604
        $region80: #{ast_encoder_forward.1} parent=43 // pred_fallthru
          _
        // Predicated region
        $region81: #{ast_encoder_forward.1} parent=43 // pred_check
          %p606 = pneg %p385
        $region82: #{ast_encoder_forward.1} parent=43 // pred_check_branch
          %608 = sbr.rel (%p606) target = $region84
        $region83: #{ast_encoder_forward.1} parent=43 // pred_region
          %p609 = scmp.lt.s32.totalorder %s26, 1
          %s610 = scalar_select %p609, %s26, 1
          %s611 = scalar_lea.vmem %s14, %s610
        $region84: #{ast_encoder_forward.1} parent=43 // pred_fallthru
          _
        // Predicated region
        $region85: #{ast_encoder_forward.1} parent=43 // pred_check
          %p612 = pneg %p411
        $region86: #{ast_encoder_forward.1} parent=43 // pred_check_branch
          %614 = sbr.rel (%p612) target = $region88
        $region87: #{ast_encoder_forward.1} parent=43 // pred_region
          %p615 = scmp.lt.s32.totalorder %s26, 1
          %s616 = scalar_select %p615, %s26, 1
          %s617 = smul.addr %s616, 16
          %s618 = smul.addr %s617, 4
          %s619 = scalar_lea.vmem %s15, %s618
        $region88: #{ast_encoder_forward.1} parent=43 // pred_fallthru
          _
        // Predicated region
        $region89: #{ast_encoder_forward.1} parent=43 // pred_check
          %p620 = pneg %p437
        $region90: #{ast_encoder_forward.1} parent=43 // pred_check_branch
          %622 = sbr.rel (%p620) target = $region92
        $region91: #{ast_encoder_forward.1} parent=43 // pred_region
          %p623 = scmp.lt.s32.totalorder %s26, 1
          %s624 = scalar_select %p623, %s26, 1
          %s625 = scalar_lea.vmem %s16, %s624
        $region92: #{ast_encoder_forward.1} parent=43 // pred_fallthru
          _
      $region44: #{ast_encoder_forward.1} parent=5 // pred_fallthru
        _
      %p626 = scmp.le.s32.totalorder 1, %s26
      %p627 = scmp.lt.s32.totalorder %s26, 3
      %p628 = pnand %p626, %p627
      %p629 = pneg %p628
      // Predicated region
      $region93: #{ast_encoder_forward.1} parent=5 // pred_check
        _
      $region94: #{ast_encoder_forward.1} parent=5 // pred_check_branch
        %631 = sbr.rel (%p628) target = $region96
      $region95: #{ast_encoder_forward.1} parent=5 // pred_region
        %s632 = ssub.s32 %s26, 1
        %p633 = pneg %p47
        %p634 = pneg %p44
        %p635 = pneg %p68
        %p636 = pneg %p65
        %p637 = pneg %p89
        %p638 = pneg %p86
        %p639 = pneg %p110
        %p640 = pneg %p107
        %p641 = pneg %p131
        %p642 = pneg %p128
        %p643 = scmp.lt.s32.totalorder %s31, 1
        %s644 = scalar_select %p643, %s31, 1
        %s645 = scalar_lea.vmem %s5, %s644
        %p646 = pneg %p157
        %p647 = pneg %p154
        %p648 = scmp.lt.s32.totalorder %s31, 1
        %s649 = scalar_select %p648, %s31, 1
        %s650 = scalar_lea.vmem %s6, %s649
        %p651 = pneg %p183
        %p652 = pneg %p180
        %p653 = scmp.lt.s32.totalorder %s31, 1
        %s654 = scalar_select %p653, %s31, 1
        %s655 = smul.addr %s654, 4
        %s656 = smul.addr %s655, 4
        %s657 = scalar_lea.vmem %s7, %s656
        %p658 = pneg %p209
        %p659 = pneg %p206
        %p660 = scmp.lt.s32.totalorder %s31, 1
        %s661 = scalar_select %p660, %s31, 1
        %s662 = scalar_lea.vmem %s8, %s661
        %p663 = pneg %p235
        %p664 = pneg %p232
        %p665 = scmp.lt.s32.totalorder %s31, 1
        %s666 = scalar_select %p665, %s31, 1
        %s667 = smul.addr %s666, 4
        %s668 = smul.addr %s667, 4
        %s669 = scalar_lea.vmem %s9, %s668
        %p670 = pneg %p261
        %p671 = pneg %p258
        %p672 = scmp.lt.s32.totalorder %s31, 1
        %s673 = scalar_select %p672, %s31, 1
        %s674 = scalar_lea.vmem %s10, %s673
        %p675 = pneg %p287
        %p676 = pneg %p284
        %p677 = scmp.lt.s32.totalorder %s31, 1
        %s678 = scalar_select %p677, %s31, 1
        %s679 = scalar_lea.vmem %s11, %s678
        %p680 = pneg %p313
        %p681 = pneg %p310
        %p682 = scmp.lt.s32.totalorder %s31, 1
        %s683 = scalar_select %p682, %s31, 1
        %s684 = scalar_lea.vmem %s12, %s683
        %p685 = pneg %p339
        %p686 = pneg %p336
        %p687 = scmp.lt.s32.totalorder %s31, 1
        %s688 = scalar_select %p687, %s31, 1
        %s689 = smul.addr %s688, 4
        %s690 = smul.addr %s689, 4
        %s691 = scalar_lea.vmem %s13, %s690
        %p692 = pneg %p365
        %p693 = pneg %p362
        %p694 = scmp.lt.s32.totalorder %s31, 1
        %s695 = scalar_select %p694, %s31, 1
        %s696 = scalar_lea.vmem %s14, %s695
        %p697 = pneg %p391
        %p698 = pneg %p388
        %p699 = scmp.lt.s32.totalorder %s31, 1
        %s700 = scalar_select %p699, %s31, 1
        %s701 = smul.addr %s700, 16
        %s702 = smul.addr %s701, 4
        %s703 = scalar_lea.vmem %s15, %s702
        %p704 = pneg %p417
        %p705 = pneg %p414
        %p706 = scmp.lt.s32.totalorder %s31, 1
        %s707 = scalar_select %p706, %s31, 1
        %s708 = scalar_lea.vmem %s16, %s707
        %p709 = pneg %p443
        %p710 = pneg %p440
        %p711 = pneg %p464
        %p712 = pneg %p461
        %p713 = pneg %p485
        %p714 = pneg %p482
        %p715 = pneg %p506
        %p716 = pneg %p503
        %p717 = scmp.lt.s32.totalorder %s31, 1
        %s718 = scalar_select %p717, %s31, 1
        %s719 = scalar_lea.vmem %s5, %s718
        %p720 = scmp.lt.s32.totalorder %s31, 1
        %s721 = scalar_select %p720, %s31, 1
        %s722 = scalar_lea.vmem %s6, %s721
        %p723 = scmp.lt.s32.totalorder %s31, 1
        %s724 = scalar_select %p723, %s31, 1
        %s725 = smul.addr %s724, 4
        %s726 = smul.addr %s725, 4
        %s727 = scalar_lea.vmem %s7, %s726
        %p728 = scmp.lt.s32.totalorder %s31, 1
        %s729 = scalar_select %p728, %s31, 1
        %s730 = scalar_lea.vmem %s8, %s729
        %p731 = scmp.lt.s32.totalorder %s31, 1
        %s732 = scalar_select %p731, %s31, 1
        %s733 = smul.addr %s732, 4
        %s734 = smul.addr %s733, 4
        %s735 = scalar_lea.vmem %s9, %s734
        %p736 = scmp.lt.s32.totalorder %s31, 1
        %s737 = scalar_select %p736, %s31, 1
        %s738 = scalar_lea.vmem %s10, %s737
        %p739 = scmp.lt.s32.totalorder %s31, 1
        %s740 = scalar_select %p739, %s31, 1
        %s741 = scalar_lea.vmem %s11, %s740
        %p742 = scmp.lt.s32.totalorder %s31, 1
        %s743 = scalar_select %p742, %s31, 1
        %s744 = scalar_lea.vmem %s12, %s743
        %p745 = scmp.lt.s32.totalorder %s31, 1
        %s746 = scalar_select %p745, %s31, 1
        %s747 = smul.addr %s746, 4
        %s748 = smul.addr %s747, 4
        %s749 = scalar_lea.vmem %s13, %s748
        %p750 = scmp.lt.s32.totalorder %s31, 1
        %s751 = scalar_select %p750, %s31, 1
        %s752 = scalar_lea.vmem %s14, %s751
        %p753 = scmp.lt.s32.totalorder %s31, 1
        %s754 = scalar_select %p753, %s31, 1
        %s755 = smul.addr %s754, 16
        %s756 = smul.addr %s755, 4
        %s757 = scalar_lea.vmem %s15, %s756
        %p758 = scmp.lt.s32.totalorder %s31, 1
        %s759 = scalar_select %p758, %s31, 1
        %s760 = scalar_lea.vmem %s16, %s759
        %p762 = scmp.eq.s32.totalorder %s31, 0
        // Predicated region
        $region97: #{ast_encoder_forward.1} parent=95 // pred_check
          %p763 = pneg %p762
        $region98: #{ast_encoder_forward.1} parent=95 // pred_check_branch
          %765 = sbr.rel (%p763) target = $region100
        $region99: #{ast_encoder_forward.1} parent=95 // pred_region
          %v766 = vld [vmem:[%s0] sm:$0xff]
          %v767 = vld [vmem:[%s0 + $0x8] sm:$0xff]
          %v768 = vld [vmem:[%s0 + $0x10] sm:$0xff]
          %v769 = vld [vmem:[%s0 + $0x18] sm:$0xff]
          %v770 = vpack.c.bf16 %v767, %v766
          %v771 = vpack.c.bf16 %v769, %v768
          %v772 = vld [vmem:[%s1] sm:$0xf]
          %v773 = vld [vmem:[%s1 + $0x4] sm:$0xf]
          %v774 = vld [vmem:[%s1 + $0x8] sm:$0xf]
          %v775 = vld [vmem:[%s1 + $0xc] sm:$0xf]
          %v776 = vld [vmem:[%s1 + $0x10] sm:$0xf]
          %v777 = vld [vmem:[%s1 + $0x14] sm:$0xf]
          %v778 = vld [vmem:[%s1 + $0x18] sm:$0xf]
          %v779 = vld [vmem:[%s1 + $0x1c] sm:$0xf]
          %v788 = vunpack.c.l.b16 %v772
          %v789 = vunpack.c.l.b16 %v773
          %v790 = vunpack.c.l.b16 %v774
          %v791 = vunpack.c.l.b16 %v775
          %v792 = vunpack.c.l.b16 %v776
          %v793 = vunpack.c.l.b16 %v777
          %v794 = vunpack.c.l.b16 %v778
          %v795 = vunpack.c.l.b16 %v779
          %v796 = vpack.c.b16 %v789, %v788
          %v797 = vpack.c.b16 %v791, %v790
          %v798 = vpack.c.b16 %v793, %v792
          %v799 = vpack.c.b16 %v795, %v794
          %vm804 = vcmask 523264
          %v806 = vsel %vm804, %v770, 0
          %v809 = vsel %vm804, %v771, 0
          %811 = vmatprep.subr.bf16.mxu0 0
          %812 = vmatpush1.bf16.msra.mxu0 %v796
          %813 = vmatprep.subr.bf16.mxu0 0
          %814 = vmatpush1.bf16.msra.mxu0 %v797
          %815 = vmatprep.subr.bf16.mxu0 0
          %816 = vmatpush1.bf16.msra.mxu0 %v798
          %817 = vmatprep.subr.bf16.mxu0 0
          %818 = vmatpush1.bf16.msra.mxu0 %v799
          %819 = vmatprep.subr.bf16.mxu0 0
          %820 = vmatpush1.bf16.msra.mxu0 0
          %821 = vmatprep.subr.bf16.mxu0 0
          %822 = vmatpush1.bf16.msra.mxu0 0
          %823 = vmatprep.subr.bf16.mxu0 0
          %824 = vmatpush1.bf16.msra.mxu0 0
          %825 = vmatprep.subr.bf16.mxu0 0
          %826 = vmatpush1.bf16.msra.mxu0 0
          %827 = vmatprep.subr.bf16.mxu0 0
          %828 = vmatpush1.bf16.msra.mxu0 0
          %829 = vmatprep.subr.bf16.mxu0 0
          %830 = vmatpush1.bf16.msra.mxu0 0
          %831 = vmatprep.subr.bf16.mxu0 0
          %832 = vmatpush1.bf16.msra.mxu0 0
          %833 = vmatprep.subr.bf16.mxu0 0
          %834 = vmatpush1.bf16.msra.mxu0 0
          %835 = vmatprep.subr.bf16.mxu0 0
          %836 = vmatpush1.bf16.msra.mxu0 0
          %837 = vmatprep.subr.bf16.mxu0 0
          %838 = vmatpush1.bf16.msra.mxu0 0
          %839 = vmatprep.subr.bf16.mxu0 0
          %840 = vmatpush1.bf16.msra.mxu0 0
          %841 = vmatprep.subr.bf16.mxu0 0
          %842 = vmatpush1.bf16.msra.mxu0 0
          %843 = vmatprep.mubr.bf16.mxu0 0
          %844 = vmatmul.mubr.bf16.gmra.mrb[0].mxu0 %v806
          %v845 = vpop.f32.mrb[0].mxu0
          %v846 = vadd.f32 0.0, %v845
          %v847 = vpop.f32.mrb[0].mxu0
          %v848 = vpop.f32.mrb[0].mxu0
          %v849 = vadd.f32 0.0, %v848
          %v850 = vpop.f32.mrb[0].mxu0
          %851 = vmatprep.mubr.bf16.mxu0 0
          %852 = vmatmul.mubr.bf16.gmra.mrb[0].mxu0 %v809
          %v853 = vpop.f32.mrb[0].mxu0
          %v854 = vadd.f32 0.0, %v853
          %v855 = vpop.f32.mrb[0].mxu0
          %v856 = vpop.f32.mrb[0].mxu0
          %v857 = vadd.f32 0.0, %v856
          %v858 = vpop.f32.mrb[0].mxu0
          %859 = vdwg.mxu0
          %v860 = vlaneseq
          %v861 = vshrl.u32 %v860, 7
          %v862 = vadd.s32 %v861, 8
          %v863 = vld [vmem:[%s4] sm:$0xff]
          %v864 = vld [vmem:[%s4 + $0x8] sm:$0xff]
          %vm865 = vcmp.eq.s32.totalorder %v861, 0
          %vm866 = vcmp.eq.s32.totalorder %v862, 0
          %v867 = vld [vmem:[%s3] sm:$0x1]
          %v868 = vld [vmem:[%s2] sm:$0x1]
          %v870 = vlaneseq
          %v871 = vshrl.u32 %v870, 7
          %v872 = vsub.s32 0, %v871
          %v873 = vrot.slane %v867, %v872
          %v876 = vlaneseq
          %v877 = vshrl.u32 %v876, 7
          %v878 = vsub.s32 0, %v877
          %v879 = vrot.slane %v868, %v878
          %v881 = vsel %vm865, %v873, %v879
          %v882 = vsel %vm866, %v873, %v879
          %v883 = vadd.f32 %v863, %v881
          %v884 = vadd.f32 %v864, %v882
          %v885 = vadd.f32 %v846, %v883
          %v886 = vadd.f32 %v849, %v884
          %v887 = vadd.f32 %v854, %v883
          %v888 = vadd.f32 %v857, %v884
          %vm889 = vcmask 261120
          %890 = vst.msk [vmem:[#allocation2] sm:$0xff] %vm889, %v885
          %891 = vst.msk [vmem:[#allocation2 + $0x8] sm:$0xff] %vm889, %v886
          %892 = vst.msk [vmem:[#allocation2 + $0x10] sm:$0xff] %vm889, %v887
          %893 = vst.msk [vmem:[#allocation2 + $0x18] sm:$0xff] %vm889, %v888
        $region100: #{ast_encoder_forward.1} parent=95 // pred_fallthru
          _
        %v894 = vld [vmem:[#allocation2] sm:$0xff]
        %v895 = vld [vmem:[#allocation2 + $0x8] sm:$0xff]
        %v896 = vld [vmem:[#allocation2 + $0x10] sm:$0xff]
        %v897 = vld [vmem:[#allocation2 + $0x18] sm:$0xff]
        %v898 = vld [vmem:[%s719] sm:$0x1]
        %v899 = vld [vmem:[%s722] sm:$0x1]
        %vm900 = vcmask 261120
        %v901 = vsel %vm900, %v894, 0.0
        %902 = vadd.xlane.f32.xlu0 %v901
        %v903 = vpop.xlane.xlu0 %902
        %v904 = vsel %vm900, %v895, 0.0
        %905 = vadd.xlane.f32.xlu0 %v904
        %v906 = vpop.xlane.xlu0 %905
        %v907 = vsel %vm900, %v896, 0.0
        %908 = vadd.xlane.f32.xlu0 %v907
        %v909 = vpop.xlane.xlu0 %908
        %v910 = vsel %vm900, %v897, 0.0
        %911 = vadd.xlane.f32.xlu0 %v910
        %v912 = vpop.xlane.xlu0 %911
        %v913 = vrcp.pop 32.0
        %v914 = vmul.f32 %v903, %v913
        %v915 = vmul.f32 %v906, %v913
        %v916 = vmul.f32 %v909, %v913
        %v917 = vmul.f32 %v912, %v913
        %v918 = vsub.f32 %v894, %v914
        %v919 = vsub.f32 %v895, %v915
        %v920 = vsub.f32 %v896, %v916
        %v921 = vsub.f32 %v897, %v917
        %v922 = vmul.f32 %v918, %v918
        %v923 = vmul.f32 %v919, %v919
        %v924 = vmul.f32 %v920, %v920
        %v925 = vmul.f32 %v921, %v921
        %v926 = vsel %vm900, %v922, 0.0
        %927 = vadd.xlane.f32.xlu0 %v926
        %v928 = vpop.xlane.xlu0 %927
        %v929 = vsel %vm900, %v923, 0.0
        %930 = vadd.xlane.f32.xlu0 %v929
        %v931 = vpop.xlane.xlu0 %930
        %v932 = vsel %vm900, %v924, 0.0
        %933 = vadd.xlane.f32.xlu0 %v932
        %v934 = vpop.xlane.xlu0 %933
        %v935 = vsel %vm900, %v925, 0.0
        %936 = vadd.xlane.f32.xlu0 %v935
        %v937 = vpop.xlane.xlu0 %936
        %v938 = vmul.f32 %v928, %v913
        %v939 = vmul.f32 %v931, %v913
        %v940 = vmul.f32 %v934, %v913
        %v941 = vmul.f32 %v937, %v913
        %v942 = vadd.f32 %v938, 1e-06
        %v943 = vadd.f32 %v939, 1e-06
        %v944 = vadd.f32 %v940, 1e-06
        %v945 = vadd.f32 %v941, 1e-06
        %v946 = vrsqrt.pop %v942
        %v947 = vrsqrt.pop %v943
        %v948 = vrsqrt.pop %v944
        %v949 = vrsqrt.pop %v945
        %v950 = vmul.f32 %v918, %v946
        %v951 = vmul.f32 %v919, %v947
        %v952 = vmul.f32 %v920, %v948
        %v953 = vmul.f32 %v921, %v949
        %v955 = vlaneseq
        %v956 = vshrl.u32 %v955, 7
        %v957 = vsub.s32 0, %v956
        %v958 = vrot.slane %v898, %v957
        %v960 = vmul.f32 %v950, %v958
        %v961 = vmul.f32 %v951, %v958
        %v962 = vmul.f32 %v952, %v958
        %v963 = vmul.f32 %v953, %v958
        %v965 = vlaneseq
        %v966 = vshrl.u32 %v965, 7
        %v967 = vsub.s32 0, %v966
        %v968 = vrot.slane %v899, %v967
        %v970 = vadd.f32 %v960, %v968
        %v971 = vadd.f32 %v961, %v968
        %v972 = vadd.f32 %v962, %v968
        %v973 = vadd.f32 %v963, %v968
        %v974 = vpack.c.bf16 %v971, %v970
        %v975 = vpack.c.bf16 %v973, %v972
        %v976 = vld [vmem:[%s727] sm:$0xf]
        %v977 = vld [vmem:[%s727 + $0x4] sm:$0xf]
        %v978 = vld [vmem:[%s727 + $0x8] sm:$0xf]
        %v979 = vld [vmem:[%s727 + $0xc] sm:$0xf]
        %v980 = vld [vmem:[%s730] sm:$0x1]
        %v982 = vlaneseq
        %v983 = vshrl.u32 %v982, 7
        %v984 = vsub.s32 0, %v983
        %v985 = vrot.slane %v980, %v984
        %v991 = vunpack.c.l.b16 %v976
        %v992 = vunpack.c.l.b16 %v977
        %v993 = vunpack.c.l.b16 %v978
        %v994 = vunpack.c.l.b16 %v979
        %v995 = vpack.c.b16 %v992, %v991
        %v996 = vpack.c.b16 %v994, %v993
        %v1000 = vsel %vm900, %v974, 0
        %v1003 = vsel %vm900, %v975, 0
        %1005 = vmatprep.subr.bf16.mxu0 0
        %1006 = vmatpush1.bf16.msra.mxu0 %v995
        %1007 = vmatprep.subr.bf16.mxu0 0
        %1008 = vmatpush1.bf16.msra.mxu0 %v996
        %1009 = vmatprep.subr.bf16.mxu0 0
        %1010 = vmatpush1.bf16.msra.mxu0 0
        %1011 = vmatprep.subr.bf16.mxu0 0
        %1012 = vmatpush1.bf16.msra.mxu0 0
        %1013 = vmatprep.subr.bf16.mxu0 0
        %1014 = vmatpush1.bf16.msra.mxu0 0
        %1015 = vmatprep.subr.bf16.mxu0 0
        %1016 = vmatpush1.bf16.msra.mxu0 0
        %1017 = vmatprep.subr.bf16.mxu0 0
        %1018 = vmatpush1.bf16.msra.mxu0 0
        %1019 = vmatprep.subr.bf16.mxu0 0
        %1020 = vmatpush1.bf16.msra.mxu0 0
        %1021 = vmatprep.subr.bf16.mxu0 0
        %1022 = vmatpush1.bf16.msra.mxu0 0
        %1023 = vmatprep.subr.bf16.mxu0 0
        %1024 = vmatpush1.bf16.msra.mxu0 0
        %1025 = vmatprep.subr.bf16.mxu0 0
        %1026 = vmatpush1.bf16.msra.mxu0 0
        %1027 = vmatprep.subr.bf16.mxu0 0
        %1028 = vmatpush1.bf16.msra.mxu0 0
        %1029 = vmatprep.subr.bf16.mxu0 0
        %1030 = vmatpush1.bf16.msra.mxu0 0
        %1031 = vmatprep.subr.bf16.mxu0 0
        %1032 = vmatpush1.bf16.msra.mxu0 0
        %1033 = vmatprep.subr.bf16.mxu0 0
        %1034 = vmatpush1.bf16.msra.mxu0 0
        %1035 = vmatprep.subr.bf16.mxu0 0
        %1036 = vmatpush1.bf16.msra.mxu0 0
        %1037 = vmatprep.mubr.bf16.mxu0 0
        %1038 = vmatmul.mubr.bf16.gmra.mrb[0].mxu0 %v1000
        %v1039 = vpop.f32.mrb[0].mxu0
        %v1040 = vadd.f32 %v985, %v1039
        %v1041 = vpop.f32.mrb[0].mxu0
        %v1042 = vpop.f32.mrb[0].mxu0
        %v1043 = vadd.f32 %v985, %v1042
        %v1044 = vpop.f32.mrb[0].mxu0
        %1045 = vmatprep.mubr.bf16.mxu0 0
        %1046 = vmatmul.mubr.bf16.gmra.mrb[0].mxu0 %v1003
        %v1047 = vpop.f32.mrb[0].mxu0
        %v1048 = vadd.f32 %v985, %v1047
        %v1049 = vpop.f32.mrb[0].mxu0
        %v1050 = vpop.f32.mrb[0].mxu0
        %v1051 = vadd.f32 %v985, %v1050
        %v1052 = vpop.f32.mrb[0].mxu0
        %1053 = vdwg.mxu0
        %v1054 = vpack.c.bf16 %v1043, %v1040
        %v1055 = vpack.c.bf16 %v1051, %v1048
        %1057 = vrot.lane.b32.xlu0 %v1054, 96
        %v1058 = vpop.permute.xlu0 %1057
        %vm1059 = vcmask 64512
        %v1061 = vsel %vm1059, %v1054, 0
        %v1064 = vsel %vm1059, %v1058, 0
        %1066 = vmatprep.subr.bf16.mxu0 0
        %1067 = vmatpush1.bf16.xpose.msra.mxu0 %v1064
        %1068 = vmatprep.subr.bf16.mxu0 0
        %1069 = vmatpush1.bf16.xpose.msra.mxu0 0
        %1070 = vmatprep.subr.bf16.mxu0 0
        %1071 = vmatpush1.bf16.xpose.msra.mxu0 0
        %1072 = vmatprep.subr.bf16.mxu0 0
        %1073 = vmatpush1.bf16.xpose.msra.mxu0 0
        %1074 = vmatprep.subr.bf16.mxu0 0
        %1075 = vmatpush1.bf16.xpose.msra.mxu0 0
        %1076 = vmatprep.subr.bf16.mxu0 0
        %1077 = vmatpush1.bf16.xpose.msra.mxu0 0
        %1078 = vmatprep.subr.bf16.mxu0 0
        %1079 = vmatpush1.bf16.xpose.msra.mxu0 0
        %1080 = vmatprep.subr.bf16.mxu0 0
        %1081 = vmatpush1.bf16.xpose.msra.mxu0 0
        %1082 = vmatprep.subr.bf16.mxu0 0
        %1083 = vmatpush1.bf16.xpose.msra.mxu0 0
        %1084 = vmatprep.subr.bf16.mxu0 0
        %1085 = vmatpush1.bf16.xpose.msra.mxu0 0
        %1086 = vmatprep.subr.bf16.mxu0 0
        %1087 = vmatpush1.bf16.xpose.msra.mxu0 0
        %1088 = vmatprep.subr.bf16.mxu0 0
        %1089 = vmatpush1.bf16.xpose.msra.mxu0 0
        %1090 = vmatprep.subr.bf16.mxu0 0
        %1091 = vmatpush1.bf16.xpose.msra.mxu0 0
        %1092 = vmatprep.subr.bf16.mxu0 0
        %1093 = vmatpush1.bf16.xpose.msra.mxu0 0
        %1094 = vmatprep.subr.bf16.mxu0 0
        %1095 = vmatpush1.bf16.xpose.msra.mxu0 0
        %1096 = vmatprep.subr.bf16.mxu0 0
        %1097 = vmatpush1.bf16.xpose.msra.mxu0 0
        %1098 = vmatprep.mubr.bf16.mxu0 0
        %1099 = vmatmul.mubr.bf16.gmra.mrb[0].mxu0 %v1061
        %v1100 = vpop.f32.mrb[0].mxu0
        %v1101 = vadd.f32 0.0, %v1100
        %v1102 = vpop.f32.mrb[0].mxu0
        %v1103 = vpop.f32.mrb[0].mxu0
        %v1104 = vadd.f32 0.0, %v1103
        %v1105 = vpop.f32.mrb[0].mxu0
        %1106 = vdwg.mxu0
        %v1107 = vmul.f32 %v1101, 0.35355338
        %v1108 = vmul.f32 %v1104, 0.35355338
        %vm1109 = vcmask 130048
        %v1110 = vsel %vm1109, %v1107, -inf
        %1111 = vmax.xlane.f32.xlu0 %v1110
        %v1112 = vpop.xlane.xlu0 %1111
        %v1113 = vsel %vm1109, %v1108, -inf
        %1114 = vmax.xlane.f32.xlu0 %v1113
        %v1115 = vpop.xlane.xlu0 %1114
        %v1116 = vsub.f32 %v1107, %v1112
        %v1117 = vsub.f32 %v1108, %v1115
        %v1118 = vmul.f32 %v1116, 1.442695
        %v1119 = vpow.pop %v1118
        %v1120 = vmul.f32 %v1117, 1.442695
        %v1121 = vpow.pop %v1120
        %v1122 = vsel %vm1109, %v1119, 0.0
        %1123 = vadd.xlane.f32.xlu0 %v1122
        %v1124 = vpop.xlane.xlu0 %1123
        %v1125 = vsel %vm1109, %v1121, 0.0
        %1126 = vadd.xlane.f32.xlu0 %v1125
        %v1127 = vpop.xlane.xlu0 %1126
        %v1128 = vrcp.pop %v1124
        %v1129 = vrcp.pop %v1127
        %v1130 = vmul.f32 %v1119, %v1128
        %v1131 = vmul.f32 %v1121, %v1129
        %v1132 = vpack.c.bf16 %v1131, %v1130
        %1133 = vrot.lane.b32.xlu0 %v1054, 64
        %v1134 = vpop.permute.xlu0 %1133
        %v1137 = vsel %vm1109, %v1132, 0
        %1139 = vmatprep.subr.bf16.mxu0 0
        %1140 = vmatpush1.bf16.msra.mxu0 %v1134
        %1141 = vmatprep.subr.bf16.mxu0 0
        %1142 = vmatpush1.bf16.msra.mxu0 0
        %1143 = vmatprep.subr.bf16.mxu0 0
        %1144 = vmatpush1.bf16.msra.mxu0 0
        %1145 = vmatprep.subr.bf16.mxu0 0
        %1146 = vmatpush1.bf16.msra.mxu0 0
        %1147 = vmatprep.subr.bf16.mxu0 0
        %1148 = vmatpush1.bf16.msra.mxu0 0
        %1149 = vmatprep.subr.bf16.mxu0 0
        %1150 = vmatpush1.bf16.msra.mxu0 0
        %1151 = vmatprep.subr.bf16.mxu0 0
        %1152 = vmatpush1.bf16.msra.mxu0 0
        %1153 = vmatprep.subr.bf16.mxu0 0
        %1154 = vmatpush1.bf16.msra.mxu0 0
        %1155 = vmatprep.subr.bf16.mxu0 0
        %1156 = vmatpush1.bf16.msra.mxu0 0
        %1157 = vmatprep.subr.bf16.mxu0 0
        %1158 = vmatpush1.bf16.msra.mxu0 0
        %1159 = vmatprep.subr.bf16.mxu0 0
        %1160 = vmatpush1.bf16.msra.mxu0 0
        %1161 = vmatprep.subr.bf16.mxu0 0
        %1162 = vmatpush1.bf16.msra.mxu0 0
        %1163 = vmatprep.subr.bf16.mxu0 0
        %1164 = vmatpush1.bf16.msra.mxu0 0
        %1165 = vmatprep.subr.bf16.mxu0 0
        %1166 = vmatpush1.bf16.msra.mxu0 0
        %1167 = vmatprep.subr.bf16.mxu0 0
        %1168 = vmatpush1.bf16.msra.mxu0 0
        %1169 = vmatprep.subr.bf16.mxu0 0
        %1170 = vmatpush1.bf16.msra.mxu0 0
        %1171 = vmatprep.mubr.bf16.mxu0 0
        %1172 = vmatmul.mubr.bf16.gmra.mrb[0].mxu0 %v1137
        %v1173 = vpop.f32.mrb[0].mxu0
        %v1174 = vadd.f32 0.0, %v1173
        %v1175 = vpop.f32.mrb[0].mxu0
        %v1176 = vpop.f32.mrb[0].mxu0
        %v1177 = vadd.f32 0.0, %v1176
        %v1178 = vpop.f32.mrb[0].mxu0
        %1179 = vdwg.mxu0
        %1180 = vrot.lane.b32.xlu0 %v1054, 120
        %v1181 = vpop.permute.xlu0 %1180
        %1182 = vrot.lane.b32.xlu0 %v1054, 88
        %v1183 = vpop.permute.xlu0 %1182
        %v1185 = vsel %vm1059, %v1181, 0
        %v1188 = vsel %vm1059, %v1183, 0
        %1190 = vmatprep.subr.bf16.mxu0 0
        %1191 = vmatpush1.bf16.xpose.msra.mxu0 %v1188
        %1192 = vmatprep.subr.bf16.mxu0 0
        %1193 = vmatpush1.bf16.xpose.msra.mxu0 0
        %1194 = vmatprep.subr.bf16.mxu0 0
        %1195 = vmatpush1.bf16.xpose.msra.mxu0 0
        %1196 = vmatprep.subr.bf16.mxu0 0
        %1197 = vmatpush1.bf16.xpose.msra.mxu0 0
        %1198 = vmatprep.subr.bf16.mxu0 0
        %1199 = vmatpush1.bf16.xpose.msra.mxu0 0
        %1200 = vmatprep.subr.bf16.mxu0 0
        %1201 = vmatpush1.bf16.xpose.msra.mxu0 0
        %1202 = vmatprep.subr.bf16.mxu0 0
        %1203 = vmatpush1.bf16.xpose.msra.mxu0 0
        %1204 = vmatprep.subr.bf16.mxu0 0
        %1205 = vmatpush1.bf16.xpose.msra.mxu0 0
        %1206 = vmatprep.subr.bf16.mxu0 0
        %1207 = vmatpush1.bf16.xpose.msra.mxu0 0
        %1208 = vmatprep.subr.bf16.mxu0 0
        %1209 = vmatpush1.bf16.xpose.msra.mxu0 0
        %1210 = vmatprep.subr.bf16.mxu0 0
        %1211 = vmatpush1.bf16.xpose.msra.mxu0 0
        %1212 = vmatprep.subr.bf16.mxu0 0
        %1213 = vmatpush1.bf16.xpose.msra.mxu0 0
        %1214 = vmatprep.subr.bf16.mxu0 0
        %1215 = vmatpush1.bf16.xpose.msra.mxu0 0
        %1216 = vmatprep.subr.bf16.mxu0 0
        %1217 = vmatpush1.bf16.xpose.msra.mxu0 0
        %1218 = vmatprep.subr.bf16.mxu0 0
        %1219 = vmatpush1.bf16.xpose.msra.mxu0 0
        %1220 = vmatprep.subr.bf16.mxu0 0
        %1221 = vmatpush1.bf16.xpose.msra.mxu0 0
        %1222 = vmatprep.mubr.bf16.mxu0 0
        %1223 = vmatmul.mubr.bf16.gmra.mrb[0].mxu0 %v1185
        %v1224 = vpop.f32.mrb[0].mxu0
        %v1225 = vadd.f32 0.0, %v1224
        %v1226 = vpop.f32.mrb[0].mxu0
        %v1227 = vpop.f32.mrb[0].mxu0
        %v1228 = vadd.f32 0.0, %v1227
        %v1229 = vpop.f32.mrb[0].mxu0
        %1230 = vdwg.mxu0
        %v1231 = vmul.f32 %v1225, 0.35355338
        %v1232 = vmul.f32 %v1228, 0.35355338
        %v1233 = vsel %vm1109, %v1231, -inf
        %1234 = vmax.xlane.f32.xlu0 %v1233
        %v1235 = vpop.xlane.xlu0 %1234
        %v1236 = vsel %vm1109, %v1232, -inf
        %1237 = vmax.xlane.f32.xlu0 %v1236
        %v1238 = vpop.xlane.xlu0 %1237
        %v1239 = vsub.f32 %v1231, %v1235
        %v1240 = vsub.f32 %v1232, %v1238
        %v1241 = vmul.f32 %v1239, 1.442695
        %v1242 = vpow.pop %v1241
        %v1243 = vmul.f32 %v1240, 1.442695
        %v1244 = vpow.pop %v1243
        %v1245 = vsel %vm1109, %v1242, 0.0
        %1246 = vadd.xlane.f32.xlu0 %v1245
        %v1247 = vpop.xlane.xlu0 %1246
        %v1248 = vsel %vm1109, %v1244, 0.0
        %1249 = vadd.xlane.f32.xlu0 %v1248
        %v1250 = vpop.xlane.xlu0 %1249
        %v1251 = vrcp.pop %v1247
        %v1252 = vrcp.pop %v1250
        %v1253 = vmul.f32 %v1242, %v1251
        %v1254 = vmul.f32 %v1244, %v1252
        %v1255 = vpack.c.bf16 %v1254, %v1253
        %1256 = vrot.lane.b32.xlu0 %v1054, 56
        %v1257 = vpop.permute.xlu0 %1256
        %v1260 = vsel %vm1109, %v1255, 0
        %1262 = vmatprep.subr.bf16.mxu0 0
        %1263 = vmatpush1.bf16.msra.mxu0 %v1257
        %1264 = vmatprep.subr.bf16.mxu0 0
        %1265 = vmatpush1.bf16.msra.mxu0 0
        %1266 = vmatprep.subr.bf16.mxu0 0
        %1267 = vmatpush1.bf16.msra.mxu0 0
        %1268 = vmatprep.subr.bf16.mxu0 0
        %1269 = vmatpush1.bf16.msra.mxu0 0
        %1270 = vmatprep.subr.bf16.mxu0 0
        %1271 = vmatpush1.bf16.msra.mxu0 0
        %1272 = vmatprep.subr.bf16.mxu0 0
        %1273 = vmatpush1.bf16.msra.mxu0 0
        %1274 = vmatprep.subr.bf16.mxu0 0
        %1275 = vmatpush1.bf16.msra.mxu0 0
        %1276 = vmatprep.subr.bf16.mxu0 0
        %1277 = vmatpush1.bf16.msra.mxu0 0
        %1278 = vmatprep.subr.bf16.mxu0 0
        %1279 = vmatpush1.bf16.msra.mxu0 0
        %1280 = vmatprep.subr.bf16.mxu0 0
        %1281 = vmatpush1.bf16.msra.mxu0 0
        %1282 = vmatprep.subr.bf16.mxu0 0
        %1283 = vmatpush1.bf16.msra.mxu0 0
        %1284 = vmatprep.subr.bf16.mxu0 0
        %1285 = vmatpush1.bf16.msra.mxu0 0
        %1286 = vmatprep.subr.bf16.mxu0 0
        %1287 = vmatpush1.bf16.msra.mxu0 0
        %1288 = vmatprep.subr.bf16.mxu0 0
        %1289 = vmatpush1.bf16.msra.mxu0 0
        %1290 = vmatprep.subr.bf16.mxu0 0
        %1291 = vmatpush1.bf16.msra.mxu0 0
        %1292 = vmatprep.subr.bf16.mxu0 0
        %1293 = vmatpush1.bf16.msra.mxu0 0
        %1294 = vmatprep.mubr.bf16.mxu0 0
        %1295 = vmatmul.mubr.bf16.gmra.mrb[0].mxu0 %v1260
        %v1296 = vpop.f32.mrb[0].mxu0
        %v1297 = vadd.f32 0.0, %v1296
        %v1298 = vpop.f32.mrb[0].mxu0
        %v1299 = vpop.f32.mrb[0].mxu0
        %v1300 = vadd.f32 0.0, %v1299
        %v1301 = vpop.f32.mrb[0].mxu0
        %1302 = vdwg.mxu0
        %1303 = vrot.lane.b32.xlu0 %v1054, 112
        %v1304 = vpop.permute.xlu0 %1303
        %1305 = vrot.lane.b32.xlu0 %v1054, 80
        %v1306 = vpop.permute.xlu0 %1305
        %v1308 = vsel %vm1059, %v1304, 0
        %v1311 = vsel %vm1059, %v1306, 0
        %1313 = vmatprep.subr.bf16.mxu0 0
        %1314 = vmatpush1.bf16.xpose.msra.mxu0 %v1311
        %1315 = vmatprep.subr.bf16.mxu0 0
        %1316 = vmatpush1.bf16.xpose.msra.mxu0 0
        %1317 = vmatprep.subr.bf16.mxu0 0
        %1318 = vmatpush1.bf16.xpose.msra.mxu0 0
        %1319 = vmatprep.subr.bf16.mxu0 0
        %1320 = vmatpush1.bf16.xpose.msra.mxu0 0
        %1321 = vmatprep.subr.bf16.mxu0 0
        %1322 = vmatpush1.bf16.xpose.msra.mxu0 0
        %1323 = vmatprep.subr.bf16.mxu0 0
        %1324 = vmatpush1.bf16.xpose.msra.mxu0 0
        %1325 = vmatprep.subr.bf16.mxu0 0
        %1326 = vmatpush1.bf16.xpose.msra.mxu0 0
        %1327 = vmatprep.subr.bf16.mxu0 0
        %1328 = vmatpush1.bf16.xpose.msra.mxu0 0
        %1329 = vmatprep.subr.bf16.mxu0 0
        %1330 = vmatpush1.bf16.xpose.msra.mxu0 0
        %1331 = vmatprep.subr.bf16.mxu0 0
        %1332 = vmatpush1.bf16.xpose.msra.mxu0 0
        %1333 = vmatprep.subr.bf16.mxu0 0
        %1334 = vmatpush1.bf16.xpose.msra.mxu0 0
        %1335 = vmatprep.subr.bf16.mxu0 0
        %1336 = vmatpush1.bf16.xpose.msra.mxu0 0
        %1337 = vmatprep.subr.bf16.mxu0 0
        %1338 = vmatpush1.bf16.xpose.msra.mxu0 0
        %1339 = vmatprep.subr.bf16.mxu0 0
        %1340 = vmatpush1.bf16.xpose.msra.mxu0 0
        %1341 = vmatprep.subr.bf16.mxu0 0
        %1342 = vmatpush1.bf16.xpose.msra.mxu0 0
        %1343 = vmatprep.subr.bf16.mxu0 0
        %1344 = vmatpush1.bf16.xpose.msra.mxu0 0
        %1345 = vmatprep.mubr.bf16.mxu0 0
        %1346 = vmatmul.mubr.bf16.gmra.mrb[0].mxu0 %v1308
        %v1347 = vpop.f32.mrb[0].mxu0
        %v1348 = vadd.f32 0.0, %v1347
        %v1349 = vpop.f32.mrb[0].mxu0
        %v1350 = vpop.f32.mrb[0].mxu0
        %v1351 = vadd.f32 0.0, %v1350
        %v1352 = vpop.f32.mrb[0].mxu0
        %1353 = vdwg.mxu0
        %v1354 = vmul.f32 %v1348, 0.35355338
        %v1355 = vmul.f32 %v1351, 0.35355338
        %v1356 = vsel %vm1109, %v1354, -inf
        %1357 = vmax.xlane.f32.xlu0 %v1356
        %v1358 = vpop.xlane.xlu0 %1357
        %v1359 = vsel %vm1109, %v1355, -inf
        %1360 = vmax.xlane.f32.xlu0 %v1359
        %v1361 = vpop.xlane.xlu0 %1360
        %v1362 = vsub.f32 %v1354, %v1358
        %v1363 = vsub.f32 %v1355, %v1361
        %v1364 = vmul.f32 %v1362, 1.442695
        %v1365 = vpow.pop %v1364
        %v1366 = vmul.f32 %v1363, 1.442695
        %v1367 = vpow.pop %v1366
        %v1368 = vsel %vm1109, %v1365, 0.0
        %1369 = vadd.xlane.f32.xlu0 %v1368
        %v1370 = vpop.xlane.xlu0 %1369
        %v1371 = vsel %vm1109, %v1367, 0.0
        %1372 = vadd.xlane.f32.xlu0 %v1371
        %v1373 = vpop.xlane.xlu0 %1372
        %v1374 = vrcp.pop %v1370
        %v1375 = vrcp.pop %v1373
        %v1376 = vmul.f32 %v1365, %v1374
        %v1377 = vmul.f32 %v1367, %v1375
        %v1378 = vpack.c.bf16 %v1377, %v1376
        %1379 = vrot.lane.b32.xlu0 %v1054, 48
        %v1380 = vpop.permute.xlu0 %1379
        %v1383 = vsel %vm1109, %v1378, 0
        %1385 = vmatprep.subr.bf16.mxu0 0
        %1386 = vmatpush1.bf16.msra.mxu0 %v1380
        %1387 = vmatprep.subr.bf16.mxu0 0
        %1388 = vmatpush1.bf16.msra.mxu0 0
        %1389 = vmatprep.subr.bf16.mxu0 0
        %1390 = vmatpush1.bf16.msra.mxu0 0
        %1391 = vmatprep.subr.bf16.mxu0 0
        %1392 = vmatpush1.bf16.msra.mxu0 0
        %1393 = vmatprep.subr.bf16.mxu0 0
        %1394 = vmatpush1.bf16.msra.mxu0 0
        %1395 = vmatprep.subr.bf16.mxu0 0
        %1396 = vmatpush1.bf16.msra.mxu0 0
        %1397 = vmatprep.subr.bf16.mxu0 0
        %1398 = vmatpush1.bf16.msra.mxu0 0
        %1399 = vmatprep.subr.bf16.mxu0 0
        %1400 = vmatpush1.bf16.msra.mxu0 0
        %1401 = vmatprep.subr.bf16.mxu0 0
        %1402 = vmatpush1.bf16.msra.mxu0 0
        %1403 = vmatprep.subr.bf16.mxu0 0
        %1404 = vmatpush1.bf16.msra.mxu0 0
        %1405 = vmatprep.subr.bf16.mxu0 0
        %1406 = vmatpush1.bf16.msra.mxu0 0
        %1407 = vmatprep.subr.bf16.mxu0 0
        %1408 = vmatpush1.bf16.msra.mxu0 0
        %1409 = vmatprep.subr.bf16.mxu0 0
        %1410 = vmatpush1.bf16.msra.mxu0 0
        %1411 = vmatprep.subr.bf16.mxu0 0
        %1412 = vmatpush1.bf16.msra.mxu0 0
        %1413 = vmatprep.subr.bf16.mxu0 0
        %1414 = vmatpush1.bf16.msra.mxu0 0
        %1415 = vmatprep.subr.bf16.mxu0 0
        %1416 = vmatpush1.bf16.msra.mxu0 0
        %1417 = vmatprep.mubr.bf16.mxu0 0
        %1418 = vmatmul.mubr.bf16.gmra.mrb[0].mxu0 %v1383
        %v1419 = vpop.f32.mrb[0].mxu0
        %v1420 = vadd.f32 0.0, %v1419
        %v1421 = vpop.f32.mrb[0].mxu0
        %v1422 = vpop.f32.mrb[0].mxu0
        %v1423 = vadd.f32 0.0, %v1422
        %v1424 = vpop.f32.mrb[0].mxu0
        %1425 = vdwg.mxu0
        %1426 = vrot.lane.b32.xlu0 %v1054, 104
        %v1427 = vpop.permute.xlu0 %1426
        %1428 = vrot.lane.b32.xlu0 %v1054, 72
        %v1429 = vpop.permute.xlu0 %1428
        %v1431 = vsel %vm1059, %v1427, 0
        %v1434 = vsel %vm1059, %v1429, 0
        %1436 = vmatprep.subr.bf16.mxu0 0
        %1437 = vmatpush1.bf16.xpose.msra.mxu0 %v1434
        %1438 = vmatprep.subr.bf16.mxu0 0
        %1439 = vmatpush1.bf16.xpose.msra.mxu0 0
        %1440 = vmatprep.subr.bf16.mxu0 0
        %1441 = vmatpush1.bf16.xpose.msra.mxu0 0
        %1442 = vmatprep.subr.bf16.mxu0 0
        %1443 = vmatpush1.bf16.xpose.msra.mxu0 0
        %1444 = vmatprep.subr.bf16.mxu0 0
        %1445 = vmatpush1.bf16.xpose.msra.mxu0 0
        %1446 = vmatprep.subr.bf16.mxu0 0
        %1447 = vmatpush1.bf16.xpose.msra.mxu0 0
        %1448 = vmatprep.subr.bf16.mxu0 0
        %1449 = vmatpush1.bf16.xpose.msra.mxu0 0
        %1450 = vmatprep.subr.bf16.mxu0 0
        %1451 = vmatpush1.bf16.xpose.msra.mxu0 0
        %1452 = vmatprep.subr.bf16.mxu0 0
        %1453 = vmatpush1.bf16.xpose.msra.mxu0 0
        %1454 = vmatprep.subr.bf16.mxu0 0
        %1455 = vmatpush1.bf16.xpose.msra.mxu0 0
        %1456 = vmatprep.subr.bf16.mxu0 0
        %1457 = vmatpush1.bf16.xpose.msra.mxu0 0
        %1458 = vmatprep.subr.bf16.mxu0 0
        %1459 = vmatpush1.bf16.xpose.msra.mxu0 0
        %1460 = vmatprep.subr.bf16.mxu0 0
        %1461 = vmatpush1.bf16.xpose.msra.mxu0 0
        %1462 = vmatprep.subr.bf16.mxu0 0
        %1463 = vmatpush1.bf16.xpose.msra.mxu0 0
        %1464 = vmatprep.subr.bf16.mxu0 0
        %1465 = vmatpush1.bf16.xpose.msra.mxu0 0
        %1466 = vmatprep.subr.bf16.mxu0 0
        %1467 = vmatpush1.bf16.xpose.msra.mxu0 0
        %1468 = vmatprep.mubr.bf16.mxu0 0
        %1469 = vmatmul.mubr.bf16.gmra.mrb[0].mxu0 %v1431
        %v1470 = vpop.f32.mrb[0].mxu0
        %v1471 = vadd.f32 0.0, %v1470
        %v1472 = vpop.f32.mrb[0].mxu0
        %v1473 = vpop.f32.mrb[0].mxu0
        %v1474 = vadd.f32 0.0, %v1473
        %v1475 = vpop.f32.mrb[0].mxu0
        %1476 = vdwg.mxu0
        %v1477 = vmul.f32 %v1471, 0.35355338
        %v1478 = vmul.f32 %v1474, 0.35355338
        %v1479 = vsel %vm1109, %v1477, -inf
        %1480 = vmax.xlane.f32.xlu0 %v1479
        %v1481 = vpop.xlane.xlu0 %1480
        %v1482 = vsel %vm1109, %v1478, -inf
        %1483 = vmax.xlane.f32.xlu0 %v1482
        %v1484 = vpop.xlane.xlu0 %1483
        %v1485 = vsub.f32 %v1477, %v1481
        %v1486 = vsub.f32 %v1478, %v1484
        %v1487 = vmul.f32 %v1485, 1.442695
        %v1488 = vpow.pop %v1487
        %v1489 = vmul.f32 %v1486, 1.442695
        %v1490 = vpow.pop %v1489
        %v1491 = vsel %vm1109, %v1488, 0.0
        %1492 = vadd.xlane.f32.xlu0 %v1491
        %v1493 = vpop.xlane.xlu0 %1492
        %v1494 = vsel %vm1109, %v1490, 0.0
        %1495 = vadd.xlane.f32.xlu0 %v1494
        %v1496 = vpop.xlane.xlu0 %1495
        %v1497 = vrcp.pop %v1493
        %v1498 = vrcp.pop %v1496
        %v1499 = vmul.f32 %v1488, %v1497
        %v1500 = vmul.f32 %v1490, %v1498
        %v1501 = vpack.c.bf16 %v1500, %v1499
        %1502 = vrot.lane.b32.xlu0 %v1054, 40
        %v1503 = vpop.permute.xlu0 %1502
        %v1506 = vsel %vm1109, %v1501, 0
        %1508 = vmatprep.subr.bf16.mxu0 0
        %1509 = vmatpush1.bf16.msra.mxu0 %v1503
        %1510 = vmatprep.subr.bf16.mxu0 0
        %1511 = vmatpush1.bf16.msra.mxu0 0
        %1512 = vmatprep.subr.bf16.mxu0 0
        %1513 = vmatpush1.bf16.msra.mxu0 0
        %1514 = vmatprep.subr.bf16.mxu0 0
        %1515 = vmatpush1.bf16.msra.mxu0 0
        %1516 = vmatprep.subr.bf16.mxu0 0
        %1517 = vmatpush1.bf16.msra.mxu0 0
        %1518 = vmatprep.subr.bf16.mxu0 0
        %1519 = vmatpush1.bf16.msra.mxu0 0
        %1520 = vmatprep.subr.bf16.mxu0 0
        %1521 = vmatpush1.bf16.msra.mxu0 0
        %1522 = vmatprep.subr.bf16.mxu0 0
        %1523 = vmatpush1.bf16.msra.mxu0 0
        %1524 = vmatprep.subr.bf16.mxu0 0
        %1525 = vmatpush1.bf16.msra.mxu0 0
        %1526 = vmatprep.subr.bf16.mxu0 0
        %1527 = vmatpush1.bf16.msra.mxu0 0
        %1528 = vmatprep.subr.bf16.mxu0 0
        %1529 = vmatpush1.bf16.msra.mxu0 0
        %1530 = vmatprep.subr.bf16.mxu0 0
        %1531 = vmatpush1.bf16.msra.mxu0 0
        %1532 = vmatprep.subr.bf16.mxu0 0
        %1533 = vmatpush1.bf16.msra.mxu0 0
        %1534 = vmatprep.subr.bf16.mxu0 0
        %1535 = vmatpush1.bf16.msra.mxu0 0
        %1536 = vmatprep.subr.bf16.mxu0 0
        %1537 = vmatpush1.bf16.msra.mxu0 0
        %1538 = vmatprep.subr.bf16.mxu0 0
        %1539 = vmatpush1.bf16.msra.mxu0 0
        %1540 = vmatprep.mubr.bf16.mxu0 0
        %1541 = vmatmul.mubr.bf16.gmra.mrb[0].mxu0 %v1506
        %v1542 = vpop.f32.mrb[0].mxu0
        %v1543 = vadd.f32 0.0, %v1542
        %v1544 = vpop.f32.mrb[0].mxu0
        %v1545 = vpop.f32.mrb[0].mxu0
        %v1546 = vadd.f32 0.0, %v1545
        %v1547 = vpop.f32.mrb[0].mxu0
        %1548 = vdwg.mxu0
        %1551 = vrot.lane.b32.xlu0 %v1297, 8
        %v1552 = vpop.permute.xlu0 %1551
        %1553 = vrot.lane.b32.xlu0 %v1300, 8
        %v1554 = vpop.permute.xlu0 %1553
        %1559 = vrot.lane.b32.xlu0 %v1420, 16
        %v1560 = vpop.permute.xlu0 %1559
        %1561 = vrot.lane.b32.xlu0 %v1423, 16
        %v1562 = vpop.permute.xlu0 %1561
        %1567 = vrot.lane.b32.xlu0 %v1543, 24
        %v1568 = vpop.permute.xlu0 %1567
        %1569 = vrot.lane.b32.xlu0 %v1546, 24
        %v1570 = vpop.permute.xlu0 %1569
        %v1573 = vsel %vm1059, %v1174, %v1552
        %v1574 = vsel %vm1059, %v1177, %v1554
        %v1575 = vsel %vm1109, %v1573, %v1560
        %v1576 = vsel %vm1109, %v1574, %v1562
        %vm1577 = vcmask 195584
        %v1578 = vsel %vm1577, %v1575, %v1568
        %v1579 = vsel %vm1577, %v1576, %v1570
        %1581 = vrot.lane.b32.xlu0 %v1055, 96
        %v1582 = vpop.permute.xlu0 %1581
        %v1584 = vsel %vm1059, %v1055, 0
        %v1587 = vsel %vm1059, %v1582, 0
        %1589 = vmatprep.subr.bf16.mxu0 0
        %1590 = vmatpush1.bf16.xpose.msra.mxu0 %v1587
        %1591 = vmatprep.subr.bf16.mxu0 0
        %1592 = vmatpush1.bf16.xpose.msra.mxu0 0
        %1593 = vmatprep.subr.bf16.mxu0 0
        %1594 = vmatpush1.bf16.xpose.msra.mxu0 0
        %1595 = vmatprep.subr.bf16.mxu0 0
        %1596 = vmatpush1.bf16.xpose.msra.mxu0 0
        %1597 = vmatprep.subr.bf16.mxu0 0
        %1598 = vmatpush1.bf16.xpose.msra.mxu0 0
        %1599 = vmatprep.subr.bf16.mxu0 0
        %1600 = vmatpush1.bf16.xpose.msra.mxu0 0
        %1601 = vmatprep.subr.bf16.mxu0 0
        %1602 = vmatpush1.bf16.xpose.msra.mxu0 0
        %1603 = vmatprep.subr.bf16.mxu0 0
        %1604 = vmatpush1.bf16.xpose.msra.mxu0 0
        %1605 = vmatprep.subr.bf16.mxu0 0
        %1606 = vmatpush1.bf16.xpose.msra.mxu0 0
        %1607 = vmatprep.subr.bf16.mxu0 0
        %1608 = vmatpush1.bf16.xpose.msra.mxu0 0
        %1609 = vmatprep.subr.bf16.mxu0 0
        %1610 = vmatpush1.bf16.xpose.msra.mxu0 0
        %1611 = vmatprep.subr.bf16.mxu0 0
        %1612 = vmatpush1.bf16.xpose.msra.mxu0 0
        %1613 = vmatprep.subr.bf16.mxu0 0
        %1614 = vmatpush1.bf16.xpose.msra.mxu0 0
        %1615 = vmatprep.subr.bf16.mxu0 0
        %1616 = vmatpush1.bf16.xpose.msra.mxu0 0
        %1617 = vmatprep.subr.bf16.mxu0 0
        %1618 = vmatpush1.bf16.xpose.msra.mxu0 0
        %1619 = vmatprep.subr.bf16.mxu0 0
        %1620 = vmatpush1.bf16.xpose.msra.mxu0 0
        %1621 = vmatprep.mubr.bf16.mxu0 0
        %1622 = vmatmul.mubr.bf16.gmra.mrb[0].mxu0 %v1584
        %v1623 = vpop.f32.mrb[0].mxu0
        %v1624 = vadd.f32 0.0, %v1623
        %v1625 = vpop.f32.mrb[0].mxu0
        %v1626 = vpop.f32.mrb[0].mxu0
        %v1627 = vadd.f32 0.0, %v1626
        %v1628 = vpop.f32.mrb[0].mxu0
        %1629 = vdwg.mxu0
        %v1630 = vmul.f32 %v1624, 0.35355338
        %v1631 = vmul.f32 %v1627, 0.35355338
        %v1632 = vsel %vm1109, %v1630, -inf
        %1633 = vmax.xlane.f32.xlu0 %v1632
        %v1634 = vpop.xlane.xlu0 %1633
        %v1635 = vsel %vm1109, %v1631, -inf
        %1636 = vmax.xlane.f32.xlu0 %v1635
        %v1637 = vpop.xlane.xlu0 %1636
        %v1638 = vsub.f32 %v1630, %v1634
        %v1639 = vsub.f32 %v1631, %v1637
        %v1640 = vmul.f32 %v1638, 1.442695
        %v1641 = vpow.pop %v1640
        %v1642 = vmul.f32 %v1639, 1.442695
        %v1643 = vpow.pop %v1642
        %v1644 = vsel %vm1109, %v1641, 0.0
        %1645 = vadd.xlane.f32.xlu0 %v1644
        %v1646 = vpop.xlane.xlu0 %1645
        %v1647 = vsel %vm1109, %v1643, 0.0
        %1648 = vadd.xlane.f32.xlu0 %v1647
        %v1649 = vpop.xlane.xlu0 %1648
        %v1650 = vrcp.pop %v1646
        %v1651 = vrcp.pop %v1649
        %v1652 = vmul.f32 %v1641, %v1650
        %v1653 = vmul.f32 %v1643, %v1651
        %v1654 = vpack.c.bf16 %v1653, %v1652
        %1655 = vrot.lane.b32.xlu0 %v1055, 64
        %v1656 = vpop.permute.xlu0 %1655
        %v1659 = vsel %vm1109, %v1654, 0
        %1661 = vmatprep.subr.bf16.mxu0 0
        %1662 = vmatpush1.bf16.msra.mxu0 %v1656
        %1663 = vmatprep.subr.bf16.mxu0 0
        %1664 = vmatpush1.bf16.msra.mxu0 0
        %1665 = vmatprep.subr.bf16.mxu0 0
        %1666 = vmatpush1.bf16.msra.mxu0 0
        %1667 = vmatprep.subr.bf16.mxu0 0
        %1668 = vmatpush1.bf16.msra.mxu0 0
        %1669 = vmatprep.subr.bf16.mxu0 0
        %1670 = vmatpush1.bf16.msra.mxu0 0
        %1671 = vmatprep.subr.bf16.mxu0 0
        %1672 = vmatpush1.bf16.msra.mxu0 0
        %1673 = vmatprep.subr.bf16.mxu0 0
        %1674 = vmatpush1.bf16.msra.mxu0 0
        %1675 = vmatprep.subr.bf16.mxu0 0
        %1676 = vmatpush1.bf16.msra.mxu0 0
        %1677 = vmatprep.subr.bf16.mxu0 0
        %1678 = vmatpush1.bf16.msra.mxu0 0
        %1679 = vmatprep.subr.bf16.mxu0 0
        %1680 = vmatpush1.bf16.msra.mxu0 0
        %1681 = vmatprep.subr.bf16.mxu0 0
        %1682 = vmatpush1.bf16.msra.mxu0 0
        %1683 = vmatprep.subr.bf16.mxu0 0
        %1684 = vmatpush1.bf16.msra.mxu0 0
        %1685 = vmatprep.subr.bf16.mxu0 0
        %1686 = vmatpush1.bf16.msra.mxu0 0
        %1687 = vmatprep.subr.bf16.mxu0 0
        %1688 = vmatpush1.bf16.msra.mxu0 0
        %1689 = vmatprep.subr.bf16.mxu0 0
        %1690 = vmatpush1.bf16.msra.mxu0 0
        %1691 = vmatprep.subr.bf16.mxu0 0
        %1692 = vmatpush1.bf16.msra.mxu0 0
        %1693 = vmatprep.mubr.bf16.mxu0 0
        %1694 = vmatmul.mubr.bf16.gmra.mrb[0].mxu0 %v1659
        %v1695 = vpop.f32.mrb[0].mxu0
        %v1696 = vadd.f32 0.0, %v1695
        %v1697 = vpop.f32.mrb[0].mxu0
        %v1698 = vpop.f32.mrb[0].mxu0
        %v1699 = vadd.f32 0.0, %v1698
        %v1700 = vpop.f32.mrb[0].mxu0
        %1701 = vdwg.mxu0
        %1702 = vrot.lane.b32.xlu0 %v1055, 120
        %v1703 = vpop.permute.xlu0 %1702
        %1704 = vrot.lane.b32.xlu0 %v1055, 88
        %v1705 = vpop.permute.xlu0 %1704
        %v1707 = vsel %vm1059, %v1703, 0
        %v1710 = vsel %vm1059, %v1705, 0
        %1712 = vmatprep.subr.bf16.mxu0 0
        %1713 = vmatpush1.bf16.xpose.msra.mxu0 %v1710
        %1714 = vmatprep.subr.bf16.mxu0 0
        %1715 = vmatpush1.bf16.xpose.msra.mxu0 0
        %1716 = vmatprep.subr.bf16.mxu0 0
        %1717 = vmatpush1.bf16.xpose.msra.mxu0 0
        %1718 = vmatprep.subr.bf16.mxu0 0
        %1719 = vmatpush1.bf16.xpose.msra.mxu0 0
        %1720 = vmatprep.subr.bf16.mxu0 0
        %1721 = vmatpush1.bf16.xpose.msra.mxu0 0
        %1722 = vmatprep.subr.bf16.mxu0 0
        %1723 = vmatpush1.bf16.xpose.msra.mxu0 0
        %1724 = vmatprep.subr.bf16.mxu0 0
        %1725 = vmatpush1.bf16.xpose.msra.mxu0 0
        %1726 = vmatprep.subr.bf16.mxu0 0
        %1727 = vmatpush1.bf16.xpose.msra.mxu0 0
        %1728 = vmatprep.subr.bf16.mxu0 0
        %1729 = vmatpush1.bf16.xpose.msra.mxu0 0
        %1730 = vmatprep.subr.bf16.mxu0 0
        %1731 = vmatpush1.bf16.xpose.msra.mxu0 0
        %1732 = vmatprep.subr.bf16.mxu0 0
        %1733 = vmatpush1.bf16.xpose.msra.mxu0 0
        %1734 = vmatprep.subr.bf16.mxu0 0
        %1735 = vmatpush1.bf16.xpose.msra.mxu0 0
        %1736 = vmatprep.subr.bf16.mxu0 0
        %1737 = vmatpush1.bf16.xpose.msra.mxu0 0
        %1738 = vmatprep.subr.bf16.mxu0 0
        %1739 = vmatpush1.bf16.xpose.msra.mxu0 0
        %1740 = vmatprep.subr.bf16.mxu0 0
        %1741 = vmatpush1.bf16.xpose.msra.mxu0 0
        %1742 = vmatprep.subr.bf16.mxu0 0
        %1743 = vmatpush1.bf16.xpose.msra.mxu0 0
        %1744 = vmatprep.mubr.bf16.mxu0 0
        %1745 = vmatmul.mubr.bf16.gmra.mrb[0].mxu0 %v1707
        %v1746 = vpop.f32.mrb[0].mxu0
        %v1747 = vadd.f32 0.0, %v1746
        %v1748 = vpop.f32.mrb[0].mxu0
        %v1749 = vpop.f32.mrb[0].mxu0
        %v1750 = vadd.f32 0.0, %v1749
        %v1751 = vpop.f32.mrb[0].mxu0
        %1752 = vdwg.mxu0
        %v1753 = vmul.f32 %v1747, 0.35355338
        %v1754 = vmul.f32 %v1750, 0.35355338
        %v1755 = vsel %vm1109, %v1753, -inf
        %1756 = vmax.xlane.f32.xlu0 %v1755
        %v1757 = vpop.xlane.xlu0 %1756
        %v1758 = vsel %vm1109, %v1754, -inf
        %1759 = vmax.xlane.f32.xlu0 %v1758
        %v1760 = vpop.xlane.xlu0 %1759
        %v1761 = vsub.f32 %v1753, %v1757
        %v1762 = vsub.f32 %v1754, %v1760
        %v1763 = vmul.f32 %v1761, 1.442695
        %v1764 = vpow.pop %v1763
        %v1765 = vmul.f32 %v1762, 1.442695
        %v1766 = vpow.pop %v1765
        %v1767 = vsel %vm1109, %v1764, 0.0
        %1768 = vadd.xlane.f32.xlu0 %v1767
        %v1769 = vpop.xlane.xlu0 %1768
        %v1770 = vsel %vm1109, %v1766, 0.0
        %1771 = vadd.xlane.f32.xlu0 %v1770
        %v1772 = vpop.xlane.xlu0 %1771
        %v1773 = vrcp.pop %v1769
        %v1774 = vrcp.pop %v1772
        %v1775 = vmul.f32 %v1764, %v1773
        %v1776 = vmul.f32 %v1766, %v1774
        %v1777 = vpack.c.bf16 %v1776, %v1775
        %1778 = vrot.lane.b32.xlu0 %v1055, 56
        %v1779 = vpop.permute.xlu0 %1778
        %v1782 = vsel %vm1109, %v1777, 0
        %1784 = vmatprep.subr.bf16.mxu0 0
        %1785 = vmatpush1.bf16.msra.mxu0 %v1779
        %1786 = vmatprep.subr.bf16.mxu0 0
        %1787 = vmatpush1.bf16.msra.mxu0 0
        %1788 = vmatprep.subr.bf16.mxu0 0
        %1789 = vmatpush1.bf16.msra.mxu0 0
        %1790 = vmatprep.subr.bf16.mxu0 0
        %1791 = vmatpush1.bf16.msra.mxu0 0
        %1792 = vmatprep.subr.bf16.mxu0 0
        %1793 = vmatpush1.bf16.msra.mxu0 0
        %1794 = vmatprep.subr.bf16.mxu0 0
        %1795 = vmatpush1.bf16.msra.mxu0 0
        %1796 = vmatprep.subr.bf16.mxu0 0
        %1797 = vmatpush1.bf16.msra.mxu0 0
        %1798 = vmatprep.subr.bf16.mxu0 0
        %1799 = vmatpush1.bf16.msra.mxu0 0
        %1800 = vmatprep.subr.bf16.mxu0 0
        %1801 = vmatpush1.bf16.msra.mxu0 0
        %1802 = vmatprep.subr.bf16.mxu0 0
        %1803 = vmatpush1.bf16.msra.mxu0 0
        %1804 = vmatprep.subr.bf16.mxu0 0
        %1805 = vmatpush1.bf16.msra.mxu0 0
        %1806 = vmatprep.subr.bf16.mxu0 0
        %1807 = vmatpush1.bf16.msra.mxu0 0
        %1808 = vmatprep.subr.bf16.mxu0 0
        %1809 = vmatpush1.bf16.msra.mxu0 0
        %1810 = vmatprep.subr.bf16.mxu0 0
        %1811 = vmatpush1.bf16.msra.mxu0 0
        %1812 = vmatprep.subr.bf16.mxu0 0
        %1813 = vmatpush1.bf16.msra.mxu0 0
        %1814 = vmatprep.subr.bf16.mxu0 0
        %1815 = vmatpush1.bf16.msra.mxu0 0
        %1816 = vmatprep.mubr.bf16.mxu0 0
        %1817 = vmatmul.mubr.bf16.gmra.mrb[0].mxu0 %v1782
        %v1818 = vpop.f32.mrb[0].mxu0
        %v1819 = vadd.f32 0.0, %v1818
        %v1820 = vpop.f32.mrb[0].mxu0
        %v1821 = vpop.f32.mrb[0].mxu0
        %v1822 = vadd.f32 0.0, %v1821
        %v1823 = vpop.f32.mrb[0].mxu0
        %1824 = vdwg.mxu0
        %1825 = vrot.lane.b32.xlu0 %v1055, 112
        %v1826 = vpop.permute.xlu0 %1825
        %1827 = vrot.lane.b32.xlu0 %v1055, 80
        %v1828 = vpop.permute.xlu0 %1827
        %v1830 = vsel %vm1059, %v1826, 0
        %v1833 = vsel %vm1059, %v1828, 0
        %1835 = vmatprep.subr.bf16.mxu0 0
        %1836 = vmatpush1.bf16.xpose.msra.mxu0 %v1833
        %1837 = vmatprep.subr.bf16.mxu0 0
        %1838 = vmatpush1.bf16.xpose.msra.mxu0 0
        %1839 = vmatprep.subr.bf16.mxu0 0
        %1840 = vmatpush1.bf16.xpose.msra.mxu0 0
        %1841 = vmatprep.subr.bf16.mxu0 0
        %1842 = vmatpush1.bf16.xpose.msra.mxu0 0
        %1843 = vmatprep.subr.bf16.mxu0 0
        %1844 = vmatpush1.bf16.xpose.msra.mxu0 0
        %1845 = vmatprep.subr.bf16.mxu0 0
        %1846 = vmatpush1.bf16.xpose.msra.mxu0 0
        %1847 = vmatprep.subr.bf16.mxu0 0
        %1848 = vmatpush1.bf16.xpose.msra.mxu0 0
        %1849 = vmatprep.subr.bf16.mxu0 0
        %1850 = vmatpush1.bf16.xpose.msra.mxu0 0
        %1851 = vmatprep.subr.bf16.mxu0 0
        %1852 = vmatpush1.bf16.xpose.msra.mxu0 0
        %1853 = vmatprep.subr.bf16.mxu0 0
        %1854 = vmatpush1.bf16.xpose.msra.mxu0 0
        %1855 = vmatprep.subr.bf16.mxu0 0
        %1856 = vmatpush1.bf16.xpose.msra.mxu0 0
        %1857 = vmatprep.subr.bf16.mxu0 0
        %1858 = vmatpush1.bf16.xpose.msra.mxu0 0
        %1859 = vmatprep.subr.bf16.mxu0 0
        %1860 = vmatpush1.bf16.xpose.msra.mxu0 0
        %1861 = vmatprep.subr.bf16.mxu0 0
        %1862 = vmatpush1.bf16.xpose.msra.mxu0 0
        %1863 = vmatprep.subr.bf16.mxu0 0
        %1864 = vmatpush1.bf16.xpose.msra.mxu0 0
        %1865 = vmatprep.subr.bf16.mxu0 0
        %1866 = vmatpush1.bf16.xpose.msra.mxu0 0
        %1867 = vmatprep.mubr.bf16.mxu0 0
        %1868 = vmatmul.mubr.bf16.gmra.mrb[0].mxu0 %v1830
        %v1869 = vpop.f32.mrb[0].mxu0
        %v1870 = vadd.f32 0.0, %v1869
        %v1871 = vpop.f32.mrb[0].mxu0
        %v1872 = vpop.f32.mrb[0].mxu0
        %v1873 = vadd.f32 0.0, %v1872
        %v1874 = vpop.f32.mrb[0].mxu0
        %1875 = vdwg.mxu0
        %v1876 = vmul.f32 %v1870, 0.35355338
        %v1877 = vmul.f32 %v1873, 0.35355338
        %v1878 = vsel %vm1109, %v1876, -inf
        %1879 = vmax.xlane.f32.xlu0 %v1878
        %v1880 = vpop.xlane.xlu0 %1879
        %v1881 = vsel %vm1109, %v1877, -inf
        %1882 = vmax.xlane.f32.xlu0 %v1881
        %v1883 = vpop.xlane.xlu0 %1882
        %v1884 = vsub.f32 %v1876, %v1880
        %v1885 = vsub.f32 %v1877, %v1883
        %v1886 = vmul.f32 %v1884, 1.442695
        %v1887 = vpow.pop %v1886
        %v1888 = vmul.f32 %v1885, 1.442695
        %v1889 = vpow.pop %v1888
        %v1890 = vsel %vm1109, %v1887, 0.0
        %1891 = vadd.xlane.f32.xlu0 %v1890
        %v1892 = vpop.xlane.xlu0 %1891
        %v1893 = vsel %vm1109, %v1889, 0.0
        %1894 = vadd.xlane.f32.xlu0 %v1893
        %v1895 = vpop.xlane.xlu0 %1894
        %v1896 = vrcp.pop %v1892
        %v1897 = vrcp.pop %v1895
        %v1898 = vmul.f32 %v1887, %v1896
        %v1899 = vmul.f32 %v1889, %v1897
        %v1900 = vpack.c.bf16 %v1899, %v1898
        %1901 = vrot.lane.b32.xlu0 %v1055, 48
        %v1902 = vpop.permute.xlu0 %1901
        %v1905 = vsel %vm1109, %v1900, 0
        %1907 = vmatprep.subr.bf16.mxu0 0
        %1908 = vmatpush1.bf16.msra.mxu0 %v1902
        %1909 = vmatprep.subr.bf16.mxu0 0
        %1910 = vmatpush1.bf16.msra.mxu0 0
        %1911 = vmatprep.subr.bf16.mxu0 0
        %1912 = vmatpush1.bf16.msra.mxu0 0
        %1913 = vmatprep.subr.bf16.mxu0 0
        %1914 = vmatpush1.bf16.msra.mxu0 0
        %1915 = vmatprep.subr.bf16.mxu0 0
        %1916 = vmatpush1.bf16.msra.mxu0 0
        %1917 = vmatprep.subr.bf16.mxu0 0
        %1918 = vmatpush1.bf16.msra.mxu0 0
        %1919 = vmatprep.subr.bf16.mxu0 0
        %1920 = vmatpush1.bf16.msra.mxu0 0
        %1921 = vmatprep.subr.bf16.mxu0 0
        %1922 = vmatpush1.bf16.msra.mxu0 0
        %1923 = vmatprep.subr.bf16.mxu0 0
        %1924 = vmatpush1.bf16.msra.mxu0 0
        %1925 = vmatprep.subr.bf16.mxu0 0
        %1926 = vmatpush1.bf16.msra.mxu0 0
        %1927 = vmatprep.subr.bf16.mxu0 0
        %1928 = vmatpush1.bf16.msra.mxu0 0
        %1929 = vmatprep.subr.bf16.mxu0 0
        %1930 = vmatpush1.bf16.msra.mxu0 0
        %1931 = vmatprep.subr.bf16.mxu0 0
        %1932 = vmatpush1.bf16.msra.mxu0 0
        %1933 = vmatprep.subr.bf16.mxu0 0
        %1934 = vmatpush1.bf16.msra.mxu0 0
        %1935 = vmatprep.subr.bf16.mxu0 0
        %1936 = vmatpush1.bf16.msra.mxu0 0
        %1937 = vmatprep.subr.bf16.mxu0 0
        %1938 = vmatpush1.bf16.msra.mxu0 0
        %1939 = vmatprep.mubr.bf16.mxu0 0
        %1940 = vmatmul.mubr.bf16.gmra.mrb[0].mxu0 %v1905
        %v1941 = vpop.f32.mrb[0].mxu0
        %v1942 = vadd.f32 0.0, %v1941
        %v1943 = vpop.f32.mrb[0].mxu0
        %v1944 = vpop.f32.mrb[0].mxu0
        %v1945 = vadd.f32 0.0, %v1944
        %v1946 = vpop.f32.mrb[0].mxu0
        %1947 = vdwg.mxu0
        %1948 = vrot.lane.b32.xlu0 %v1055, 104
        %v1949 = vpop.permute.xlu0 %1948
        %1950 = vrot.lane.b32.xlu0 %v1055, 72
        %v1951 = vpop.permute.xlu0 %1950
        %v1953 = vsel %vm1059, %v1949, 0
        %v1956 = vsel %vm1059, %v1951, 0
        %1958 = vmatprep.subr.bf16.mxu0 0
        %1959 = vmatpush1.bf16.xpose.msra.mxu0 %v1956
        %1960 = vmatprep.subr.bf16.mxu0 0
        %1961 = vmatpush1.bf16.xpose.msra.mxu0 0
        %1962 = vmatprep.subr.bf16.mxu0 0
        %1963 = vmatpush1.bf16.xpose.msra.mxu0 0
        %1964 = vmatprep.subr.bf16.mxu0 0
        %1965 = vmatpush1.bf16.xpose.msra.mxu0 0
        %1966 = vmatprep.subr.bf16.mxu0 0
        %1967 = vmatpush1.bf16.xpose.msra.mxu0 0
        %1968 = vmatprep.subr.bf16.mxu0 0
        %1969 = vmatpush1.bf16.xpose.msra.mxu0 0
        %1970 = vmatprep.subr.bf16.mxu0 0
        %1971 = vmatpush1.bf16.xpose.msra.mxu0 0
        %1972 = vmatprep.subr.bf16.mxu0 0
        %1973 = vmatpush1.bf16.xpose.msra.mxu0 0
        %1974 = vmatprep.subr.bf16.mxu0 0
        %1975 = vmatpush1.bf16.xpose.msra.mxu0 0
        %1976 = vmatprep.subr.bf16.mxu0 0
        %1977 = vmatpush1.bf16.xpose.msra.mxu0 0
        %1978 = vmatprep.subr.bf16.mxu0 0
        %1979 = vmatpush1.bf16.xpose.msra.mxu0 0
        %1980 = vmatprep.subr.bf16.mxu0 0
        %1981 = vmatpush1.bf16.xpose.msra.mxu0 0
        %1982 = vmatprep.subr.bf16.mxu0 0
        %1983 = vmatpush1.bf16.xpose.msra.mxu0 0
        %1984 = vmatprep.subr.bf16.mxu0 0
        %1985 = vmatpush1.bf16.xpose.msra.mxu0 0
        %1986 = vmatprep.subr.bf16.mxu0 0
        %1987 = vmatpush1.bf16.xpose.msra.mxu0 0
        %1988 = vmatprep.subr.bf16.mxu0 0
        %1989 = vmatpush1.bf16.xpose.msra.mxu0 0
        %1990 = vmatprep.mubr.bf16.mxu0 0
        %1991 = vmatmul.mubr.bf16.gmra.mrb[0].mxu0 %v1953
        %v1992 = vpop.f32.mrb[0].mxu0
        %v1993 = vadd.f32 0.0, %v1992
        %v1994 = vpop.f32.mrb[0].mxu0
        %v1995 = vpop.f32.mrb[0].mxu0
        %v1996 = vadd.f32 0.0, %v1995
        %v1997 = vpop.f32.mrb[0].mxu0
        %1998 = vdwg.mxu0
        %v1999 = vmul.f32 %v1993, 0.35355338
        %v2000 = vmul.f32 %v1996, 0.35355338
        %v2001 = vsel %vm1109, %v1999, -inf
        %2002 = vmax.xlane.f32.xlu0 %v2001
        %v2003 = vpop.xlane.xlu0 %2002
        %v2004 = vsel %vm1109, %v2000, -inf
        %2005 = vmax.xlane.f32.xlu0 %v2004
        %v2006 = vpop.xlane.xlu0 %2005
        %v2007 = vsub.f32 %v1999, %v2003
        %v2008 = vsub.f32 %v2000, %v2006
        %v2009 = vmul.f32 %v2007, 1.442695
        %v2010 = vpow.pop %v2009
        %v2011 = vmul.f32 %v2008, 1.442695
        %v2012 = vpow.pop %v2011
        %v2013 = vsel %vm1109, %v2010, 0.0
        %2014 = vadd.xlane.f32.xlu0 %v2013
        %v2015 = vpop.xlane.xlu0 %2014
        %v2016 = vsel %vm1109, %v2012, 0.0
        %2017 = vadd.xlane.f32.xlu0 %v2016
        %v2018 = vpop.xlane.xlu0 %2017
        %v2019 = vrcp.pop %v2015
        %v2020 = vrcp.pop %v2018
        %v2021 = vmul.f32 %v2010, %v2019
        %v2022 = vmul.f32 %v2012, %v2020
        %v2023 = vpack.c.bf16 %v2022, %v2021
        %2024 = vrot.lane.b32.xlu0 %v1055, 40
        %v2025 = vpop.permute.xlu0 %2024
        %v2028 = vsel %vm1109, %v2023, 0
        %2030 = vmatprep.subr.bf16.mxu0 0
        %2031 = vmatpush1.bf16.msra.mxu0 %v2025
        %2032 = vmatprep.subr.bf16.mxu0 0
        %2033 = vmatpush1.bf16.msra.mxu0 0
        %2034 = vmatprep.subr.bf16.mxu0 0
        %2035 = vmatpush1.bf16.msra.mxu0 0
        %2036 = vmatprep.subr.bf16.mxu0 0
        %2037 = vmatpush1.bf16.msra.mxu0 0
        %2038 = vmatprep.subr.bf16.mxu0 0
        %2039 = vmatpush1.bf16.msra.mxu0 0
        %2040 = vmatprep.subr.bf16.mxu0 0
        %2041 = vmatpush1.bf16.msra.mxu0 0
        %2042 = vmatprep.subr.bf16.mxu0 0
        %2043 = vmatpush1.bf16.msra.mxu0 0
        %2044 = vmatprep.subr.bf16.mxu0 0
        %2045 = vmatpush1.bf16.msra.mxu0 0
        %2046 = vmatprep.subr.bf16.mxu0 0
        %2047 = vmatpush1.bf16.msra.mxu0 0
        %2048 = vmatprep.subr.bf16.mxu0 0
        %2049 = vmatpush1.bf16.msra.mxu0 0
        %2050 = vmatprep.subr.bf16.mxu0 0
        %2051 = vmatpush1.bf16.msra.mxu0 0
        %2052 = vmatprep.subr.bf16.mxu0 0
        %2053 = vmatpush1.bf16.msra.mxu0 0
        %2054 = vmatprep.subr.bf16.mxu0 0
        %2055 = vmatpush1.bf16.msra.mxu0 0
        %2056 = vmatprep.subr.bf16.mxu0 0
        %2057 = vmatpush1.bf16.msra.mxu0 0
        %2058 = vmatprep.subr.bf16.mxu0 0
        %2059 = vmatpush1.bf16.msra.mxu0 0
        %2060 = vmatprep.subr.bf16.mxu0 0
        %2061 = vmatpush1.bf16.msra.mxu0 0
        %2062 = vmatprep.mubr.bf16.mxu0 0
        %2063 = vmatmul.mubr.bf16.gmra.mrb[0].mxu0 %v2028
        %v2064 = vpop.f32.mrb[0].mxu0
        %v2065 = vadd.f32 0.0, %v2064
        %v2066 = vpop.f32.mrb[0].mxu0
        %v2067 = vpop.f32.mrb[0].mxu0
        %v2068 = vadd.f32 0.0, %v2067
        %v2069 = vpop.f32.mrb[0].mxu0
        %2070 = vdwg.mxu0
        %2073 = vrot.lane.b32.xlu0 %v1819, 8
        %v2074 = vpop.permute.xlu0 %2073
        %2075 = vrot.lane.b32.xlu0 %v1822, 8
        %v2076 = vpop.permute.xlu0 %2075
        %2081 = vrot.lane.b32.xlu0 %v1942, 16
        %v2082 = vpop.permute.xlu0 %2081
        %2083 = vrot.lane.b32.xlu0 %v1945, 16
        %v2084 = vpop.permute.xlu0 %2083
        %2089 = vrot.lane.b32.xlu0 %v2065, 24
        %v2090 = vpop.permute.xlu0 %2089
        %2091 = vrot.lane.b32.xlu0 %v2068, 24
        %v2092 = vpop.permute.xlu0 %2091
        %v2095 = vsel %vm1059, %v1696, %v2074
        %v2096 = vsel %vm1059, %v1699, %v2076
        %v2097 = vsel %vm1109, %v2095, %v2082
        %v2098 = vsel %vm1109, %v2096, %v2084
        %v2099 = vsel %vm1577, %v2097, %v2090
        %v2100 = vsel %vm1577, %v2098, %v2092
        %v2101 = vpack.c.bf16 %v1579, %v1578
        %v2102 = vpack.c.bf16 %v2100, %v2099
        %v2103 = vld [vmem:[%s735] sm:$0xf]
        %v2104 = vld [vmem:[%s735 + $0x4] sm:$0xf]
        %v2105 = vld [vmem:[%s735 + $0x8] sm:$0xf]
        %v2106 = vld [vmem:[%s735 + $0xc] sm:$0xf]
        %v2111 = vunpack.c.l.b16 %v2103
        %v2112 = vunpack.c.l.b16 %v2104
        %v2113 = vunpack.c.l.b16 %v2105
        %v2114 = vunpack.c.l.b16 %v2106
        %v2115 = vpack.c.b16 %v2112, %v2111
        %v2116 = vpack.c.b16 %v2114, %v2113
        %v2120 = vsel %vm900, %v2101, 0
        %v2123 = vsel %vm900, %v2102, 0
        %2125 = vmatprep.subr.bf16.mxu0 0
        %2126 = vmatpush1.bf16.msra.mxu0 %v2115
        %2127 = vmatprep.subr.bf16.mxu0 0
        %2128 = vmatpush1.bf16.msra.mxu0 %v2116
        %2129 = vmatprep.subr.bf16.mxu0 0
        %2130 = vmatpush1.bf16.msra.mxu0 0
        %2131 = vmatprep.subr.bf16.mxu0 0
        %2132 = vmatpush1.bf16.msra.mxu0 0
        %2133 = vmatprep.subr.bf16.mxu0 0
        %2134 = vmatpush1.bf16.msra.mxu0 0
        %2135 = vmatprep.subr.bf16.mxu0 0
        %2136 = vmatpush1.bf16.msra.mxu0 0
        %2137 = vmatprep.subr.bf16.mxu0 0
        %2138 = vmatpush1.bf16.msra.mxu0 0
        %2139 = vmatprep.subr.bf16.mxu0 0
        %2140 = vmatpush1.bf16.msra.mxu0 0
        %2141 = vmatprep.subr.bf16.mxu0 0
        %2142 = vmatpush1.bf16.msra.mxu0 0
        %2143 = vmatprep.subr.bf16.mxu0 0
        %2144 = vmatpush1.bf16.msra.mxu0 0
        %2145 = vmatprep.subr.bf16.mxu0 0
        %2146 = vmatpush1.bf16.msra.mxu0 0
        %2147 = vmatprep.subr.bf16.mxu0 0
        %2148 = vmatpush1.bf16.msra.mxu0 0
        %2149 = vmatprep.subr.bf16.mxu0 0
        %2150 = vmatpush1.bf16.msra.mxu0 0
        %2151 = vmatprep.subr.bf16.mxu0 0
        %2152 = vmatpush1.bf16.msra.mxu0 0
        %2153 = vmatprep.subr.bf16.mxu0 0
        %2154 = vmatpush1.bf16.msra.mxu0 0
        %2155 = vmatprep.subr.bf16.mxu0 0
        %2156 = vmatpush1.bf16.msra.mxu0 0
        %2157 = vmatprep.mubr.bf16.mxu0 0
        %2158 = vmatmul.mubr.bf16.gmra.mrb[0].mxu0 %v2120
        %v2159 = vpop.f32.mrb[0].mxu0
        %v2160 = vadd.f32 0.0, %v2159
        %v2161 = vpop.f32.mrb[0].mxu0
        %v2162 = vpop.f32.mrb[0].mxu0
        %v2163 = vadd.f32 0.0, %v2162
        %v2164 = vpop.f32.mrb[0].mxu0
        %2165 = vmatprep.mubr.bf16.mxu0 0
        %2166 = vmatmul.mubr.bf16.gmra.mrb[0].mxu0 %v2123
        %v2167 = vpop.f32.mrb[0].mxu0
        %v2168 = vadd.f32 0.0, %v2167
        %v2169 = vpop.f32.mrb[0].mxu0
        %v2170 = vpop.f32.mrb[0].mxu0
        %v2171 = vadd.f32 0.0, %v2170
        %v2172 = vpop.f32.mrb[0].mxu0
        %2173 = vdwg.mxu0
        %v2174 = vadd.f32 %v894, %v2160
        %v2175 = vadd.f32 %v895, %v2163
        %v2176 = vadd.f32 %v896, %v2168
        %v2177 = vadd.f32 %v897, %v2171
        %v2178 = vld [vmem:[%s738] sm:$0x1]
        %v2180 = vlaneseq
        %v2181 = vshrl.u32 %v2180, 7
        %v2182 = vsub.s32 0, %v2181
        %v2183 = vrot.slane %v2178, %v2182
        %v2185 = vadd.f32 %v2174, %v2183
        %v2186 = vadd.f32 %v2175, %v2183
        %v2187 = vadd.f32 %v2176, %v2183
        %v2188 = vadd.f32 %v2177, %v2183
        %v2189 = vld [vmem:[%s741] sm:$0x1]
        %v2190 = vld [vmem:[%s744] sm:$0x1]
        %v2191 = vsel %vm900, %v2185, 0.0
        %2192 = vadd.xlane.f32.xlu0 %v2191
        %v2193 = vpop.xlane.xlu0 %2192
        %v2194 = vsel %vm900, %v2186, 0.0
        %2195 = vadd.xlane.f32.xlu0 %v2194
        %v2196 = vpop.xlane.xlu0 %2195
        %v2197 = vsel %vm900, %v2187, 0.0
        %2198 = vadd.xlane.f32.xlu0 %v2197
        %v2199 = vpop.xlane.xlu0 %2198
        %v2200 = vsel %vm900, %v2188, 0.0
        %2201 = vadd.xlane.f32.xlu0 %v2200
        %v2202 = vpop.xlane.xlu0 %2201
        %v2203 = vmul.f32 %v2193, %v913
        %v2204 = vmul.f32 %v2196, %v913
        %v2205 = vmul.f32 %v2199, %v913
        %v2206 = vmul.f32 %v2202, %v913
        %v2207 = vsub.f32 %v2185, %v2203
        %v2208 = vsub.f32 %v2186, %v2204
        %v2209 = vsub.f32 %v2187, %v2205
        %v2210 = vsub.f32 %v2188, %v2206
        %v2211 = vmul.f32 %v2207, %v2207
        %v2212 = vmul.f32 %v2208, %v2208
        %v2213 = vmul.f32 %v2209, %v2209
        %v2214 = vmul.f32 %v2210, %v2210
        %v2215 = vsel %vm900, %v2211, 0.0
        %2216 = vadd.xlane.f32.xlu0 %v2215
        %v2217 = vpop.xlane.xlu0 %2216
        %v2218 = vsel %vm900, %v2212, 0.0
        %2219 = vadd.xlane.f32.xlu0 %v2218
        %v2220 = vpop.xlane.xlu0 %2219
        %v2221 = vsel %vm900, %v2213, 0.0
        %2222 = vadd.xlane.f32.xlu0 %v2221
        %v2223 = vpop.xlane.xlu0 %2222
        %v2224 = vsel %vm900, %v2214, 0.0
        %2225 = vadd.xlane.f32.xlu0 %v2224
        %v2226 = vpop.xlane.xlu0 %2225
        %v2227 = vmul.f32 %v2217, %v913
        %v2228 = vmul.f32 %v2220, %v913
        %v2229 = vmul.f32 %v2223, %v913
        %v2230 = vmul.f32 %v2226, %v913
        %v2231 = vadd.f32 %v2227, 1e-06
        %v2232 = vadd.f32 %v2228, 1e-06
        %v2233 = vadd.f32 %v2229, 1e-06
        %v2234 = vadd.f32 %v2230, 1e-06
        %v2235 = vrsqrt.pop %v2231
        %v2236 = vrsqrt.pop %v2232
        %v2237 = vrsqrt.pop %v2233
        %v2238 = vrsqrt.pop %v2234
        %v2239 = vmul.f32 %v2207, %v2235
        %v2240 = vmul.f32 %v2208, %v2236
        %v2241 = vmul.f32 %v2209, %v2237
        %v2242 = vmul.f32 %v2210, %v2238
        %v2244 = vlaneseq
        %v2245 = vshrl.u32 %v2244, 7
        %v2246 = vsub.s32 0, %v2245
        %v2247 = vrot.slane %v2189, %v2246
        %v2249 = vmul.f32 %v2239, %v2247
        %v2250 = vmul.f32 %v2240, %v2247
        %v2251 = vmul.f32 %v2241, %v2247
        %v2252 = vmul.f32 %v2242, %v2247
        %v2254 = vlaneseq
        %v2255 = vshrl.u32 %v2254, 7
        %v2256 = vsub.s32 0, %v2255
        %v2257 = vrot.slane %v2190, %v2256
        %v2259 = vadd.f32 %v2249, %v2257
        %v2260 = vadd.f32 %v2250, %v2257
        %v2261 = vadd.f32 %v2251, %v2257
        %v2262 = vadd.f32 %v2252, %v2257
        %v2263 = vpack.c.bf16 %v2260, %v2259
        %v2264 = vpack.c.bf16 %v2262, %v2261
        %v2265 = vld [vmem:[%s749] sm:$0xf]
        %v2266 = vld [vmem:[%s749 + $0x4] sm:$0xf]
        %v2267 = vld [vmem:[%s749 + $0x8] sm:$0xf]
        %v2268 = vld [vmem:[%s749 + $0xc] sm:$0xf]
        %v2269 = vld [vmem:[%s752] sm:$0x1]
        %v2271 = vlaneseq
        %v2272 = vshrl.u32 %v2271, 7
        %v2273 = vsub.s32 0, %v2272
        %v2274 = vrot.slane %v2269, %v2273
        %v2280 = vunpack.c.l.b16 %v2265
        %v2281 = vunpack.c.l.b16 %v2266
        %v2282 = vunpack.c.l.b16 %v2267
        %v2283 = vunpack.c.l.b16 %v2268
        %v2284 = vpack.c.b16 %v2281, %v2280
        %v2285 = vpack.c.b16 %v2283, %v2282
        %v2289 = vsel %vm900, %v2263, 0
        %v2292 = vsel %vm900, %v2264, 0
        %2294 = vmatprep.subr.bf16.mxu0 0
        %2295 = vmatpush1.bf16.msra.mxu0 %v2284
        %2296 = vmatprep.subr.bf16.mxu0 0
        %2297 = vmatpush1.bf16.msra.mxu0 %v2285
        %2298 = vmatprep.subr.bf16.mxu0 0
        %2299 = vmatpush1.bf16.msra.mxu0 0
        %2300 = vmatprep.subr.bf16.mxu0 0
        %2301 = vmatpush1.bf16.msra.mxu0 0
        %2302 = vmatprep.subr.bf16.mxu0 0
        %2303 = vmatpush1.bf16.msra.mxu0 0
        %2304 = vmatprep.subr.bf16.mxu0 0
        %2305 = vmatpush1.bf16.msra.mxu0 0
        %2306 = vmatprep.subr.bf16.mxu0 0
        %2307 = vmatpush1.bf16.msra.mxu0 0
        %2308 = vmatprep.subr.bf16.mxu0 0
        %2309 = vmatpush1.bf16.msra.mxu0 0
        %2310 = vmatprep.subr.bf16.mxu0 0
        %2311 = vmatpush1.bf16.msra.mxu0 0
        %2312 = vmatprep.subr.bf16.mxu0 0
        %2313 = vmatpush1.bf16.msra.mxu0 0
        %2314 = vmatprep.subr.bf16.mxu0 0
        %2315 = vmatpush1.bf16.msra.mxu0 0
        %2316 = vmatprep.subr.bf16.mxu0 0
        %2317 = vmatpush1.bf16.msra.mxu0 0
        %2318 = vmatprep.subr.bf16.mxu0 0
        %2319 = vmatpush1.bf16.msra.mxu0 0
        %2320 = vmatprep.subr.bf16.mxu0 0
        %2321 = vmatpush1.bf16.msra.mxu0 0
        %2322 = vmatprep.subr.bf16.mxu0 0
        %2323 = vmatpush1.bf16.msra.mxu0 0
        %2324 = vmatprep.subr.bf16.mxu0 0
        %2325 = vmatpush1.bf16.msra.mxu0 0
        %2326 = vmatprep.mubr.bf16.mxu0 0
        %2327 = vmatmul.mubr.bf16.gmra.mrb[0].mxu0 %v2289
        %v2328 = vpop.f32.mrb[0].mxu0
        %v2329 = vadd.f32 %v2274, %v2328
        %v2330 = vpop.f32.mrb[0].mxu0
        %v2331 = vpop.f32.mrb[0].mxu0
        %v2332 = vadd.f32 %v2274, %v2331
        %v2333 = vpop.f32.mrb[0].mxu0
        %2334 = vmatprep.mubr.bf16.mxu0 0
        %2335 = vmatmul.mubr.bf16.gmra.mrb[0].mxu0 %v2292
        %v2336 = vpop.f32.mrb[0].mxu0
        %v2337 = vadd.f32 %v2274, %v2336
        %v2338 = vpop.f32.mrb[0].mxu0
        %v2339 = vpop.f32.mrb[0].mxu0
        %v2340 = vadd.f32 %v2274, %v2339
        %v2341 = vpop.f32.mrb[0].mxu0
        %2342 = vdwg.mxu0
        %v2343 = vmul.f32 %v2329, %v2329
        %v2344 = vmul.f32 %v2332, %v2332
        %v2345 = vmul.f32 %v2337, %v2337
        %v2346 = vmul.f32 %v2340, %v2340
        %v2347 = vmul.f32 %v2329, %v2343
        %v2348 = vmul.f32 %v2332, %v2344
        %v2349 = vmul.f32 %v2337, %v2345
        %v2350 = vmul.f32 %v2340, %v2346
        %v2351 = vmul.f32 %v2347, 0.044715
        %v2352 = vmul.f32 %v2348, 0.044715
        %v2353 = vmul.f32 %v2349, 0.044715
        %v2354 = vmul.f32 %v2350, 0.044715
        %v2355 = vadd.f32 %v2329, %v2351
        %v2356 = vadd.f32 %v2332, %v2352
        %v2357 = vadd.f32 %v2337, %v2353
        %v2358 = vadd.f32 %v2340, %v2354
        %v2359 = vmul.f32 %v2355, 0.7978846
        %v2360 = vmul.f32 %v2356, 0.7978846
        %v2361 = vmul.f32 %v2357, 0.7978846
        %v2362 = vmul.f32 %v2358, 0.7978846
        %v2363 = vtanh.pop %v2359
        %v2364 = vtanh.pop %v2360
        %v2365 = vtanh.pop %v2361
        %v2366 = vtanh.pop %v2362
        %v2367 = vadd.f32 %v2363, 1.0
        %v2368 = vadd.f32 %v2364, 1.0
        %v2369 = vadd.f32 %v2365, 1.0
        %v2370 = vadd.f32 %v2366, 1.0
        %v2371 = vmul.f32 %v2367, 0.5
        %v2372 = vmul.f32 %v2368, 0.5
        %v2373 = vmul.f32 %v2369, 0.5
        %v2374 = vmul.f32 %v2370, 0.5
        %v2375 = vmul.f32 %v2329, %v2371
        %v2376 = vmul.f32 %v2332, %v2372
        %v2377 = vmul.f32 %v2337, %v2373
        %v2378 = vmul.f32 %v2340, %v2374
        %v2379 = vpack.c.bf16 %v2376, %v2375
        %v2380 = vpack.c.bf16 %v2378, %v2377
        %v2381 = vld [vmem:[%s757] sm:$0xf]
        %v2382 = vld [vmem:[%s757 + $0x4] sm:$0xf]
        %v2383 = vld [vmem:[%s757 + $0x8] sm:$0xf]
        %v2384 = vld [vmem:[%s757 + $0xc] sm:$0xf]
        %v2385 = vld [vmem:[%s757 + $0x10] sm:$0xf]
        %v2386 = vld [vmem:[%s757 + $0x14] sm:$0xf]
        %v2387 = vld [vmem:[%s757 + $0x18] sm:$0xf]
        %v2388 = vld [vmem:[%s757 + $0x1c] sm:$0xf]
        %v2389 = vld [vmem:[%s757 + $0x20] sm:$0xf]
        %v2390 = vld [vmem:[%s757 + $0x24] sm:$0xf]
        %v2391 = vld [vmem:[%s757 + $0x28] sm:$0xf]
        %v2392 = vld [vmem:[%s757 + $0x2c] sm:$0xf]
        %v2393 = vld [vmem:[%s757 + $0x30] sm:$0xf]
        %v2394 = vld [vmem:[%s757 + $0x34] sm:$0xf]
        %v2395 = vld [vmem:[%s757 + $0x38] sm:$0xf]
        %v2396 = vld [vmem:[%s757 + $0x3c] sm:$0xf]
        %v2397 = vld [vmem:[%s760] sm:$0x1]
        %v2399 = vlaneseq
        %v2400 = vshrl.u32 %v2399, 7
        %v2401 = vsub.s32 0, %v2400
        %v2402 = vrot.slane %v2397, %v2401
        %v2420 = vunpack.c.l.b16 %v2381
        %v2421 = vunpack.c.l.b16 %v2382
        %v2422 = vunpack.c.l.b16 %v2383
        %v2423 = vunpack.c.l.b16 %v2384
        %v2424 = vunpack.c.l.b16 %v2385
        %v2425 = vunpack.c.l.b16 %v2386
        %v2426 = vunpack.c.l.b16 %v2387
        %v2427 = vunpack.c.l.b16 %v2388
        %v2428 = vunpack.c.l.b16 %v2389
        %v2429 = vunpack.c.l.b16 %v2390
        %v2430 = vunpack.c.l.b16 %v2391
        %v2431 = vunpack.c.l.b16 %v2392
        %v2432 = vunpack.c.l.b16 %v2393
        %v2433 = vunpack.c.l.b16 %v2394
        %v2434 = vunpack.c.l.b16 %v2395
        %v2435 = vunpack.c.l.b16 %v2396
        %v2436 = vpack.c.b16 %v2421, %v2420
        %v2437 = vpack.c.b16 %v2423, %v2422
        %v2438 = vpack.c.b16 %v2425, %v2424
        %v2439 = vpack.c.b16 %v2427, %v2426
        %v2440 = vpack.c.b16 %v2429, %v2428
        %v2441 = vpack.c.b16 %v2431, %v2430
        %v2442 = vpack.c.b16 %v2433, %v2432
        %v2443 = vpack.c.b16 %v2435, %v2434
        %2452 = vmatprep.subr.bf16.mxu0 0
        %2453 = vmatpush1.bf16.msra.mxu0 %v2436
        %2454 = vmatprep.subr.bf16.mxu0 0
        %2455 = vmatpush1.bf16.msra.mxu0 %v2437
        %2456 = vmatprep.subr.bf16.mxu0 0
        %2457 = vmatpush1.bf16.msra.mxu0 %v2438
        %2458 = vmatprep.subr.bf16.mxu0 0
        %2459 = vmatpush1.bf16.msra.mxu0 %v2439
        %2460 = vmatprep.subr.bf16.mxu0 0
        %2461 = vmatpush1.bf16.msra.mxu0 %v2440
        %2462 = vmatprep.subr.bf16.mxu0 0
        %2463 = vmatpush1.bf16.msra.mxu0 %v2441
        %2464 = vmatprep.subr.bf16.mxu0 0
        %2465 = vmatpush1.bf16.msra.mxu0 %v2442
        %2466 = vmatprep.subr.bf16.mxu0 0
        %2467 = vmatpush1.bf16.msra.mxu0 %v2443
        %2468 = vmatprep.subr.bf16.mxu0 0
        %2469 = vmatpush1.bf16.msra.mxu0 0
        %2470 = vmatprep.subr.bf16.mxu0 0
        %2471 = vmatpush1.bf16.msra.mxu0 0
        %2472 = vmatprep.subr.bf16.mxu0 0
        %2473 = vmatpush1.bf16.msra.mxu0 0
        %2474 = vmatprep.subr.bf16.mxu0 0
        %2475 = vmatpush1.bf16.msra.mxu0 0
        %2476 = vmatprep.subr.bf16.mxu0 0
        %2477 = vmatpush1.bf16.msra.mxu0 0
        %2478 = vmatprep.subr.bf16.mxu0 0
        %2479 = vmatpush1.bf16.msra.mxu0 0
        %2480 = vmatprep.subr.bf16.mxu0 0
        %2481 = vmatpush1.bf16.msra.mxu0 0
        %2482 = vmatprep.subr.bf16.mxu0 0
        %2483 = vmatpush1.bf16.msra.mxu0 0
        %2484 = vmatprep.mubr.bf16.mxu0 0
        %2485 = vmatmul.mubr.bf16.gmra.mrb[0].mxu0 %v2379
        %v2486 = vpop.f32.mrb[0].mxu0
        %v2487 = vadd.f32 %v2402, %v2486
        %v2488 = vpop.f32.mrb[0].mxu0
        %v2489 = vpop.f32.mrb[0].mxu0
        %v2490 = vadd.f32 %v2402, %v2489
        %v2491 = vpop.f32.mrb[0].mxu0
        %2492 = vmatprep.mubr.bf16.mxu0 0
        %2493 = vmatmul.mubr.bf16.gmra.mrb[0].mxu0 %v2380
        %v2494 = vpop.f32.mrb[0].mxu0
        %v2495 = vadd.f32 %v2402, %v2494
        %v2496 = vpop.f32.mrb[0].mxu0
        %v2497 = vpop.f32.mrb[0].mxu0
        %v2498 = vadd.f32 %v2402, %v2497
        %v2499 = vpop.f32.mrb[0].mxu0
        %2500 = vdwg.mxu0
        %v2501 = vadd.f32 %v2185, %v2487
        %v2502 = vadd.f32 %v2186, %v2490
        %v2503 = vadd.f32 %v2187, %v2495
        %v2504 = vadd.f32 %v2188, %v2498
        %p2505 = scmp.lt.s32.totalorder %s31, 1
        // Predicated region
        $region101: #{ast_encoder_forward.1} parent=95 // pred_check
          %p2506 = pneg %p2505
        $region102: #{ast_encoder_forward.1} parent=95 // pred_check_branch
          %2508 = sbr.rel (%p2506) target = $region104
        $region103: #{ast_encoder_forward.1} parent=95 // pred_region
          %2509 = vst.msk [vmem:[#allocation2] sm:$0xff] %vm900, %v2501
          %2510 = vst.msk [vmem:[#allocation2 + $0x8] sm:$0xff] %vm900, %v2502
          %2511 = vst.msk [vmem:[#allocation2 + $0x10] sm:$0xff] %vm900, %v2503
          %2512 = vst.msk [vmem:[#allocation2 + $0x18] sm:$0xff] %vm900, %v2504
        $region104: #{ast_encoder_forward.1} parent=95 // pred_fallthru
          _
        %p2513 = scmp.eq.s32.totalorder %s31, 1
        // Predicated region
        $region105: #{ast_encoder_forward.1} parent=95 // pred_check
          %p2514 = pneg %p2513
        $region106: #{ast_encoder_forward.1} parent=95 // pred_check_branch
          %2516 = sbr.rel (%p2514) target = $region108
        $region107: #{ast_encoder_forward.1} parent=95 // pred_region
          %v2517 = vld [vmem:[%s17] sm:$0x1]
          %v2518 = vld [vmem:[%s18] sm:$0x1]
          %v2519 = vsel %vm900, %v2501, 0.0
          %2520 = vadd.xlane.f32.xlu0 %v2519
          %v2521 = vpop.xlane.xlu0 %2520
          %v2522 = vsel %vm900, %v2502, 0.0
          %2523 = vadd.xlane.f32.xlu0 %v2522
          %v2524 = vpop.xlane.xlu0 %2523
          %v2525 = vsel %vm900, %v2503, 0.0
          %2526 = vadd.xlane.f32.xlu0 %v2525
          %v2527 = vpop.xlane.xlu0 %2526
          %v2528 = vsel %vm900, %v2504, 0.0
          %2529 = vadd.xlane.f32.xlu0 %v2528
          %v2530 = vpop.xlane.xlu0 %2529
          %v2531 = vmul.f32 %v2521, %v913
          %v2532 = vmul.f32 %v2524, %v913
          %v2533 = vmul.f32 %v2527, %v913
          %v2534 = vmul.f32 %v2530, %v913
          %v2535 = vsub.f32 %v2501, %v2531
          %v2536 = vsub.f32 %v2502, %v2532
          %v2537 = vsub.f32 %v2503, %v2533
          %v2538 = vsub.f32 %v2504, %v2534
          %v2539 = vmul.f32 %v2535, %v2535
          %v2540 = vmul.f32 %v2536, %v2536
          %v2541 = vmul.f32 %v2537, %v2537
          %v2542 = vmul.f32 %v2538, %v2538
          %v2543 = vsel %vm900, %v2539, 0.0
          %2544 = vadd.xlane.f32.xlu0 %v2543
          %v2545 = vpop.xlane.xlu0 %2544
          %v2546 = vsel %vm900, %v2540, 0.0
          %2547 = vadd.xlane.f32.xlu0 %v2546
          %v2548 = vpop.xlane.xlu0 %2547
          %v2549 = vsel %vm900, %v2541, 0.0
          %2550 = vadd.xlane.f32.xlu0 %v2549
          %v2551 = vpop.xlane.xlu0 %2550
          %v2552 = vsel %vm900, %v2542, 0.0
          %2553 = vadd.xlane.f32.xlu0 %v2552
          %v2554 = vpop.xlane.xlu0 %2553
          %v2555 = vmul.f32 %v2545, %v913
          %v2556 = vmul.f32 %v2548, %v913
          %v2557 = vmul.f32 %v2551, %v913
          %v2558 = vmul.f32 %v2554, %v913
          %v2559 = vadd.f32 %v2555, 1e-06
          %v2560 = vadd.f32 %v2556, 1e-06
          %v2561 = vadd.f32 %v2557, 1e-06
          %v2562 = vadd.f32 %v2558, 1e-06
          %v2563 = vrsqrt.pop %v2559
          %v2564 = vrsqrt.pop %v2560
          %v2565 = vrsqrt.pop %v2561
          %v2566 = vrsqrt.pop %v2562
          %v2567 = vmul.f32 %v2535, %v2563
          %v2568 = vmul.f32 %v2536, %v2564
          %v2569 = vmul.f32 %v2537, %v2565
          %v2570 = vmul.f32 %v2538, %v2566
          %v2572 = vlaneseq
          %v2573 = vshrl.u32 %v2572, 7
          %v2574 = vsub.s32 0, %v2573
          %v2575 = vrot.slane %v2517, %v2574
          %v2577 = vmul.f32 %v2567, %v2575
          %v2578 = vmul.f32 %v2568, %v2575
          %v2579 = vmul.f32 %v2569, %v2575
          %v2580 = vmul.f32 %v2570, %v2575
          %v2582 = vlaneseq
          %v2583 = vshrl.u32 %v2582, 7
          %v2584 = vsub.s32 0, %v2583
          %v2585 = vrot.slane %v2518, %v2584
          %v2587 = vadd.f32 %v2577, %v2585
          %v2588 = vadd.f32 %v2578, %v2585
          %v2589 = vadd.f32 %v2579, %v2585
          %v2590 = vadd.f32 %v2580, %v2585
          %2591 = vst.msk [vmem:[#allocation2] sm:$0xff] %vm900, %v2587
          %2592 = vst.msk [vmem:[#allocation2 + $0x8] sm:$0xff] %vm900, %v2588
          %2593 = vst.msk [vmem:[#allocation2 + $0x10] sm:$0xff] %vm900, %v2589
          %2594 = vst.msk [vmem:[#allocation2 + $0x18] sm:$0xff] %vm900, %v2590
        $region108: #{ast_encoder_forward.1} parent=95 // pred_fallthru
          _
        // Predicated region
        $region109: #{ast_encoder_forward.1} parent=95 // pred_check
          %p2595 = pneg %p503
        $region110: #{ast_encoder_forward.1} parent=95 // pred_check_branch
          %2597 = sbr.rel (%p2595) target = $region112
        $region111: #{ast_encoder_forward.1} parent=95 // pred_region
          %s2599 = ssub.s32 512, 512
          %2600 = vsyncadd [#allocation3], %s2599
          %s2601 = sshll.u32 [#allocation2], 4
          %s2602 = int_to_ptr.vmem [resolvable:$true] %s2601
          %2607 = dma.vmem_to_hbm [thread:$0]  %s2602, 512, %s19, [#allocation3], 128, 128, 8
        $region112: #{ast_encoder_forward.1} parent=95 // pred_fallthru
          _
        // Predicated region
        $region113: #{ast_encoder_forward.1} parent=95 // pred_check
          %p2608 = pneg %p503
        $region114: #{ast_encoder_forward.1} parent=95 // pred_check_branch
          %2610 = sbr.rel (%p2608) target = $region116
        $region115: #{ast_encoder_forward.1} parent=95 // pred_region
          %2611 = dma.done [#allocation3], 512
        $region116: #{ast_encoder_forward.1} parent=95 // pred_fallthru
          _
      $region96: #{ast_encoder_forward.1} parent=5 // pred_fallthru
        _
      %p2612 = scmp.le.s32.totalorder 2, %s26
      // Predicated region
      $region117: #{ast_encoder_forward.1} parent=5 // pred_check
        %p2613 = pneg %p2612
      $region118: #{ast_encoder_forward.1} parent=5 // pred_check_branch
        %2615 = sbr.rel (%p2613) target = $region120
      $region119: #{ast_encoder_forward.1} parent=5 // pred_region
        %s2616 = ssub.s32 %s26, 2
      $region120: #{ast_encoder_forward.1} parent=5 // pred_fallthru
        _
    $region6: #{ast_encoder_forward.1} parent=1 // loop_footer
      %s30 = sadd.s32 1, %s26
    $region7: #{ast_encoder_forward.1} parent=1 // loop_footer_branch
      %25 = sbr.rel target = $region3
    $region8: #{ast_encoder_forward.1} parent=1 // loop_exit
      _
    %2617 = vsyncpa [#allocation3], 1
    %s2618 = scalar_lea.sflag [#allocation3], 1
    %2619 = vsyncpa %s2618, 1

</llo_original>
